<compile_context>
chip_gen: v5e
topology: v5e:2x2
jax: 0.10.0
libtpu: 0.0.40
codegen_flags: <defaults>
</compile_context>

<pallas_src>
import functools
import math

import jax
import jax.numpy as jnp
from jax.experimental import pallas as pl
from jax.experimental.pallas import tpu as pltpu

LANE = 128


def _round_up(x, m):
    return ((x + m - 1) // m) * m


# -----------------------------------------------------------------------------
# Kernel 1: row/K-tiled GCN aggregation over the lane-fused (b, p) feature slab,
# with the semantic-attention logit partial sums fused into the last-K epilogue.
# -----------------------------------------------------------------------------
def gcn_attn_kernel(n_real, num_bp, d_pad, adj_ref, seq_ref, bias_ref, prelu_ref,
                    fcw_ref, fcb_ref, embeds_ref, ssum_ref, acc_ref):
    i = pl.program_id(0)          # row tile
    k = pl.program_id(1)          # K (contraction) tile
    nk = pl.num_programs(1)
    tm = adj_ref.shape[0]

    @pl.when(k == 0)
    def _():
        acc_ref[...] = jnp.zeros_like(acc_ref)

    # (tm, tk) @ (tk, W) -> accumulate f32 in VMEM scratch.
    acc_ref[...] += jnp.dot(adj_ref[...], seq_ref[...],
                            preferred_element_type=jnp.float32)

    @pl.when(k == nk - 1)
    def _():
        # Epilogue: per-(b, p) bias + PReLU on lane slices (bias/slope pre-fused
        # into (1, W) per-lane vectors on the host).
        out = acc_ref[...] + bias_ref[...]
        out = jnp.where(out > 0.0, out, prelu_ref[...] * out)
        embeds_ref[...] = out.astype(embeds_ref.dtype)     # bf16 writeback

        # Fused attention-logit partial: per (b, p) slice, sum over valid rows of
        # tanh(out_p @ Wfc + bfc).  Per-tile partials -> row-tile axis stays parallel.
        rows = i * tm + jax.lax.broadcasted_iota(jnp.int32, (tm, d_pad), 0)
        valid = rows < n_real
        parts = []
        for j in range(num_bp):                            # static, small (B*P)
            # TODO(synk): when D << d_pad the fc/tanh runs on zero-padded lanes too;
            # packing only the real D columns would cut EUP work on v5e.
            oj = out[:, j * d_pad:(j + 1) * d_pad].astype(jnp.bfloat16)
            sp = jnp.tanh(
                jnp.dot(oj, fcw_ref[...], preferred_element_type=jnp.float32)
                + fcb_ref[...])
            sp = jnp.where(valid, sp, 0.0)
            parts.append(jnp.sum(sp, axis=0, keepdims=True))   # cross-sublane reduce
        ssum_ref[...] = jnp.concatenate(parts, axis=-1)[None]


# -----------------------------------------------------------------------------
# Kernel 2: weighted fuse  z[b] = sum_p beta[b, p] * embeds[b, p]  on the
# lane-fused bf16 embeds; beta is pre-expanded into a (1, W) per-lane vector.
# -----------------------------------------------------------------------------
def fuse_kernel(B, P, d_pad, embeds_ref, beta_ref, out_ref):
    w = embeds_ref[...].astype(jnp.float32) * beta_ref[...]
    zs = []
    for b in range(B):
        acc = w[:, (b * P) * d_pad:(b * P + 1) * d_pad]
        for p in range(1, P):
            acc = acc + w[:, (b * P + p) * d_pad:(b * P + p + 1) * d_pad]
        zs.append(acc)
    out_ref[...] = jnp.concatenate(zs, axis=-1)


def _encode_batch(pp, h_pad, adj_p, n_real, d_real, tm, tk):
    """h_pad: (B, n_pad, d_pad) bf16; adj_p: (n_pad, n_pad) bf16 -> z: (B, N, D) f32."""
    B, n_pad, d_pad = h_pad.shape
    P = pp["gcn_w"].shape[0]
    num_bp = B * P
    W = num_bp * d_pad
    nt = n_pad // tm
    kt = n_pad // tk

    # seq_all[n, (b, p, e)] = (h_b @ W_p)[n, e], lane-fused over (b, p).  Plain XLA einsum
    # (bf16 MXU inputs, f32 accumulation) - removes full-h residency from the kernel.
    seq_all = jnp.einsum("bnd,pde->nbpe", h_pad, pp["gcn_w"],
                         preferred_element_type=jnp.float32)
    seq_all = seq_all.reshape(n_pad, W).astype(jnp.bfloat16)

    # Per-lane fused bias and PReLU slope vectors (lane order: b-major, then p, then e).
    bias_vec = jnp.tile(pp["gcn_b"].reshape(-1), (B,))[None, :].astype(jnp.float32)
    prelu_vec = jnp.tile(jnp.repeat(pp["gcn_prelu"], d_pad), (B,))[None, :].astype(jnp.float32)

    # VMEM residency: 2x adj tile + 2x seq tile + f32 acc scratch + 2x embeds tile + small.
    est = (2 * tm * tk * 2 + 2 * tk * W * 2 + tm * W * 4 + 2 * tm * W * 2
           + 2 * W * 4 + d_pad * d_pad * 2 + 4 * W * 4 + 2 * d_pad * 4)
    vmem_gcn = int(min(48 * 1024 * 1024, max(4 * 1024 * 1024, 2 * est)))

    seq_read_bytes = (nt if kt > 1 else 1) * n_pad * W * 2
    cost = pl.CostEstimate(
        flops=int(2 * n_pad * n_pad * W + 2 * n_pad * num_bp * d_pad * d_pad),
        transcendentals=int(n_pad * num_bp * d_pad),
        bytes_accessed=int(n_pad * n_pad * 2 + seq_read_bytes + n_pad * W * 2
                           + nt * W * 4 + d_pad * d_pad * 2 + 4 * W * 4),
    )

    embeds, ssum = pl.pallas_call(
        functools.partial(gcn_attn_kernel, n_real, num_bp, d_pad),
        out_shape=(
            jax.ShapeDtypeStruct((n_pad, W), jnp.bfloat16),   # lane-fused embeds (bf16)
            jax.ShapeDtypeStruct((nt, 1, W), jnp.float32),    # per-row-tile logit partials
        ),
        grid=(nt, kt),
        in_specs=[
            pl.BlockSpec((tm, tk), lambda i, k: (i, k)),        # adj (streamed once)
            pl.BlockSpec((tk, W), lambda i, k: (k, 0)),         # seq_all K-slice
            pl.BlockSpec((1, W), lambda i, k: (0, 0)),          # fused bias vector
            pl.BlockSpec((1, W), lambda i, k: (0, 0)),          # fused PReLU slopes
            pl.BlockSpec((d_pad, d_pad), lambda i, k: (0, 0)),  # attention fc weight
            pl.BlockSpec((1, d_pad), lambda i, k: (0, 0)),      # attention fc bias
        ],
        out_specs=(
            pl.BlockSpec((tm, W), lambda i, k: (i, 0)),
            pl.BlockSpec((1, 1, W), lambda i, k: (i, 0, 0)),
        ),
        scratch_shapes=[pltpu.VMEM((tm, W), jnp.float32)],
        compiler_params=pltpu.CompilerParams(
            dimension_semantics=("parallel", "arbitrary"),
            vmem_limit_bytes=vmem_gcn,
        ),
        cost_estimate=cost,
    )(adj_p, seq_all, bias_vec, prelu_vec, pp["att_fc_w"], pp["att_fc_b"])

    # Tiny (B, P, d_pad) epilogue on the host: mean over valid rows, logits, softmax over P.
    s = jnp.sum(ssum, axis=(0, 1)).reshape(B, P, d_pad)
    logits = jnp.einsum("bpd,d->bp", s, pp["att_vec"]) / float(n_real)
    beta = jax.nn.softmax(logits, axis=-1).astype(jnp.float32)            # (B, P)
    beta_vec = jnp.repeat(beta.reshape(-1), d_pad)[None, :].astype(jnp.float32)  # (1, W)

    est_fuse = 2 * tm * W * 2 + 2 * W * 4 + 2 * tm * B * d_pad * 4
    vmem_fuse = int(min(48 * 1024 * 1024, max(4 * 1024 * 1024, 2 * est_fuse)))

    z_fused = pl.pallas_call(
        functools.partial(fuse_kernel, B, P, d_pad),
        out_shape=jax.ShapeDtypeStruct((n_pad, B * d_pad), jnp.float32),
        grid=(nt,),
        in_specs=[
            pl.BlockSpec((tm, W), lambda i: (i, 0)),
            pl.BlockSpec((1, W), lambda i: (0, 0)),
        ],
        out_specs=pl.BlockSpec((tm, B * d_pad), lambda i: (i, 0)),
        compiler_params=pltpu.CompilerParams(
            dimension_semantics=("parallel",),
            vmem_limit_bytes=vmem_fuse,
        ),
    )(embeds, beta_vec)

    # Slice away node / feature padding per batch slot.
    return jnp.stack(
        [z_fused[:n_real, b * d_pad:b * d_pad + d_real] for b in range(B)], axis=0)


# -----------------------------------------------------------------------------
# Host-side glue (parameter init, padding/casting, random masking, orchestration).
# -----------------------------------------------------------------------------
def xavier_normal(key, shape, gain):
    fan_in = shape[-1]
    fan_out = shape[-2] if len(shape) > 1 else shape[-1]
    std = gain * math.sqrt(2.0 / (fan_in + fan_out))
    return std * jax.random.normal(key, shape, dtype=jnp.float32)


def init_params(key, P, D):
    k = jax.random.split(key, 4)
    gain = 1.414
    return {
        # per-metapath GCN: weight stored transposed vs torch (used as h @ W), bias, PReLU slope
        "gcn_w": xavier_normal(k[0], (P, D, D), gain),
        "gcn_b": jnp.zeros((P, D), jnp.float32),
        "gcn_prelu": jnp.full((P,), 0.25, jnp.float32),
        # semantic attention: fc weight (transposed vs torch) / bias + attention vector
        "att_fc_w": xavier_normal(k[1], (D, D), gain),
        "att_fc_b": (1.0 / math.sqrt(D))
        * (2.0 * jax.random.uniform(k[2], (D,), dtype=jnp.float32) - 1.0),
        "att_vec": xavier_normal(k[3], (1, D), gain),
        # TODO(synk): Attention.attn_drop (nn.Dropout) is instantiated with attn_drop=0 -> identity.
    }


def _pad_params(params, d_pad):
    P, D, _ = params["gcn_w"].shape
    pd = d_pad - D
    return {
        "gcn_w": jnp.pad(params["gcn_w"], ((0, 0), (0, pd), (0, pd))).astype(jnp.bfloat16),
        "gcn_b": jnp.pad(params["gcn_b"], ((0, 0), (0, pd))).astype(jnp.float32),
        "gcn_prelu": params["gcn_prelu"].astype(jnp.float32),
        "att_fc_w": jnp.pad(params["att_fc_w"], ((0, pd), (0, pd))).astype(jnp.bfloat16),
        "att_fc_b": jnp.pad(params["att_fc_b"], ((0, pd),))[None, :].astype(jnp.float32),
        "att_vec": jnp.pad(params["att_vec"][0], ((0, pd),)).astype(jnp.float32),
    }


def uniform_random_mask(key, N, mask_ratio):
    # equivalent of torch.randperm(N)[:int(N*ratio)] -> boolean mask
    mask_num = int(N * mask_ratio)
    idx = jax.random.permutation(key, N)[:mask_num]
    mask = jnp.zeros((N,), dtype=bool)
    if mask_num > 0:
        mask = mask.at[idx].set(True)
    return mask


def apply_mask(x, mask):
    return x * (1.0 - mask.astype(x.dtype))[:, None]


def mp_encoder_forward(params, h, adj, mask1, mask2, *, row_tile=512, k_tile_cap=4096):
    N, D = h.shape
    d_pad = _round_up(D, LANE)
    tm = max(8, _round_up(row_tile, 8))
    n_align = math.lcm(tm, LANE)
    n_pad = _round_up(N, n_align)
    tk_cap = max(LANE, _round_up(k_tile_cap, LANE))
    if n_pad <= tk_cap:
        tk = n_pad                     # K axis degenerates to one resident block
    else:
        tk = tk_cap                    # K-tile so residency scales with tk, not n_pad
        n_pad = _round_up(n_pad, math.lcm(n_align, tk))

    pp = _pad_params(params, d_pad)
    adj_p = jnp.pad(adj, ((0, n_pad - N), (0, n_pad - N))).astype(jnp.bfloat16)

    def pad_feats(x):  # (B, N, D) f32 -> (B, n_pad, d_pad) bf16 (MXU inputs)
        return jnp.pad(x, ((0, 0), (0, n_pad - N), (0, d_pad - D))).astype(jnp.bfloat16)

    # encode(h, mask_ratio1) and encode(h, 0) fused into one pallas_call (B = 2 in lanes)
    h_b = jnp.stack([apply_mask(h, mask1), h], axis=0)
    z_b = _encode_batch(pp, pad_feats(h_b), adj_p, N, D, tm, tk)
    z_mp, z_mp2 = z_b[0], z_b[1]

    # mask z_mp and decode through the same GCN + attention stack (B = 1)
    z_masked = apply_mask(z_mp, mask2)
    x_recon = _encode_batch(pp, pad_feats(z_masked[None]), adj_p, N, D, tm, tk)[0]
    return z_mp, z_mp2, x_recon


# -----------------------------------------------------------------------------
# Pure-JAX reference (unpadded, f32) for correctness checking.
# -----------------------------------------------------------------------------
def ref_forward(params, h, adj, mask1, mask2):
    P = params["gcn_w"].shape[0]

    def gcn(x, p):
        seq = x @ params["gcn_w"][p]
        out = adj @ seq + params["gcn_b"][p]
        a = params["gcn_prelu"][p]
        return jnp.where(out > 0, out, a * out)

    def attention(embeds):  # (P, N, D)
        sp = jnp.tanh(embeds @ params["att_fc_w"] + params["att_fc_b"])
        logits = sp.mean(axis=1) @ params["att_vec"][0]
        beta = jax.nn.softmax(logits)
        return jnp.einsum("p,pnd->nd", beta, embeds)

    def encode(x):
        return attention(jnp.stack([gcn(x, p) for p in range(P)], axis=0))

    z_mp = encode(apply_mask(h, mask1))
    z_mp2 = encode(h)
    x_recon = encode(apply_mask(z_mp, mask2))
    return z_mp, z_mp2, x_recon


if __name__ == "__main__":
    P = 3            # number of metapaths
    N = 16           # nodes
    D = 32           # hidden_dim
    mask_ratio1 = 0.5
    mask_ratio2 = 0.25

    root = jax.random.PRNGKey(0)
    kp, kh, kadj, km1, km2 = jax.random.split(root, 5)

    params = init_params(kp, P, D)

    h = jax.random.normal(kh, (N, D), dtype=jnp.float32)
    # dense row-normalized "adjacency" standing in for the sparse metapath adjacency mps[0]
    adj_raw = jax.random.uniform(kadj, (N, N), dtype=jnp.float32)
    adj = adj_raw / jnp.sum(adj_raw, axis=1, keepdims=True)

    mask1 = uniform_random_mask(km1, N, mask_ratio1)
    mask2 = uniform_random_mask(km2, N, mask_ratio2)

    # row_tile=64 at n_pad=128 exercises the multi-row-tile path (per-tile ssum partials)
    fwd = jax.jit(functools.partial(mp_encoder_forward, row_tile=64))
    z_mp, z_mp2, x_recon = fwd(params, h, adj, mask1, mask2)
    jax.block_until_ready((z_mp, z_mp2, x_recon))

    assert z_mp.shape == (N, D) and z_mp2.shape == (N, D) and x_recon.shape == (N, D)
    assert jnp.all(jnp.isfinite(z_mp)) and jnp.all(jnp.isfinite(z_mp2)) and jnp.all(jnp.isfinite(x_recon))

    # numerical check against the f32 reference (bf16 MXU inputs / bf16 embeds -> loose tolerance)
    rz, rz2, rx = ref_forward(params, h, adj, mask1, mask2)
    err = max(float(jnp.max(jnp.abs(z_mp - rz))),
              float(jnp.max(jnp.abs(z_mp2 - rz2))),
              float(jnp.max(jnp.abs(x_recon - rx))))
    assert err < 5e-2, f"max abs error vs reference too large: {err}"

    print("KERNEL_OK")
</pallas_src>

<mosaic_0001>
module attributes {stable_mosaic.version = 11 : i64} {
  func.func @gcn_attn_kernel(%arg0: i32, %arg1: i32, %arg2: memref<64x128xbf16, #tpu.memory_space<vmem>>, %arg3: memref<128x768xbf16, #tpu.memory_space<vmem>>, %arg4: memref<1x768xf32, #tpu.memory_space<vmem>>, %arg5: memref<1x768xf32, #tpu.memory_space<vmem>>, %arg6: memref<128x128xbf16, #tpu.memory_space<vmem>>, %arg7: memref<1x128xf32, #tpu.memory_space<vmem>>, %arg8: memref<64x768xbf16, #tpu.memory_space<vmem>>, %arg9: memref<1x1x768xf32, #tpu.memory_space<vmem>>, %arg10: memref<64x768xf32, #tpu.memory_space<vmem>>) attributes {dimension_semantics = [#tpu.dimension_semantics<parallel>, #tpu.dimension_semantics<arbitrary>], iteration_bounds = array<i64: 2, 1>, scalar_prefetch = 0 : i64, scratch_operands = 1 : i64, tpu.core_type = #tpu.core_type<tc>, window_params = [{transform_indices = @transform_0, window_bounds = array<i64: 64, 128>}, {transform_indices = @transform_1, window_bounds = array<i64: 128, 768>}, {pipeline_mode = #tpu.pipeline_mode<synchronous>, transform_indices = @transform_2, window_bounds = array<i64: 1, 768>}, {pipeline_mode = #tpu.pipeline_mode<synchronous>, transform_indices = @transform_3, window_bounds = array<i64: 1, 768>}, {pipeline_mode = #tpu.pipeline_mode<synchronous>, transform_indices = @transform_4, window_bounds = array<i64: 128, 128>}, {pipeline_mode = #tpu.pipeline_mode<synchronous>, transform_indices = @transform_5, window_bounds = array<i64: 1, 128>}, {transform_indices = @transform_6, window_bounds = array<i64: 64, 768>}, {transform_indices = @transform_7, window_bounds = array<i64: 1, 1, 768>}]} {
    %c0_i32 = arith.constant 0 : i32
    %0 = arith.cmpi eq, %arg1, %c0_i32 : i32
    %1 = arith.extui %0 : i1 to i32
    %c0_i32_0 = arith.constant 0 : i32
    %2 = arith.cmpi ne, %1, %c0_i32_0 : i32
    scf.if %2 {
      %cst_10 = arith.constant 0.000000e+00 : f32
      %12 = vector.broadcast %cst_10 : f32 to vector<64x768xf32>
      %c0_11 = arith.constant 0 : index
      %c0_12 = arith.constant 0 : index
      %13 = vector.load %arg10[%c0_11, %c0_12] : memref<64x768xf32, #tpu.memory_space<vmem>>, vector<64x768xf32>
      tpu.vector_store %arg10[%c0_11, %c0_12], %12 {strides = array<i32>} : memref<64x768xf32, #tpu.memory_space<vmem>>, vector<64x768xf32>,
    } else {
    }
    %c0 = arith.constant 0 : index
    %c0_1 = arith.constant 0 : index
    %3 = vector.load %arg10[%c0, %c0_1] : memref<64x768xf32, #tpu.memory_space<vmem>>, vector<64x768xf32>
    %c0_2 = arith.constant 0 : index
    %c0_3 = arith.constant 0 : index
    %4 = vector.load %arg2[%c0_2, %c0_3] : memref<64x128xbf16, #tpu.memory_space<vmem>>, vector<64x128xbf16>
    %c0_4 = arith.constant 0 : index
    %c0_5 = arith.constant 0 : index
    %5 = vector.load %arg3[%c0_4, %c0_5] : memref<128x768xbf16, #tpu.memory_space<vmem>>, vector<128x768xbf16>
    %cst = arith.constant dense<0.000000e+00> : vector<64x768xf32>
    %6 = tpu.matmul %4, %5, %cst {dimension_numbers = #tpu.dot_dimension_numbers<[1], [0], [0], [1], [0, 0, 1, 1], [], []>} : vector<64x128xbf16>, vector<128x768xbf16>, vector<64x768xf32> -> vector<64x768xf32>
    %7 = arith.addf %3, %6 : vector<64x768xf32>
    %c0_6 = arith.constant 0 : index
    %c0_7 = arith.constant 0 : index
    %8 = vector.load %arg10[%c0_6, %c0_7] : memref<64x768xf32, #tpu.memory_space<vmem>>, vector<64x768xf32>
    tpu.vector_store %arg10[%c0_6, %c0_7], %7 {strides = array<i32>} : memref<64x768xf32, #tpu.memory_space<vmem>>, vector<64x768xf32>,
    %c0_i32_8 = arith.constant 0 : i32
    %9 = arith.cmpi eq, %arg1, %c0_i32_8 : i32
    %10 = arith.extui %9 : i1 to i32
    %c0_i32_9 = arith.constant 0 : i32
    %11 = arith.cmpi ne, %10, %c0_i32_9 : i32
    scf.if %11 {
      %c0_10 = arith.constant 0 : index
      %c0_11 = arith.constant 0 : index
      %12 = vector.load %arg10[%c0_10, %c0_11] : memref<64x768xf32, #tpu.memory_space<vmem>>, vector<64x768xf32>
      %c0_12 = arith.constant 0 : index
      %c0_13 = arith.constant 0 : index
      %13 = vector.load %arg4[%c0_12, %c0_13] : memref<1x768xf32, #tpu.memory_space<vmem>>, vector<1x768xf32>
      %14 = vector.broadcast %13 : vector<1x768xf32> to vector<64x768xf32>
      %15 = arith.addf %12, %14 : vector<64x768xf32>
      %cst_14 = arith.constant 0.000000e+00 : f32
      %16 = vector.broadcast %cst_14 : f32 to vector<64x768xf32>
      %17 = arith.cmpf ogt, %15, %16 : vector<64x768xf32>
      %c0_15 = arith.constant 0 : index
      %c0_16 = arith.constant 0 : index
      %18 = vector.load %arg5[%c0_15, %c0_16] : memref<1x768xf32, #tpu.memory_space<vmem>>, vector<1x768xf32>
      %19 = vector.broadcast %18 : vector<1x768xf32> to vector<64x768xf32>
      %20 = arith.mulf %19, %15 : vector<64x768xf32>
      %21 = arith.select %17, %15, %20 : vector<64x768xi1>, vector<64x768xf32>
      %22 = arith.truncf %21 : vector<64x768xf32> to vector<64x768xbf16>
      %c0_17 = arith.constant 0 : index
      %c0_18 = arith.constant 0 : index
      %23 = vector.load %arg8[%c0_17, %c0_18] : memref<64x768xbf16, #tpu.memory_space<vmem>>, vector<64x768xbf16>
      tpu.vector_store %arg8[%c0_17, %c0_18], %22 {strides = array<i32>} : memref<64x768xbf16, #tpu.memory_space<vmem>>, vector<64x768xbf16>,
      %c64_i32 = arith.constant 64 : i32
      %24 = arith.muli %arg0, %c64_i32 : i32
      %25 = tpu.iota {dimensions = array<i32: 0>} : vector<64x128xi32>
      %26 = vector.broadcast %24 : i32 to vector<64x128xi32>
      %27 = arith.addi %26, %25 : vector<64x128xi32>
      %c16_i32 = arith.constant 16 : i32
      %28 = vector.broadcast %c16_i32 : i32 to vector<64x128xi32>
      %29 = arith.cmpi slt, %27, %28 : vector<64x128xi32>
      %30 = vector.extract_strided_slice %21 {offsets = [0, 0], sizes = [64, 128], strides = [1, 1]} : vector<64x768xf32> to vector<64x128xf32>
      %31 = arith.truncf %30 : vector<64x128xf32> to vector<64x128xbf16>
      %c0_19 = arith.constant 0 : index
      %c0_20 = arith.constant 0 : index
      %32 = vector.load %arg6[%c0_19, %c0_20] : memref<128x128xbf16, #tpu.memory_space<vmem>>, vector<128x128xbf16>
      %cst_21 = arith.constant dense<0.000000e+00> : vector<64x128xf32>
      %33 = tpu.matmul %31, %32, %cst_21 {dimension_numbers = #tpu.dot_dimension_numbers<[1], [0], [0], [1], [0, 0, 1, 1], [], []>} : vector<64x128xbf16>, vector<128x128xbf16>, vector<64x128xf32> -> vector<64x128xf32>
      %c0_22 = arith.constant 0 : index
      %c0_23 = arith.constant 0 : index
      %34 = vector.load %arg7[%c0_22, %c0_23] : memref<1x128xf32, #tpu.memory_space<vmem>>, vector<1x128xf32>
      %35 = vector.broadcast %34 : vector<1x128xf32> to vector<64x128xf32>
      %36 = arith.addf %33, %35 : vector<64x128xf32>
      %37 = math.tanh %36 : vector<64x128xf32>
      %cst_24 = arith.constant 0.000000e+00 : f32
      %38 = vector.broadcast %cst_24 : f32 to vector<64x128xf32>
      %39 = arith.select %29, %37, %38 : vector<64x128xi1>, vector<64x128xf32>
      %cst_25 = arith.constant dense<0.000000e+00> : vector<128xf32>
      %40 = vector.multi_reduction <add>, %39, %cst_25 [0] : vector<64x128xf32> to vector<128xf32>
      %41 = vector.shape_cast %40 : vector<128xf32> to vector<1x128xf32>
      %42 = vector.extract_strided_slice %21 {offsets = [0, 128], sizes = [64, 128], strides = [1, 1]} : vector<64x768xf32> to vector<64x128xf32>
      %43 = arith.truncf %42 : vector<64x128xf32> to vector<64x128xbf16>
      %c0_26 = arith.constant 0 : index
      %c0_27 = arith.constant 0 : index
      %44 = vector.load %arg6[%c0_26, %c0_27] : memref<128x128xbf16, #tpu.memory_space<vmem>>, vector<128x128xbf16>
      %cst_28 = arith.constant dense<0.000000e+00> : vector<64x128xf32>
      %45 = tpu.matmul %43, %44, %cst_28 {dimension_numbers = #tpu.dot_dimension_numbers<[1], [0], [0], [1], [0, 0, 1, 1], [], []>} : vector<64x128xbf16>, vector<128x128xbf16>, vector<64x128xf32> -> vector<64x128xf32>
      %c0_29 = arith.constant 0 : index
      %c0_30 = arith.constant 0 : index
      %46 = vector.load %arg7[%c0_29, %c0_30] : memref<1x128xf32, #tpu.memory_space<vmem>>, vector<1x128xf32>
      %47 = vector.broadcast %46 : vector<1x128xf32> to vector<64x128xf32>
      %48 = arith.addf %45, %47 : vector<64x128xf32>
      %49 = math.tanh %48 : vector<64x128xf32>
      %cst_31 = arith.constant 0.000000e+00 : f32
      %50 = vector.broadcast %cst_31 : f32 to vector<64x128xf32>
      %51 = arith.select %29, %49, %50 : vector<64x128xi1>, vector<64x128xf32>
      %cst_32 = arith.constant dense<0.000000e+00> : vector<128xf32>
      %52 = vector.multi_reduction <add>, %51, %cst_32 [0] : vector<64x128xf32> to vector<128xf32>
      %53 = vector.shape_cast %52 : vector<128xf32> to vector<1x128xf32>
      %54 = vector.extract_strided_slice %21 {offsets = [0, 256], sizes = [64, 128], strides = [1, 1]} : vector<64x768xf32> to vector<64x128xf32>
      %55 = arith.truncf %54 : vector<64x128xf32> to vector<64x128xbf16>
      %c0_33 = arith.constant 0 : index
      %c0_34 = arith.constant 0 : index
      %56 = vector.load %arg6[%c0_33, %c0_34] : memref<128x128xbf16, #tpu.memory_space<vmem>>, vector<128x128xbf16>
      %cst_35 = arith.constant dense<0.000000e+00> : vector<64x128xf32>
      %57 = tpu.matmul %55, %56, %cst_35 {dimension_numbers = #tpu.dot_dimension_numbers<[1], [0], [0], [1], [0, 0, 1, 1], [], []>} : vector<64x128xbf16>, vector<128x128xbf16>, vector<64x128xf32> -> vector<64x128xf32>
      %c0_36 = arith.constant 0 : index
      %c0_37 = arith.constant 0 : index
      %58 = vector.load %arg7[%c0_36, %c0_37] : memref<1x128xf32, #tpu.memory_space<vmem>>, vector<1x128xf32>
      %59 = vector.broadcast %58 : vector<1x128xf32> to vector<64x128xf32>
      %60 = arith.addf %57, %59 : vector<64x128xf32>
      %61 = math.tanh %60 : vector<64x128xf32>
      %cst_38 = arith.constant 0.000000e+00 : f32
      %62 = vector.broadcast %cst_38 : f32 to vector<64x128xf32>
      %63 = arith.select %29, %61, %62 : vector<64x128xi1>, vector<64x128xf32>
      %cst_39 = arith.constant dense<0.000000e+00> : vector<128xf32>
      %64 = vector.multi_reduction <add>, %63, %cst_39 [0] : vector<64x128xf32> to vector<128xf32>
      %65 = vector.shape_cast %64 : vector<128xf32> to vector<1x128xf32>
      %66 = vector.extract_strided_slice %21 {offsets = [0, 384], sizes = [64, 128], strides = [1, 1]} : vector<64x768xf32> to vector<64x128xf32>
      %67 = arith.truncf %66 : vector<64x128xf32> to vector<64x128xbf16>
      %c0_40 = arith.constant 0 : index
      %c0_41 = arith.constant 0 : index
      %68 = vector.load %arg6[%c0_40, %c0_41] : memref<128x128xbf16, #tpu.memory_space<vmem>>, vector<128x128xbf16>
      %cst_42 = arith.constant dense<0.000000e+00> : vector<64x128xf32>
      %69 = tpu.matmul %67, %68, %cst_42 {dimension_numbers = #tpu.dot_dimension_numbers<[1], [0], [0], [1], [0, 0, 1, 1], [], []>} : vector<64x128xbf16>, vector<128x128xbf16>, vector<64x128xf32> -> vector<64x128xf32>
      %c0_43 = arith.constant 0 : index
      %c0_44 = arith.constant 0 : index
      %70 = vector.load %arg7[%c0_43, %c0_44] : memref<1x128xf32, #tpu.memory_space<vmem>>, vector<1x128xf32>
      %71 = vector.broadcast %70 : vector<1x128xf32> to vector<64x128xf32>
      %72 = arith.addf %69, %71 : vector<64x128xf32>
      %73 = math.tanh %72 : vector<64x128xf32>
      %cst_45 = arith.constant 0.000000e+00 : f32
      %74 = vector.broadcast %cst_45 : f32 to vector<64x128xf32>
      %75 = arith.select %29, %73, %74 : vector<64x128xi1>, vector<64x128xf32>
      %cst_46 = arith.constant dense<0.000000e+00> : vector<128xf32>
      %76 = vector.multi_reduction <add>, %75, %cst_46 [0] : vector<64x128xf32> to vector<128xf32>
      %77 = vector.shape_cast %76 : vector<128xf32> to vector<1x128xf32>
      %78 = vector.extract_strided_slice %21 {offsets = [0, 512], sizes = [64, 128], strides = [1, 1]} : vector<64x768xf32> to vector<64x128xf32>
      %79 = arith.truncf %78 : vector<64x128xf32> to vector<64x128xbf16>
      %c0_47 = arith.constant 0 : index
      %c0_48 = arith.constant 0 : index
      %80 = vector.load %arg6[%c0_47, %c0_48] : memref<128x128xbf16, #tpu.memory_space<vmem>>, vector<128x128xbf16>
      %cst_49 = arith.constant dense<0.000000e+00> : vector<64x128xf32>
      %81 = tpu.matmul %79, %80, %cst_49 {dimension_numbers = #tpu.dot_dimension_numbers<[1], [0], [0], [1], [0, 0, 1, 1], [], []>} : vector<64x128xbf16>, vector<128x128xbf16>, vector<64x128xf32> -> vector<64x128xf32>
      %c0_50 = arith.constant 0 : index
      %c0_51 = arith.constant 0 : index
      %82 = vector.load %arg7[%c0_50, %c0_51] : memref<1x128xf32, #tpu.memory_space<vmem>>, vector<1x128xf32>
      %83 = vector.broadcast %82 : vector<1x128xf32> to vector<64x128xf32>
      %84 = arith.addf %81, %83 : vector<64x128xf32>
      %85 = math.tanh %84 : vector<64x128xf32>
      %cst_52 = arith.constant 0.000000e+00 : f32
      %86 = vector.broadcast %cst_52 : f32 to vector<64x128xf32>
      %87 = arith.select %29, %85, %86 : vector<64x128xi1>, vector<64x128xf32>
      %cst_53 = arith.constant dense<0.000000e+00> : vector<128xf32>
      %88 = vector.multi_reduction <add>, %87, %cst_53 [0] : vector<64x128xf32> to vector<128xf32>
      %89 = vector.shape_cast %88 : vector<128xf32> to vector<1x128xf32>
      %90 = vector.extract_strided_slice %21 {offsets = [0, 640], sizes = [64, 128], strides = [1, 1]} : vector<64x768xf32> to vector<64x128xf32>
      %91 = arith.truncf %90 : vector<64x128xf32> to vector<64x128xbf16>
      %c0_54 = arith.constant 0 : index
      %c0_55 = arith.constant 0 : index
      %92 = vector.load %arg6[%c0_54, %c0_55] : memref<128x128xbf16, #tpu.memory_space<vmem>>, vector<128x128xbf16>
      %cst_56 = arith.constant dense<0.000000e+00> : vector<64x128xf32>
      %93 = tpu.matmul %91, %92, %cst_56 {dimension_numbers = #tpu.dot_dimension_numbers<[1], [0], [0], [1], [0, 0, 1, 1], [], []>} : vector<64x128xbf16>, vector<128x128xbf16>, vector<64x128xf32> -> vector<64x128xf32>
      %c0_57 = arith.constant 0 : index
      %c0_58 = arith.constant 0 : index
      %94 = vector.load %arg7[%c0_57, %c0_58] : memref<1x128xf32, #tpu.memory_space<vmem>>, vector<1x128xf32>
      %95 = vector.broadcast %94 : vector<1x128xf32> to vector<64x128xf32>
      %96 = arith.addf %93, %95 : vector<64x128xf32>
      %97 = math.tanh %96 : vector<64x128xf32>
      %cst_59 = arith.constant 0.000000e+00 : f32
      %98 = vector.broadcast %cst_59 : f32 to vector<64x128xf32>
      %99 = arith.select %29, %97, %98 : vector<64x128xi1>, vector<64x128xf32>
      %cst_60 = arith.constant dense<0.000000e+00> : vector<128xf32>
      %100 = vector.multi_reduction <add>, %99, %cst_60 [0] : vector<64x128xf32> to vector<128xf32>
      %101 = vector.shape_cast %100 : vector<128xf32> to vector<1x128xf32>
      %102 = tpu.concatenate %41, %53, %65, %77, %89, %101 in 1 : vector<1x128xf32>, vector<1x128xf32>, vector<1x128xf32>, vector<1x128xf32>, vector<1x128xf32>, vector<1x128xf32> -> vector<1x768xf32>
      %103 = vector.shape_cast %102 : vector<1x768xf32> to vector<1x1x768xf32>
      %c0_61 = arith.constant 0 : index
      %c0_62 = arith.constant 0 : index
      %c0_63 = arith.constant 0 : index
      %104 = vector.load %arg9[%c0_61, %c0_62, %c0_63] : memref<1x1x768xf32, #tpu.memory_space<vmem>>, vector<1x1x768xf32>
      tpu.vector_store %arg9[%c0_61, %c0_62, %c0_63], %103 {strides = array<i32>} : memref<1x1x768xf32, #tpu.memory_space<vmem>>, vector<1x1x768xf32>,
    } else {
    }
    return
  }
  func.func @transform_0(%arg0: i32, %arg1: i32) -> (i32, i32) {
    %c0_i32 = arith.constant 0 : i32
    return %arg0, %arg1 : i32, i32
  }
  func.func @transform_1(%arg0: i32, %arg1: i32) -> (i32, i32) {
    %c0_i32 = arith.constant 0 : i32
    %c0_i32_0 = arith.constant 0 : i32
    return %arg1, %c0_i32 : i32, i32
  }
  func.func @transform_2(%arg0: i32, %arg1: i32) -> (i32, i32) {
    %c0_i32 = arith.constant 0 : i32
    %c0_i32_0 = arith.constant 0 : i32
    %c0_i32_1 = arith.constant 0 : i32
    return %c0_i32, %c0_i32_0 : i32, i32
  }
  func.func @transform_3(%arg0: i32, %arg1: i32) -> (i32, i32) {
    %c0_i32 = arith.constant 0 : i32
    %c0_i32_0 = arith.constant 0 : i32
    %c0_i32_1 = arith.constant 0 : i32
    return %c0_i32, %c0_i32_0 : i32, i32
  }
  func.func @transform_4(%arg0: i32, %arg1: i32) -> (i32, i32) {
    %c0_i32 = arith.constant 0 : i32
    %c0_i32_0 = arith.constant 0 : i32
    %c0_i32_1 = arith.constant 0 : i32
    return %c0_i32, %c0_i32_0 : i32, i32
  }
  func.func @transform_5(%arg0: i32, %arg1: i32) -> (i32, i32) {
    %c0_i32 = arith.constant 0 : i32
    %c0_i32_0 = arith.constant 0 : i32
    %c0_i32_1 = arith.constant 0 : i32
    return %c0_i32, %c0_i32_0 : i32, i32
  }
  func.func @transform_6(%arg0: i32, %arg1: i32) -> (i32, i32) {
    %c0_i32 = arith.constant 0 : i32
    %c0_i32_0 = arith.constant 0 : i32
    return %arg0, %c0_i32 : i32, i32
  }
  func.func @transform_7(%arg0: i32, %arg1: i32) -> (i32, i32, i32) {
    %c0_i32 = arith.constant 0 : i32
    %c0_i32_0 = arith.constant 0 : i32
    %c0_i32_1 = arith.constant 0 : i32
    return %arg0, %c0_i32, %c0_i32_0 : i32, i32, i32
  }
}

module attributes {stable_mosaic.version = 11 : i64} {
  func.func @fuse_kernel(%arg0: i32, %arg1: memref<64x768xbf16, #tpu.memory_space<vmem>>, %arg2: memref<1x768xf32, #tpu.memory_space<vmem>>, %arg3: memref<64x256xf32, #tpu.memory_space<vmem>>) attributes {dimension_semantics = [#tpu.dimension_semantics<parallel>], iteration_bounds = array<i64: 2>, scalar_prefetch = 0 : i64, scratch_operands = 0 : i64, tpu.core_type = #tpu.core_type<tc>, window_params = [{transform_indices = @transform_0, window_bounds = array<i64: 64, 768>}, {pipeline_mode = #tpu.pipeline_mode<synchronous>, transform_indices = @transform_1, window_bounds = array<i64: 1, 768>}, {transform_indices = @transform_2, window_bounds = array<i64: 64, 256>}]} {
    %c0 = arith.constant 0 : index
    %c0_0 = arith.constant 0 : index
    %0 = vector.load %arg1[%c0, %c0_0] : memref<64x768xbf16, #tpu.memory_space<vmem>>, vector<64x768xbf16>
    %1 = arith.extf %0 : vector<64x768xbf16> to vector<64x768xf32>
    %c0_1 = arith.constant 0 : index
    %c0_2 = arith.constant 0 : index
    %2 = vector.load %arg2[%c0_1, %c0_2] : memref<1x768xf32, #tpu.memory_space<vmem>>, vector<1x768xf32>
    %3 = vector.broadcast %2 : vector<1x768xf32> to vector<64x768xf32>
    %4 = arith.mulf %1, %3 : vector<64x768xf32>
    %5 = vector.extract_strided_slice %4 {offsets = [0, 0], sizes = [64, 128], strides = [1, 1]} : vector<64x768xf32> to vector<64x128xf32>
    %6 = vector.extract_strided_slice %4 {offsets = [0, 128], sizes = [64, 128], strides = [1, 1]} : vector<64x768xf32> to vector<64x128xf32>
    %7 = arith.addf %5, %6 : vector<64x128xf32>
    %8 = vector.extract_strided_slice %4 {offsets = [0, 256], sizes = [64, 128], strides = [1, 1]} : vector<64x768xf32> to vector<64x128xf32>
    %9 = arith.addf %7, %8 : vector<64x128xf32>
    %10 = vector.extract_strided_slice %4 {offsets = [0, 384], sizes = [64, 128], strides = [1, 1]} : vector<64x768xf32> to vector<64x128xf32>
    %11 = vector.extract_strided_slice %4 {offsets = [0, 512], sizes = [64, 128], strides = [1, 1]} : vector<64x768xf32> to vector<64x128xf32>
    %12 = arith.addf %10, %11 : vector<64x128xf32>
    %13 = vector.extract_strided_slice %4 {offsets = [0, 640], sizes = [64, 128], strides = [1, 1]} : vector<64x768xf32> to vector<64x128xf32>
    %14 = arith.addf %12, %13 : vector<64x128xf32>
    %15 = tpu.concatenate %9, %14 in 1 : vector<64x128xf32>, vector<64x128xf32> -> vector<64x256xf32>
    %c0_3 = arith.constant 0 : index
    %c0_4 = arith.constant 0 : index
    %16 = vector.load %arg3[%c0_3, %c0_4] : memref<64x256xf32, #tpu.memory_space<vmem>>, vector<64x256xf32>
    tpu.vector_store %arg3[%c0_3, %c0_4], %15 {strides = array<i32>} : memref<64x256xf32, #tpu.memory_space<vmem>>, vector<64x256xf32>,
    return
  }
  func.func @transform_0(%arg0: i32) -> (i32, i32) {
    %c0_i32 = arith.constant 0 : i32
    %c0_i32_0 = arith.constant 0 : i32
    return %arg0, %c0_i32 : i32, i32
  }
  func.func @transform_1(%arg0: i32) -> (i32, i32) {
    %c0_i32 = arith.constant 0 : i32
    %c0_i32_0 = arith.constant 0 : i32
    %c0_i32_1 = arith.constant 0 : i32
    return %c0_i32, %c0_i32_0 : i32, i32
  }
  func.func @transform_2(%arg0: i32) -> (i32, i32) {
    %c0_i32 = arith.constant 0 : i32
    %c0_i32_0 = arith.constant 0 : i32
    return %arg0, %c0_i32 : i32, i32
  }
}

module attributes {stable_mosaic.version = 11 : i64} {
  func.func @gcn_attn_kernel(%arg0: i32, %arg1: i32, %arg2: memref<64x128xbf16, #tpu.memory_space<vmem>>, %arg3: memref<128x384xbf16, #tpu.memory_space<vmem>>, %arg4: memref<1x384xf32, #tpu.memory_space<vmem>>, %arg5: memref<1x384xf32, #tpu.memory_space<vmem>>, %arg6: memref<128x128xbf16, #tpu.memory_space<vmem>>, %arg7: memref<1x128xf32, #tpu.memory_space<vmem>>, %arg8: memref<64x384xbf16, #tpu.memory_space<vmem>>, %arg9: memref<1x1x384xf32, #tpu.memory_space<vmem>>, %arg10: memref<64x384xf32, #tpu.memory_space<vmem>>) attributes {dimension_semantics = [#tpu.dimension_semantics<parallel>, #tpu.dimension_semantics<arbitrary>], iteration_bounds = array<i64: 2, 1>, scalar_prefetch = 0 : i64, scratch_operands = 1 : i64, tpu.core_type = #tpu.core_type<tc>, window_params = [{transform_indices = @transform_0, window_bounds = array<i64: 64, 128>}, {transform_indices = @transform_1, window_bounds = array<i64: 128, 384>}, {pipeline_mode = #tpu.pipeline_mode<synchronous>, transform_indices = @transform_2, window_bounds = array<i64: 1, 384>}, {pipeline_mode = #tpu.pipeline_mode<synchronous>, transform_indices = @transform_3, window_bounds = array<i64: 1, 384>}, {pipeline_mode = #tpu.pipeline_mode<synchronous>, transform_indices = @transform_4, window_bounds = array<i64: 128, 128>}, {pipeline_mode = #tpu.pipeline_mode<synchronous>, transform_indices = @transform_5, window_bounds = array<i64: 1, 128>}, {transform_indices = @transform_6, window_bounds = array<i64: 64, 384>}, {transform_indices = @transform_7, window_bounds = array<i64: 1, 1, 384>}]} {
    %c0_i32 = arith.constant 0 : i32
    %0 = arith.cmpi eq, %arg1, %c0_i32 : i32
    %1 = arith.extui %0 : i1 to i32
    %c0_i32_0 = arith.constant 0 : i32
    %2 = arith.cmpi ne, %1, %c0_i32_0 : i32
    scf.if %2 {
      %cst_10 = arith.constant 0.000000e+00 : f32
      %12 = vector.broadcast %cst_10 : f32 to vector<64x384xf32>
      %c0_11 = arith.constant 0 : index
      %c0_12 = arith.constant 0 : index
      %13 = vector.load %arg10[%c0_11, %c0_12] : memref<64x384xf32, #tpu.memory_space<vmem>>, vector<64x384xf32>
      tpu.vector_store %arg10[%c0_11, %c0_12], %12 {strides = array<i32>} : memref<64x384xf32, #tpu.memory_space<vmem>>, vector<64x384xf32>,
    } else {
    }
    %c0 = arith.constant 0 : index
    %c0_1 = arith.constant 0 : index
    %3 = vector.load %arg10[%c0, %c0_1] : memref<64x384xf32, #tpu.memory_space<vmem>>, vector<64x384xf32>
    %c0_2 = arith.constant 0 : index
    %c0_3 = arith.constant 0 : index
    %4 = vector.load %arg2[%c0_2, %c0_3] : memref<64x128xbf16, #tpu.memory_space<vmem>>, vector<64x128xbf16>
    %c0_4 = arith.constant 0 : index
    %c0_5 = arith.constant 0 : index
    %5 = vector.load %arg3[%c0_4, %c0_5] : memref<128x384xbf16, #tpu.memory_space<vmem>>, vector<128x384xbf16>
    %cst = arith.constant dense<0.000000e+00> : vector<64x384xf32>
    %6 = tpu.matmul %4, %5, %cst {dimension_numbers = #tpu.dot_dimension_numbers<[1], [0], [0], [1], [0, 0, 1, 1], [], []>} : vector<64x128xbf16>, vector<128x384xbf16>, vector<64x384xf32> -> vector<64x384xf32>
    %7 = arith.addf %3, %6 : vector<64x384xf32>
    %c0_6 = arith.constant 0 : index
    %c0_7 = arith.constant 0 : index
    %8 = vector.load %arg10[%c0_6, %c0_7] : memref<64x384xf32, #tpu.memory_space<vmem>>, vector<64x384xf32>
    tpu.vector_store %arg10[%c0_6, %c0_7], %7 {strides = array<i32>} : memref<64x384xf32, #tpu.memory_space<vmem>>, vector<64x384xf32>,
    %c0_i32_8 = arith.constant 0 : i32
    %9 = arith.cmpi eq, %arg1, %c0_i32_8 : i32
    %10 = arith.extui %9 : i1 to i32
    %c0_i32_9 = arith.constant 0 : i32
    %11 = arith.cmpi ne, %10, %c0_i32_9 : i32
    scf.if %11 {
      %c0_10 = arith.constant 0 : index
      %c0_11 = arith.constant 0 : index
      %12 = vector.load %arg10[%c0_10, %c0_11] : memref<64x384xf32, #tpu.memory_space<vmem>>, vector<64x384xf32>
      %c0_12 = arith.constant 0 : index
      %c0_13 = arith.constant 0 : index
      %13 = vector.load %arg4[%c0_12, %c0_13] : memref<1x384xf32, #tpu.memory_space<vmem>>, vector<1x384xf32>
      %14 = vector.broadcast %13 : vector<1x384xf32> to vector<64x384xf32>
      %15 = arith.addf %12, %14 : vector<64x384xf32>
      %cst_14 = arith.constant 0.000000e+00 : f32
      %16 = vector.broadcast %cst_14 : f32 to vector<64x384xf32>
      %17 = arith.cmpf ogt, %15, %16 : vector<64x384xf32>
      %c0_15 = arith.constant 0 : index
      %c0_16 = arith.constant 0 : index
      %18 = vector.load %arg5[%c0_15, %c0_16] : memref<1x384xf32, #tpu.memory_space<vmem>>, vector<1x384xf32>
      %19 = vector.broadcast %18 : vector<1x384xf32> to vector<64x384xf32>
      %20 = arith.mulf %19, %15 : vector<64x384xf32>
      %21 = arith.select %17, %15, %20 : vector<64x384xi1>, vector<64x384xf32>
      %22 = arith.truncf %21 : vector<64x384xf32> to vector<64x384xbf16>
      %c0_17 = arith.constant 0 : index
      %c0_18 = arith.constant 0 : index
      %23 = vector.load %arg8[%c0_17, %c0_18] : memref<64x384xbf16, #tpu.memory_space<vmem>>, vector<64x384xbf16>
      tpu.vector_store %arg8[%c0_17, %c0_18], %22 {strides = array<i32>} : memref<64x384xbf16, #tpu.memory_space<vmem>>, vector<64x384xbf16>,
      %c64_i32 = arith.constant 64 : i32
      %24 = arith.muli %arg0, %c64_i32 : i32
      %25 = tpu.iota {dimensions = array<i32: 0>} : vector<64x128xi32>
      %26 = vector.broadcast %24 : i32 to vector<64x128xi32>
      %27 = arith.addi %26, %25 : vector<64x128xi32>
      %c16_i32 = arith.constant 16 : i32
      %28 = vector.broadcast %c16_i32 : i32 to vector<64x128xi32>
      %29 = arith.cmpi slt, %27, %28 : vector<64x128xi32>
      %30 = vector.extract_strided_slice %21 {offsets = [0, 0], sizes = [64, 128], strides = [1, 1]} : vector<64x384xf32> to vector<64x128xf32>
      %31 = arith.truncf %30 : vector<64x128xf32> to vector<64x128xbf16>
      %c0_19 = arith.constant 0 : index
      %c0_20 = arith.constant 0 : index
      %32 = vector.load %arg6[%c0_19, %c0_20] : memref<128x128xbf16, #tpu.memory_space<vmem>>, vector<128x128xbf16>
      %cst_21 = arith.constant dense<0.000000e+00> : vector<64x128xf32>
      %33 = tpu.matmul %31, %32, %cst_21 {dimension_numbers = #tpu.dot_dimension_numbers<[1], [0], [0], [1], [0, 0, 1, 1], [], []>} : vector<64x128xbf16>, vector<128x128xbf16>, vector<64x128xf32> -> vector<64x128xf32>
      %c0_22 = arith.constant 0 : index
      %c0_23 = arith.constant 0 : index
      %34 = vector.load %arg7[%c0_22, %c0_23] : memref<1x128xf32, #tpu.memory_space<vmem>>, vector<1x128xf32>
      %35 = vector.broadcast %34 : vector<1x128xf32> to vector<64x128xf32>
      %36 = arith.addf %33, %35 : vector<64x128xf32>
      %37 = math.tanh %36 : vector<64x128xf32>
      %cst_24 = arith.constant 0.000000e+00 : f32
      %38 = vector.broadcast %cst_24 : f32 to vector<64x128xf32>
      %39 = arith.select %29, %37, %38 : vector<64x128xi1>, vector<64x128xf32>
      %cst_25 = arith.constant dense<0.000000e+00> : vector<128xf32>
      %40 = vector.multi_reduction <add>, %39, %cst_25 [0] : vector<64x128xf32> to vector<128xf32>
      %41 = vector.shape_cast %40 : vector<128xf32> to vector<1x128xf32>
      %42 = vector.extract_strided_slice %21 {offsets = [0, 128], sizes = [64, 128], strides = [1, 1]} : vector<64x384xf32> to vector<64x128xf32>
      %43 = arith.truncf %42 : vector<64x128xf32> to vector<64x128xbf16>
      %c0_26 = arith.constant 0 : index
      %c0_27 = arith.constant 0 : index
      %44 = vector.load %arg6[%c0_26, %c0_27] : memref<128x128xbf16, #tpu.memory_space<vmem>>, vector<128x128xbf16>
      %cst_28 = arith.constant dense<0.000000e+00> : vector<64x128xf32>
      %45 = tpu.matmul %43, %44, %cst_28 {dimension_numbers = #tpu.dot_dimension_numbers<[1], [0], [0], [1], [0, 0, 1, 1], [], []>} : vector<64x128xbf16>, vector<128x128xbf16>, vector<64x128xf32> -> vector<64x128xf32>
      %c0_29 = arith.constant 0 : index
      %c0_30 = arith.constant 0 : index
      %46 = vector.load %arg7[%c0_29, %c0_30] : memref<1x128xf32, #tpu.memory_space<vmem>>, vector<1x128xf32>
      %47 = vector.broadcast %46 : vector<1x128xf32> to vector<64x128xf32>
      %48 = arith.addf %45, %47 : vector<64x128xf32>
      %49 = math.tanh %48 : vector<64x128xf32>
      %cst_31 = arith.constant 0.000000e+00 : f32
      %50 = vector.broadcast %cst_31 : f32 to vector<64x128xf32>
      %51 = arith.select %29, %49, %50 : vector<64x128xi1>, vector<64x128xf32>
      %cst_32 = arith.constant dense<0.000000e+00> : vector<128xf32>
      %52 = vector.multi_reduction <add>, %51, %cst_32 [0] : vector<64x128xf32> to vector<128xf32>
      %53 = vector.shape_cast %52 : vector<128xf32> to vector<1x128xf32>
      %54 = vector.extract_strided_slice %21 {offsets = [0, 256], sizes = [64, 128], strides = [1, 1]} : vector<64x384xf32> to vector<64x128xf32>
      %55 = arith.truncf %54 : vector<64x128xf32> to vector<64x128xbf16>
      %c0_33 = arith.constant 0 : index
      %c0_34 = arith.constant 0 : index
      %56 = vector.load %arg6[%c0_33, %c0_34] : memref<128x128xbf16, #tpu.memory_space<vmem>>, vector<128x128xbf16>
      %cst_35 = arith.constant dense<0.000000e+00> : vector<64x128xf32>
      %57 = tpu.matmul %55, %56, %cst_35 {dimension_numbers = #tpu.dot_dimension_numbers<[1], [0], [0], [1], [0, 0, 1, 1], [], []>} : vector<64x128xbf16>, vector<128x128xbf16>, vector<64x128xf32> -> vector<64x128xf32>
      %c0_36 = arith.constant 0 : index
      %c0_37 = arith.constant 0 : index
      %58 = vector.load %arg7[%c0_36, %c0_37] : memref<1x128xf32, #tpu.memory_space<vmem>>, vector<1x128xf32>
      %59 = vector.broadcast %58 : vector<1x128xf32> to vector<64x128xf32>
      %60 = arith.addf %57, %59 : vector<64x128xf32>
      %61 = math.tanh %60 : vector<64x128xf32>
      %cst_38 = arith.constant 0.000000e+00 : f32
      %62 = vector.broadcast %cst_38 : f32 to vector<64x128xf32>
      %63 = arith.select %29, %61, %62 : vector<64x128xi1>, vector<64x128xf32>
      %cst_39 = arith.constant dense<0.000000e+00> : vector<128xf32>
      %64 = vector.multi_reduction <add>, %63, %cst_39 [0] : vector<64x128xf32> to vector<128xf32>
      %65 = vector.shape_cast %64 : vector<128xf32> to vector<1x128xf32>
      %66 = tpu.concatenate %41, %53, %65 in 1 : vector<1x128xf32>, vector<1x128xf32>, vector<1x128xf32> -> vector<1x384xf32>
      %67 = vector.shape_cast %66 : vector<1x384xf32> to vector<1x1x384xf32>
      %c0_40 = arith.constant 0 : index
      %c0_41 = arith.constant 0 : index
      %c0_42 = arith.constant 0 : index
      %68 = vector.load %arg9[%c0_40, %c0_41, %c0_42] : memref<1x1x384xf32, #tpu.memory_space<vmem>>, vector<1x1x384xf32>
      tpu.vector_store %arg9[%c0_40, %c0_41, %c0_42], %67 {strides = array<i32>} : memref<1x1x384xf32, #tpu.memory_space<vmem>>, vector<1x1x384xf32>,
    } else {
    }
    return
  }
  func.func @transform_0(%arg0: i32, %arg1: i32) -> (i32, i32) {
    %c0_i32 = arith.constant 0 : i32
    return %arg0, %arg1 : i32, i32
  }
  func.func @transform_1(%arg0: i32, %arg1: i32) -> (i32, i32) {
    %c0_i32 = arith.constant 0 : i32
    %c0_i32_0 = arith.constant 0 : i32
    return %arg1, %c0_i32 : i32, i32
  }
  func.func @transform_2(%arg0: i32, %arg1: i32) -> (i32, i32) {
    %c0_i32 = arith.constant 0 : i32
    %c0_i32_0 = arith.constant 0 : i32
    %c0_i32_1 = arith.constant 0 : i32
    return %c0_i32, %c0_i32_0 : i32, i32
  }
  func.func @transform_3(%arg0: i32, %arg1: i32) -> (i32, i32) {
    %c0_i32 = arith.constant 0 : i32
    %c0_i32_0 = arith.constant 0 : i32
    %c0_i32_1 = arith.constant 0 : i32
    return %c0_i32, %c0_i32_0 : i32, i32
  }
  func.func @transform_4(%arg0: i32, %arg1: i32) -> (i32, i32) {
    %c0_i32 = arith.constant 0 : i32
    %c0_i32_0 = arith.constant 0 : i32
    %c0_i32_1 = arith.constant 0 : i32
    return %c0_i32, %c0_i32_0 : i32, i32
  }
  func.func @transform_5(%arg0: i32, %arg1: i32) -> (i32, i32) {
    %c0_i32 = arith.constant 0 : i32
    %c0_i32_0 = arith.constant 0 : i32
    %c0_i32_1 = arith.constant 0 : i32
    return %c0_i32, %c0_i32_0 : i32, i32
  }
  func.func @transform_6(%arg0: i32, %arg1: i32) -> (i32, i32) {
    %c0_i32 = arith.constant 0 : i32
    %c0_i32_0 = arith.constant 0 : i32
    return %arg0, %c0_i32 : i32, i32
  }
  func.func @transform_7(%arg0: i32, %arg1: i32) -> (i32, i32, i32) {
    %c0_i32 = arith.constant 0 : i32
    %c0_i32_0 = arith.constant 0 : i32
    %c0_i32_1 = arith.constant 0 : i32
    return %arg0, %c0_i32, %c0_i32_0 : i32, i32, i32
  }
}

module attributes {stable_mosaic.version = 11 : i64} {
  func.func @fuse_kernel(%arg0: i32, %arg1: memref<64x384xbf16, #tpu.memory_space<vmem>>, %arg2: memref<1x384xf32, #tpu.memory_space<vmem>>, %arg3: memref<64x128xf32, #tpu.memory_space<vmem>>) attributes {dimension_semantics = [#tpu.dimension_semantics<parallel>], iteration_bounds = array<i64: 2>, scalar_prefetch = 0 : i64, scratch_operands = 0 : i64, tpu.core_type = #tpu.core_type<tc>, window_params = [{transform_indices = @transform_0, window_bounds = array<i64: 64, 384>}, {pipeline_mode = #tpu.pipeline_mode<synchronous>, transform_indices = @transform_1, window_bounds = array<i64: 1, 384>}, {transform_indices = @transform_2, window_bounds = array<i64: 64, 128>}]} {
    %c0 = arith.constant 0 : index
    %c0_0 = arith.constant 0 : index
    %0 = vector.load %arg1[%c0, %c0_0] : memref<64x384xbf16, #tpu.memory_space<vmem>>, vector<64x384xbf16>
    %1 = arith.extf %0 : vector<64x384xbf16> to vector<64x384xf32>
    %c0_1 = arith.constant 0 : index
    %c0_2 = arith.constant 0 : index
    %2 = vector.load %arg2[%c0_1, %c0_2] : memref<1x384xf32, #tpu.memory_space<vmem>>, vector<1x384xf32>
    %3 = vector.broadcast %2 : vector<1x384xf32> to vector<64x384xf32>
    %4 = arith.mulf %1, %3 : vector<64x384xf32>
    %5 = vector.extract_strided_slice %4 {offsets = [0, 0], sizes = [64, 128], strides = [1, 1]} : vector<64x384xf32> to vector<64x128xf32>
    %6 = vector.extract_strided_slice %4 {offsets = [0, 128], sizes = [64, 128], strides = [1, 1]} : vector<64x384xf32> to vector<64x128xf32>
    %7 = arith.addf %5, %6 : vector<64x128xf32>
    %8 = vector.extract_strided_slice %4 {offsets = [0, 256], sizes = [64, 128], strides = [1, 1]} : vector<64x384xf32> to vector<64x128xf32>
    %9 = arith.addf %7, %8 : vector<64x128xf32>
    %c0_3 = arith.constant 0 : index
    %c0_4 = arith.constant 0 : index
    %10 = vector.load %arg3[%c0_3, %c0_4] : memref<64x128xf32, #tpu.memory_space<vmem>>, vector<64x128xf32>
    tpu.vector_store %arg3[%c0_3, %c0_4], %9 {strides = array<i32>} : memref<64x128xf32, #tpu.memory_space<vmem>>, vector<64x128xf32>,
    return
  }
  func.func @transform_0(%arg0: i32) -> (i32, i32) {
    %c0_i32 = arith.constant 0 : i32
    %c0_i32_0 = arith.constant 0 : i32
    return %arg0, %c0_i32 : i32, i32
  }
  func.func @transform_1(%arg0: i32) -> (i32, i32) {
    %c0_i32 = arith.constant 0 : i32
    %c0_i32_0 = arith.constant 0 : i32
    %c0_i32_1 = arith.constant 0 : i32
    return %c0_i32, %c0_i32_0 : i32, i32
  }
  func.func @transform_2(%arg0: i32) -> (i32, i32) {
    %c0_i32 = arith.constant 0 : i32
    %c0_i32_0 = arith.constant 0 : i32
    return %arg0, %c0_i32 : i32, i32
  }
}

</mosaic_0001>

<llo_original>
// kernel: mp_encoder_forward.5
$region0: #{mp_encoder_forward.5}
  #allocation0 [shape = 'u32[]', space=smem, size = 0x4, offset = 0x4, fixed_abs, tag = 'smem constant byte address 0x4 - core index']
  #allocation1 [shape = 'u32[72,128]{1,0:T(1,128)}', space=vmem, size = 0x9000, scoped, tag = 'internal scratch']
  %s0 = inlined_call_operand.vmem [shape: bf16[128,768], index: 0, kind: input, shape index: {}]
  %s1 = inlined_call_operand.vmem [shape: f32[1,768], index: 1, kind: input, shape index: {}]
  %s2 = inlined_call_operand.vmem [shape: f32[128,256], index: 2, kind: output, shape index: {}]
  %s3 = sld [smem:[#allocation0]]
  $region41: #{mp_encoder_forward.5} parent=0
    _
  %s5 = ssub.s32 1, %s3
  %s6 = scalar_select 0, %s5, %s3
  loop: start=0, step=1, limit=4
  $region2: #{mp_encoder_forward.5} parent=0 // loop_pre_header
    _
  $region3: #{mp_encoder_forward.5} parent=0 // loop_header
    %s8 = sphi 0, %s12
    %p9 = scmp.ge.s32.totalorder %s8, 4
    %s18 = sphi 0, %s20
    %s21 = sphi 0, %s18
    %s22 = sphi 0, %s21
    %s38 = sphi 0, %s22
    %s42 = sphi 0, %s42
    %s44 = sphi 0, %s42
    %s45 = sphi 0, %s44
    %s59 = sphi 0, %s45
    %s65 = sphi 0, %s67
    %s68 = sphi 0, %s65
    %s69 = sphi 0, %s68
    %s85 = sphi 0, %s69
  $region4: #{mp_encoder_forward.5} parent=0 // loop_header_branch
    %11 = sbr.rel (%p9) target = $region8
  $region5: #{mp_encoder_forward.5} parent=0 // loop_body
    %s13 = ssub.s32 %s8, 1
    %s14 = ssub.s32 %s8, 2
    %s15 = sadd.s32 %s8, 1
    %s16 = ssub.s32 %s8, %s15
    %p17 = scmp.eq.s32.totalorder %s16, 0
    %s19 = sadd.s32 %s18, 1
    %s20 = scalar_select %p17, %s18, %s19
    %p23 = pneg %p17
    %p24 = scmp.eq.s32.totalorder %s8, 1
    %p25 = por %p23, %p24
    %p26 = scmp.ne.s32.totalorder %s18, %s21
    %p27 = scmp.eq.s32.totalorder %s8, 0
    %p28 = por %p26, %p27
    %p29 = scmp.ne.s32.totalorder %s18, %s21
    %p30 = scmp.eq.s32.totalorder %s13, 1
    %p31 = por %p29, %p30
    %p32 = scmp.ne.s32.totalorder %s21, %s22
    %p33 = scmp.eq.s32.totalorder %s13, 0
    %p34 = por %p32, %p33
    %p35 = scmp.ne.s32.totalorder %s21, %s22
    %p36 = scmp.eq.s32.totalorder %s14, 1
    %p37 = por %p35, %p36
    %p39 = scmp.ne.s32.totalorder %s22, %s38
    %p40 = scmp.eq.s32.totalorder %s14, 0
    %p41 = por %p39, %p40
    %s43 = sadd.s32 %s42, 1
    %p46 = scmp.eq.s32.totalorder %s8, 1
    %p47 = scmp.ne.s32.totalorder %s42, %s44
    %p48 = scmp.eq.s32.totalorder %s8, 0
    %p49 = por %p47, %p48
    %p50 = scmp.ne.s32.totalorder %s42, %s44
    %p51 = scmp.eq.s32.totalorder %s13, 1
    %p52 = por %p50, %p51
    %p53 = scmp.ne.s32.totalorder %s44, %s45
    %p54 = scmp.eq.s32.totalorder %s13, 0
    %p55 = por %p53, %p54
    %p56 = scmp.ne.s32.totalorder %s44, %s45
    %p57 = scmp.eq.s32.totalorder %s14, 1
    %p58 = por %p56, %p57
    %p60 = scmp.ne.s32.totalorder %s45, %s59
    %p61 = scmp.eq.s32.totalorder %s14, 0
    %p62 = por %p60, %p61
    %s63 = ssub.s32 %s8, %s15
    %p64 = scmp.eq.s32.totalorder %s63, 0
    %s66 = sadd.s32 %s65, 1
    %s67 = scalar_select %p64, %s65, %s66
    %p70 = pneg %p64
    %p71 = scmp.eq.s32.totalorder %s8, 1
    %p72 = por %p70, %p71
    %p73 = scmp.ne.s32.totalorder %s65, %s68
    %p74 = scmp.eq.s32.totalorder %s8, 0
    %p75 = por %p73, %p74
    %p76 = scmp.ne.s32.totalorder %s65, %s68
    %p77 = scmp.eq.s32.totalorder %s13, 1
    %p78 = por %p76, %p77
    %p79 = scmp.ne.s32.totalorder %s68, %s69
    %p80 = scmp.eq.s32.totalorder %s13, 0
    %p81 = por %p79, %p80
    %p82 = scmp.ne.s32.totalorder %s68, %s69
    %p83 = scmp.eq.s32.totalorder %s14, 1
    %p84 = por %p82, %p83
    %p86 = scmp.ne.s32.totalorder %s69, %s85
    %p87 = scmp.eq.s32.totalorder %s14, 0
    %p88 = por %p86, %p87
    %p89 = scmp.le.s32.totalorder 1, %s8
    %p90 = scmp.lt.s32.totalorder %s8, 3
    %p91 = pnand %p89, %p90
    %p92 = pneg %p91
    // Predicated region
    $region9: #{mp_encoder_forward.5} parent=5 // pred_check
      _
    $region10: #{mp_encoder_forward.5} parent=5 // pred_check_branch
      %94 = sbr.rel (%p91) target = $region12
    $region11: #{mp_encoder_forward.5} parent=5 // pred_region
      %s95 = ssub.s32 %s8, 1
      // Predicated region
      $region13: #{mp_encoder_forward.5} parent=11 // pred_check
        %p96 = pneg %p55
      $region14: #{mp_encoder_forward.5} parent=11 // pred_check_branch
        %98 = sbr.rel (%p96) target = $region16
      $region15: #{mp_encoder_forward.5} parent=11 // pred_region
        _
      $region16: #{mp_encoder_forward.5} parent=11 // pred_fallthru
        _
    $region12: #{mp_encoder_forward.5} parent=5 // pred_fallthru
      _
    %p99 = scmp.lt.s32.totalorder %s8, 2
    // Predicated region
    $region17: #{mp_encoder_forward.5} parent=5 // pred_check
      %p100 = pneg %p99
    $region18: #{mp_encoder_forward.5} parent=5 // pred_check_branch
      %102 = sbr.rel (%p100) target = $region20
    $region19: #{mp_encoder_forward.5} parent=5 // pred_region
      // Predicated region
      $region21: #{mp_encoder_forward.5} parent=19 // pred_check
        %p103 = pneg %p28
      $region22: #{mp_encoder_forward.5} parent=19 // pred_check_branch
        %105 = sbr.rel (%p103) target = $region24
      $region23: #{mp_encoder_forward.5} parent=19 // pred_region
        %s106 = smul.u32 8, %s8
        %p107 = scmp.lt.s32.totalorder %s106, 15
        %s108 = scalar_select %p107, %s106, 15
        %s109 = smul.addr %s108, 6
        %s110 = smul.addr %s109, 4
        %s111 = scalar_lea.vmem %s0, %s110
        %s112 = smul.u32 8, %s8
      $region24: #{mp_encoder_forward.5} parent=19 // pred_fallthru
        _
    $region20: #{mp_encoder_forward.5} parent=5 // pred_fallthru
      _
    %p113 = scmp.le.s32.totalorder 1, %s8
    %p114 = scmp.lt.s32.totalorder %s8, 3
    %p115 = pnand %p113, %p114
    %p116 = pneg %p115
    // Predicated region
    $region25: #{mp_encoder_forward.5} parent=5 // pred_check
      _
    $region26: #{mp_encoder_forward.5} parent=5 // pred_check_branch
      %118 = sbr.rel (%p115) target = $region28
    $region27: #{mp_encoder_forward.5} parent=5 // pred_region
      %s119 = ssub.s32 %s8, 1
      %s120 = smul.u32 8, %s13
      %p121 = scmp.lt.s32.totalorder %s120, 15
      %s122 = scalar_select %p121, %s120, 15
      %s123 = smul.addr %s122, 6
      %s124 = smul.addr %s123, 4
      %s125 = scalar_lea.vmem %s0, %s124
      %p126 = pneg %p34
      %p127 = pneg %p31
      %p128 = pneg %p55
      %p129 = pneg %p52
      %p130 = pneg %p81
      %p131 = pneg %p78
      %s132 = smul.u32 8, %s13
      %p133 = scmp.lt.s32.totalorder %s132, 15
      %s134 = scalar_select %p133, %s132, 15
      %s135 = smul.addr %s134, 2
      %s136 = smul.addr %s135, 8
      %s137 = scalar_lea.vmem %s2, %s136
      %s138 = smul.u32 8, %s13
      %p139 = scmp.lt.s32.totalorder %s138, 15
      %s140 = scalar_select %p139, %s138, 15
      %s141 = smul.addr %s140, 6
      %s142 = smul.addr %s141, 4
      %s143 = scalar_lea.vmem %s0, %s142
      %s144 = smul.u32 8, %s13
      %s145 = smul.u32 8, %s13
      %p146 = scmp.lt.s32.totalorder %s145, 15
      %s147 = scalar_select %p146, %s145, 15
      %s148 = smul.addr %s147, 2
      %s149 = smul.addr %s148, 8
      %s150 = scalar_lea.vmem %s2, %s149
      %s151 = smul.u32 8, %s13
      %v152 = vld [vmem:[%s143] sm:$0xff]
      %v153 = vld [vmem:[%s143 + $0x8] sm:$0xff]
      %v154 = vld [vmem:[%s143 + $0x10] sm:$0xff]
      %v155 = vld [vmem:[%s143 + $0x18] sm:$0xff]
      %v156 = vld [vmem:[%s143 + $0x20] sm:$0xff]
      %v157 = vld [vmem:[%s143 + $0x28] sm:$0xff]
      %v158 = vld [vmem:[%s143 + $0x30] sm:$0xff]
      %v159 = vld [vmem:[%s143 + $0x38] sm:$0xff]
      %v160 = vld [vmem:[%s143 + $0x40] sm:$0xff]
      %v161 = vld [vmem:[%s143 + $0x48] sm:$0xff]
      %v162 = vld [vmem:[%s143 + $0x50] sm:$0xff]
      %v163 = vld [vmem:[%s143 + $0x58] sm:$0xff]
      %v164 = vld [vmem:[%s143 + $0x60] sm:$0xff]
      %v165 = vld [vmem:[%s143 + $0x68] sm:$0xff]
      %v166 = vld [vmem:[%s143 + $0x70] sm:$0xff]
      %v167 = vld [vmem:[%s143 + $0x78] sm:$0xff]
      %v168 = vld [vmem:[%s143 + $0x80] sm:$0xff]
      %v169 = vld [vmem:[%s143 + $0x88] sm:$0xff]
      %v170 = vld [vmem:[%s143 + $0x90] sm:$0xff]
      %v171 = vld [vmem:[%s143 + $0x98] sm:$0xff]
      %v172 = vld [vmem:[%s143 + $0xa0] sm:$0xff]
      %v173 = vld [vmem:[%s143 + $0xa8] sm:$0xff]
      %v174 = vld [vmem:[%s143 + $0xb0] sm:$0xff]
      %v175 = vld [vmem:[%s143 + $0xb8] sm:$0xff]
      %v176 = vunpack.c.l.bf16 %v152
      %v177 = vunpack.c.h.bf16 %v152
      %v178 = vunpack.c.l.bf16 %v153
      %v179 = vunpack.c.h.bf16 %v153
      %v180 = vunpack.c.l.bf16 %v154
      %v181 = vunpack.c.h.bf16 %v154
      %v182 = vunpack.c.l.bf16 %v155
      %v183 = vunpack.c.h.bf16 %v155
      %v184 = vunpack.c.l.bf16 %v156
      %v185 = vunpack.c.h.bf16 %v156
      %v186 = vunpack.c.l.bf16 %v157
      %v187 = vunpack.c.h.bf16 %v157
      %v188 = vunpack.c.l.bf16 %v158
      %v189 = vunpack.c.h.bf16 %v158
      %v190 = vunpack.c.l.bf16 %v159
      %v191 = vunpack.c.h.bf16 %v159
      %v192 = vunpack.c.l.bf16 %v160
      %v193 = vunpack.c.h.bf16 %v160
      %v194 = vunpack.c.l.bf16 %v161
      %v195 = vunpack.c.h.bf16 %v161
      %v196 = vunpack.c.l.bf16 %v162
      %v197 = vunpack.c.h.bf16 %v162
      %v198 = vunpack.c.l.bf16 %v163
      %v199 = vunpack.c.h.bf16 %v163
      %v200 = vunpack.c.l.bf16 %v164
      %v201 = vunpack.c.h.bf16 %v164
      %v202 = vunpack.c.l.bf16 %v165
      %v203 = vunpack.c.h.bf16 %v165
      %v204 = vunpack.c.l.bf16 %v166
      %v205 = vunpack.c.h.bf16 %v166
      %v206 = vunpack.c.l.bf16 %v167
      %v207 = vunpack.c.h.bf16 %v167
      %v208 = vunpack.c.l.bf16 %v168
      %v209 = vunpack.c.h.bf16 %v168
      %v210 = vunpack.c.l.bf16 %v169
      %v211 = vunpack.c.h.bf16 %v169
      %v212 = vunpack.c.l.bf16 %v170
      %v213 = vunpack.c.h.bf16 %v170
      %v214 = vunpack.c.l.bf16 %v171
      %v215 = vunpack.c.h.bf16 %v171
      %v216 = vunpack.c.l.bf16 %v172
      %v217 = vunpack.c.h.bf16 %v172
      %v218 = vunpack.c.l.bf16 %v173
      %v219 = vunpack.c.h.bf16 %v173
      %v220 = vunpack.c.l.bf16 %v174
      %v221 = vunpack.c.h.bf16 %v174
      %v222 = vunpack.c.l.bf16 %v175
      %v223 = vunpack.c.h.bf16 %v175
      %v224 = vld [vmem:[%s1] sm:$0x3f]
      %v226 = vperm.slane %v224, 0
      %v227 = vperm.slane %v224, 1
      %v228 = vperm.slane %v224, 2
      %v229 = vperm.slane %v224, 3
      %v230 = vperm.slane %v224, 4
      %v231 = vperm.slane %v224, 5
      %v238 = vmul.f32 %v176, %v226
      %v239 = vmul.f32 %v177, %v227
      %v240 = vmul.f32 %v178, %v228
      %v241 = vmul.f32 %v179, %v229
      %v242 = vmul.f32 %v180, %v230
      %v243 = vmul.f32 %v181, %v231
      %v244 = vmul.f32 %v182, %v226
      %v245 = vmul.f32 %v183, %v227
      %v246 = vmul.f32 %v184, %v228
      %v247 = vmul.f32 %v185, %v229
      %v248 = vmul.f32 %v186, %v230
      %v249 = vmul.f32 %v187, %v231
      %v250 = vmul.f32 %v188, %v226
      %v251 = vmul.f32 %v189, %v227
      %v252 = vmul.f32 %v190, %v228
      %v253 = vmul.f32 %v191, %v229
      %v254 = vmul.f32 %v192, %v230
      %v255 = vmul.f32 %v193, %v231
      %v256 = vmul.f32 %v194, %v226
      %v257 = vmul.f32 %v195, %v227
      %v258 = vmul.f32 %v196, %v228
      %v259 = vmul.f32 %v197, %v229
      %v260 = vmul.f32 %v198, %v230
      %v261 = vmul.f32 %v199, %v231
      %v262 = vmul.f32 %v200, %v226
      %v263 = vmul.f32 %v201, %v227
      %v264 = vmul.f32 %v202, %v228
      %v265 = vmul.f32 %v203, %v229
      %v266 = vmul.f32 %v204, %v230
      %v267 = vmul.f32 %v205, %v231
      %v268 = vmul.f32 %v206, %v226
      %v269 = vmul.f32 %v207, %v227
      %v270 = vmul.f32 %v208, %v228
      %v271 = vmul.f32 %v209, %v229
      %v272 = vmul.f32 %v210, %v230
      %v273 = vmul.f32 %v211, %v231
      %v274 = vmul.f32 %v212, %v226
      %v275 = vmul.f32 %v213, %v227
      %v276 = vmul.f32 %v214, %v228
      %v277 = vmul.f32 %v215, %v229
      %v278 = vmul.f32 %v216, %v230
      %v279 = vmul.f32 %v217, %v231
      %v280 = vmul.f32 %v218, %v226
      %v281 = vmul.f32 %v219, %v227
      %v282 = vmul.f32 %v220, %v228
      %v283 = vmul.f32 %v221, %v229
      %v284 = vmul.f32 %v222, %v230
      %v285 = vmul.f32 %v223, %v231
      %v286 = vadd.f32 %v238, %v239
      %v287 = vadd.f32 %v244, %v245
      %v288 = vadd.f32 %v250, %v251
      %v289 = vadd.f32 %v256, %v257
      %v290 = vadd.f32 %v262, %v263
      %v291 = vadd.f32 %v268, %v269
      %v292 = vadd.f32 %v274, %v275
      %v293 = vadd.f32 %v280, %v281
      %v294 = vadd.f32 %v286, %v240
      %v295 = vadd.f32 %v287, %v246
      %v296 = vadd.f32 %v288, %v252
      %v297 = vadd.f32 %v289, %v258
      %v298 = vadd.f32 %v290, %v264
      %v299 = vadd.f32 %v291, %v270
      %v300 = vadd.f32 %v292, %v276
      %v301 = vadd.f32 %v293, %v282
      %v302 = vadd.f32 %v241, %v242
      %v303 = vadd.f32 %v247, %v248
      %v304 = vadd.f32 %v253, %v254
      %v305 = vadd.f32 %v259, %v260
      %v306 = vadd.f32 %v265, %v266
      %v307 = vadd.f32 %v271, %v272
      %v308 = vadd.f32 %v277, %v278
      %v309 = vadd.f32 %v283, %v284
      %v310 = vadd.f32 %v302, %v243
      %v311 = vadd.f32 %v303, %v249
      %v312 = vadd.f32 %v304, %v255
      %v313 = vadd.f32 %v305, %v261
      %v314 = vadd.f32 %v306, %v267
      %v315 = vadd.f32 %v307, %v273
      %v316 = vadd.f32 %v308, %v279
      %v317 = vadd.f32 %v309, %v285
      %318 = vst [vmem:[%s150] sm:$0xff] %v294
      %319 = vst [vmem:[%s150 + $0x8] sm:$0xff] %v310
      %320 = vst [vmem:[%s150 + $0x10] sm:$0xff] %v295
      %321 = vst [vmem:[%s150 + $0x18] sm:$0xff] %v311
      %322 = vst [vmem:[%s150 + $0x20] sm:$0xff] %v296
      %323 = vst [vmem:[%s150 + $0x28] sm:$0xff] %v312
      %324 = vst [vmem:[%s150 + $0x30] sm:$0xff] %v297
      %325 = vst [vmem:[%s150 + $0x38] sm:$0xff] %v313
      %326 = vst [vmem:[%s150 + $0x40] sm:$0xff] %v298
      %327 = vst [vmem:[%s150 + $0x48] sm:$0xff] %v314
      %328 = vst [vmem:[%s150 + $0x50] sm:$0xff] %v299
      %329 = vst [vmem:[%s150 + $0x58] sm:$0xff] %v315
      %330 = vst [vmem:[%s150 + $0x60] sm:$0xff] %v300
      %331 = vst [vmem:[%s150 + $0x68] sm:$0xff] %v316
      %332 = vst [vmem:[%s150 + $0x70] sm:$0xff] %v301
      %333 = vst [vmem:[%s150 + $0x78] sm:$0xff] %v317
      %s334 = smul.u32 8, %s13
      %p335 = scmp.lt.s32.totalorder %s334, 15
      %s336 = scalar_select %p335, %s334, 15
      %s337 = smul.addr %s336, 2
      %s338 = smul.addr %s337, 8
      %s339 = scalar_lea.vmem %s2, %s338
      // Predicated region
      $region29: #{mp_encoder_forward.5} parent=27 // pred_check
        %p340 = pneg %p78
      $region30: #{mp_encoder_forward.5} parent=27 // pred_check_branch
        %342 = sbr.rel (%p340) target = $region32
      $region31: #{mp_encoder_forward.5} parent=27 // pred_region
        %s343 = smul.u32 8, %s13
      $region32: #{mp_encoder_forward.5} parent=27 // pred_fallthru
        _
    $region28: #{mp_encoder_forward.5} parent=5 // pred_fallthru
      _
    %p344 = scmp.le.s32.totalorder 2, %s8
    // Predicated region
    $region33: #{mp_encoder_forward.5} parent=5 // pred_check
      %p345 = pneg %p344
    $region34: #{mp_encoder_forward.5} parent=5 // pred_check_branch
      %347 = sbr.rel (%p345) target = $region36
    $region35: #{mp_encoder_forward.5} parent=5 // pred_region
      %s348 = ssub.s32 %s8, 2
      // Predicated region
      $region37: #{mp_encoder_forward.5} parent=35 // pred_check
        %p349 = pneg %p84
      $region38: #{mp_encoder_forward.5} parent=35 // pred_check_branch
        %351 = sbr.rel (%p349) target = $region40
      $region39: #{mp_encoder_forward.5} parent=35 // pred_region
        %s352 = smul.u32 8, %s14
        %p353 = scmp.lt.s32.totalorder %s352, 15
        %s354 = scalar_select %p353, %s352, 15
        %s355 = smul.addr %s354, 2
        %s356 = smul.addr %s355, 8
        %s357 = scalar_lea.vmem %s2, %s356
      $region40: #{mp_encoder_forward.5} parent=35 // pred_fallthru
        _
    $region36: #{mp_encoder_forward.5} parent=5 // pred_fallthru
      _
  $region6: #{mp_encoder_forward.5} parent=0 // loop_footer
    %s12 = sadd.s32 1, %s8
  $region7: #{mp_encoder_forward.5} parent=0 // loop_footer_branch
    %7 = sbr.rel target = $region3
  $region8: #{mp_encoder_forward.5} parent=0 // loop_exit
    _

// kernel: mp_encoder_forward.7
$region0: #{mp_encoder_forward.7}
  #allocation0 [shape = 'u32[]', space=smem, size = 0x4, offset = 0x4, fixed_abs, tag = 'smem constant byte address 0x4 - core index']
  #allocation1 [shape = 'u32[72,128]{1,0:T(1,128)}', space=vmem, size = 0x9000, scoped, tag = 'internal scratch']
  %s0 = inlined_call_operand.vmem [shape: bf16[128,384], index: 0, kind: input, shape index: {}]
  %s1 = inlined_call_operand.vmem [shape: f32[1,384], index: 1, kind: input, shape index: {}]
  %s2 = inlined_call_operand.vmem [shape: f32[128,128], index: 2, kind: output, shape index: {}]
  %s3 = sld [smem:[#allocation0]]
  $region41: #{mp_encoder_forward.7} parent=0
    _
  %s5 = ssub.s32 1, %s3
  %s6 = scalar_select 0, %s5, %s3
  loop: start=0, step=1, limit=4
  $region2: #{mp_encoder_forward.7} parent=0 // loop_pre_header
    _
  $region3: #{mp_encoder_forward.7} parent=0 // loop_header
    %s8 = sphi 0, %s12
    %p9 = scmp.ge.s32.totalorder %s8, 4
    %s18 = sphi 0, %s20
    %s21 = sphi 0, %s18
    %s22 = sphi 0, %s21
    %s38 = sphi 0, %s22
    %s42 = sphi 0, %s42
    %s44 = sphi 0, %s42
    %s45 = sphi 0, %s44
    %s59 = sphi 0, %s45
    %s65 = sphi 0, %s67
    %s68 = sphi 0, %s65
    %s69 = sphi 0, %s68
    %s85 = sphi 0, %s69
  $region4: #{mp_encoder_forward.7} parent=0 // loop_header_branch
    %11 = sbr.rel (%p9) target = $region8
  $region5: #{mp_encoder_forward.7} parent=0 // loop_body
    %s13 = ssub.s32 %s8, 1
    %s14 = ssub.s32 %s8, 2
    %s15 = sadd.s32 %s8, 1
    %s16 = ssub.s32 %s8, %s15
    %p17 = scmp.eq.s32.totalorder %s16, 0
    %s19 = sadd.s32 %s18, 1
    %s20 = scalar_select %p17, %s18, %s19
    %p23 = pneg %p17
    %p24 = scmp.eq.s32.totalorder %s8, 1
    %p25 = por %p23, %p24
    %p26 = scmp.ne.s32.totalorder %s18, %s21
    %p27 = scmp.eq.s32.totalorder %s8, 0
    %p28 = por %p26, %p27
    %p29 = scmp.ne.s32.totalorder %s18, %s21
    %p30 = scmp.eq.s32.totalorder %s13, 1
    %p31 = por %p29, %p30
    %p32 = scmp.ne.s32.totalorder %s21, %s22
    %p33 = scmp.eq.s32.totalorder %s13, 0
    %p34 = por %p32, %p33
    %p35 = scmp.ne.s32.totalorder %s21, %s22
    %p36 = scmp.eq.s32.totalorder %s14, 1
    %p37 = por %p35, %p36
    %p39 = scmp.ne.s32.totalorder %s22, %s38
    %p40 = scmp.eq.s32.totalorder %s14, 0
    %p41 = por %p39, %p40
    %s43 = sadd.s32 %s42, 1
    %p46 = scmp.eq.s32.totalorder %s8, 1
    %p47 = scmp.ne.s32.totalorder %s42, %s44
    %p48 = scmp.eq.s32.totalorder %s8, 0
    %p49 = por %p47, %p48
    %p50 = scmp.ne.s32.totalorder %s42, %s44
    %p51 = scmp.eq.s32.totalorder %s13, 1
    %p52 = por %p50, %p51
    %p53 = scmp.ne.s32.totalorder %s44, %s45
    %p54 = scmp.eq.s32.totalorder %s13, 0
    %p55 = por %p53, %p54
    %p56 = scmp.ne.s32.totalorder %s44, %s45
    %p57 = scmp.eq.s32.totalorder %s14, 1
    %p58 = por %p56, %p57
    %p60 = scmp.ne.s32.totalorder %s45, %s59
    %p61 = scmp.eq.s32.totalorder %s14, 0
    %p62 = por %p60, %p61
    %s63 = ssub.s32 %s8, %s15
    %p64 = scmp.eq.s32.totalorder %s63, 0
    %s66 = sadd.s32 %s65, 1
    %s67 = scalar_select %p64, %s65, %s66
    %p70 = pneg %p64
    %p71 = scmp.eq.s32.totalorder %s8, 1
    %p72 = por %p70, %p71
    %p73 = scmp.ne.s32.totalorder %s65, %s68
    %p74 = scmp.eq.s32.totalorder %s8, 0
    %p75 = por %p73, %p74
    %p76 = scmp.ne.s32.totalorder %s65, %s68
    %p77 = scmp.eq.s32.totalorder %s13, 1
    %p78 = por %p76, %p77
    %p79 = scmp.ne.s32.totalorder %s68, %s69
    %p80 = scmp.eq.s32.totalorder %s13, 0
    %p81 = por %p79, %p80
    %p82 = scmp.ne.s32.totalorder %s68, %s69
    %p83 = scmp.eq.s32.totalorder %s14, 1
    %p84 = por %p82, %p83
    %p86 = scmp.ne.s32.totalorder %s69, %s85
    %p87 = scmp.eq.s32.totalorder %s14, 0
    %p88 = por %p86, %p87
    %p89 = scmp.le.s32.totalorder 1, %s8
    %p90 = scmp.lt.s32.totalorder %s8, 3
    %p91 = pnand %p89, %p90
    %p92 = pneg %p91
    // Predicated region
    $region9: #{mp_encoder_forward.7} parent=5 // pred_check
      _
    $region10: #{mp_encoder_forward.7} parent=5 // pred_check_branch
      %94 = sbr.rel (%p91) target = $region12
    $region11: #{mp_encoder_forward.7} parent=5 // pred_region
      %s95 = ssub.s32 %s8, 1
      // Predicated region
      $region13: #{mp_encoder_forward.7} parent=11 // pred_check
        %p96 = pneg %p55
      $region14: #{mp_encoder_forward.7} parent=11 // pred_check_branch
        %98 = sbr.rel (%p96) target = $region16
      $region15: #{mp_encoder_forward.7} parent=11 // pred_region
        _
      $region16: #{mp_encoder_forward.7} parent=11 // pred_fallthru
        _
    $region12: #{mp_encoder_forward.7} parent=5 // pred_fallthru
      _
    %p99 = scmp.lt.s32.totalorder %s8, 2
    // Predicated region
    $region17: #{mp_encoder_forward.7} parent=5 // pred_check
      %p100 = pneg %p99
    $region18: #{mp_encoder_forward.7} parent=5 // pred_check_branch
      %102 = sbr.rel (%p100) target = $region20
    $region19: #{mp_encoder_forward.7} parent=5 // pred_region
      // Predicated region
      $region21: #{mp_encoder_forward.7} parent=19 // pred_check
        %p103 = pneg %p28
      $region22: #{mp_encoder_forward.7} parent=19 // pred_check_branch
        %105 = sbr.rel (%p103) target = $region24
      $region23: #{mp_encoder_forward.7} parent=19 // pred_region
        %s106 = smul.u32 8, %s8
        %p107 = scmp.lt.s32.totalorder %s106, 15
        %s108 = scalar_select %p107, %s106, 15
        %s109 = smul.addr %s108, 3
        %s110 = smul.addr %s109, 4
        %s111 = scalar_lea.vmem %s0, %s110
        %s112 = smul.u32 8, %s8
      $region24: #{mp_encoder_forward.7} parent=19 // pred_fallthru
        _
    $region20: #{mp_encoder_forward.7} parent=5 // pred_fallthru
      _
    %p113 = scmp.le.s32.totalorder 1, %s8
    %p114 = scmp.lt.s32.totalorder %s8, 3
    %p115 = pnand %p113, %p114
    %p116 = pneg %p115
    // Predicated region
    $region25: #{mp_encoder_forward.7} parent=5 // pred_check
      _
    $region26: #{mp_encoder_forward.7} parent=5 // pred_check_branch
      %118 = sbr.rel (%p115) target = $region28
    $region27: #{mp_encoder_forward.7} parent=5 // pred_region
      %s119 = ssub.s32 %s8, 1
      %s120 = smul.u32 8, %s13
      %p121 = scmp.lt.s32.totalorder %s120, 15
      %s122 = scalar_select %p121, %s120, 15
      %s123 = smul.addr %s122, 3
      %s124 = smul.addr %s123, 4
      %s125 = scalar_lea.vmem %s0, %s124
      %p126 = pneg %p34
      %p127 = pneg %p31
      %p128 = pneg %p55
      %p129 = pneg %p52
      %p130 = pneg %p81
      %p131 = pneg %p78
      %s132 = smul.u32 8, %s13
      %p133 = scmp.lt.s32.totalorder %s132, 15
      %s134 = scalar_select %p133, %s132, 15
      %s135 = smul.addr %s134, 8
      %s136 = scalar_lea.vmem %s2, %s135
      %s137 = smul.u32 8, %s13
      %p138 = scmp.lt.s32.totalorder %s137, 15
      %s139 = scalar_select %p138, %s137, 15
      %s140 = smul.addr %s139, 3
      %s141 = smul.addr %s140, 4
      %s142 = scalar_lea.vmem %s0, %s141
      %s143 = smul.u32 8, %s13
      %s144 = smul.u32 8, %s13
      %p145 = scmp.lt.s32.totalorder %s144, 15
      %s146 = scalar_select %p145, %s144, 15
      %s147 = smul.addr %s146, 8
      %s148 = scalar_lea.vmem %s2, %s147
      %s149 = smul.u32 8, %s13
      %v150 = vld [vmem:[%s142] sm:$0xff]
      %v151 = vld [vmem:[%s142 + $0x8] sm:$0xf]
      %v152 = vld [vmem:[%s142 + $0xc] sm:$0xff]
      %v153 = vld [vmem:[%s142 + $0x14] sm:$0xf]
      %v154 = vld [vmem:[%s142 + $0x18] sm:$0xff]
      %v155 = vld [vmem:[%s142 + $0x20] sm:$0xf]
      %v156 = vld [vmem:[%s142 + $0x24] sm:$0xff]
      %v157 = vld [vmem:[%s142 + $0x2c] sm:$0xf]
      %v158 = vld [vmem:[%s142 + $0x30] sm:$0xff]
      %v159 = vld [vmem:[%s142 + $0x38] sm:$0xf]
      %v160 = vld [vmem:[%s142 + $0x3c] sm:$0xff]
      %v161 = vld [vmem:[%s142 + $0x44] sm:$0xf]
      %v162 = vld [vmem:[%s142 + $0x48] sm:$0xff]
      %v163 = vld [vmem:[%s142 + $0x50] sm:$0xf]
      %v164 = vld [vmem:[%s142 + $0x54] sm:$0xff]
      %v165 = vld [vmem:[%s142 + $0x5c] sm:$0xf]
      %v166 = vunpack.c.l.bf16 %v150
      %v167 = vunpack.c.h.bf16 %v150
      %v168 = vunpack.c.l.bf16 %v151
      %v169 = vunpack.c.l.bf16 %v152
      %v170 = vunpack.c.h.bf16 %v152
      %v171 = vunpack.c.l.bf16 %v153
      %v172 = vunpack.c.l.bf16 %v154
      %v173 = vunpack.c.h.bf16 %v154
      %v174 = vunpack.c.l.bf16 %v155
      %v175 = vunpack.c.l.bf16 %v156
      %v176 = vunpack.c.h.bf16 %v156
      %v177 = vunpack.c.l.bf16 %v157
      %v178 = vunpack.c.l.bf16 %v158
      %v179 = vunpack.c.h.bf16 %v158
      %v180 = vunpack.c.l.bf16 %v159
      %v181 = vunpack.c.l.bf16 %v160
      %v182 = vunpack.c.h.bf16 %v160
      %v183 = vunpack.c.l.bf16 %v161
      %v184 = vunpack.c.l.bf16 %v162
      %v185 = vunpack.c.h.bf16 %v162
      %v186 = vunpack.c.l.bf16 %v163
      %v187 = vunpack.c.l.bf16 %v164
      %v188 = vunpack.c.h.bf16 %v164
      %v189 = vunpack.c.l.bf16 %v165
      %v190 = vld [vmem:[%s1] sm:$0x7]
      %v192 = vperm.slane %v190, 0
      %v193 = vperm.slane %v190, 1
      %v194 = vperm.slane %v190, 2
      %v198 = vmul.f32 %v166, %v192
      %v199 = vmul.f32 %v167, %v193
      %v200 = vmul.f32 %v168, %v194
      %v201 = vmul.f32 %v169, %v192
      %v202 = vmul.f32 %v170, %v193
      %v203 = vmul.f32 %v171, %v194
      %v204 = vmul.f32 %v172, %v192
      %v205 = vmul.f32 %v173, %v193
      %v206 = vmul.f32 %v174, %v194
      %v207 = vmul.f32 %v175, %v192
      %v208 = vmul.f32 %v176, %v193
      %v209 = vmul.f32 %v177, %v194
      %v210 = vmul.f32 %v178, %v192
      %v211 = vmul.f32 %v179, %v193
      %v212 = vmul.f32 %v180, %v194
      %v213 = vmul.f32 %v181, %v192
      %v214 = vmul.f32 %v182, %v193
      %v215 = vmul.f32 %v183, %v194
      %v216 = vmul.f32 %v184, %v192
      %v217 = vmul.f32 %v185, %v193
      %v218 = vmul.f32 %v186, %v194
      %v219 = vmul.f32 %v187, %v192
      %v220 = vmul.f32 %v188, %v193
      %v221 = vmul.f32 %v189, %v194
      %v222 = vadd.f32 %v198, %v199
      %v223 = vadd.f32 %v201, %v202
      %v224 = vadd.f32 %v204, %v205
      %v225 = vadd.f32 %v207, %v208
      %v226 = vadd.f32 %v210, %v211
      %v227 = vadd.f32 %v213, %v214
      %v228 = vadd.f32 %v216, %v217
      %v229 = vadd.f32 %v219, %v220
      %v230 = vadd.f32 %v222, %v200
      %v231 = vadd.f32 %v223, %v203
      %v232 = vadd.f32 %v224, %v206
      %v233 = vadd.f32 %v225, %v209
      %v234 = vadd.f32 %v226, %v212
      %v235 = vadd.f32 %v227, %v215
      %v236 = vadd.f32 %v228, %v218
      %v237 = vadd.f32 %v229, %v221
      %238 = vst [vmem:[%s148] sm:$0xff] %v230
      %239 = vst [vmem:[%s148 + $0x8] sm:$0xff] %v231
      %240 = vst [vmem:[%s148 + $0x10] sm:$0xff] %v232
      %241 = vst [vmem:[%s148 + $0x18] sm:$0xff] %v233
      %242 = vst [vmem:[%s148 + $0x20] sm:$0xff] %v234
      %243 = vst [vmem:[%s148 + $0x28] sm:$0xff] %v235
      %244 = vst [vmem:[%s148 + $0x30] sm:$0xff] %v236
      %245 = vst [vmem:[%s148 + $0x38] sm:$0xff] %v237
      %s246 = smul.u32 8, %s13
      %p247 = scmp.lt.s32.totalorder %s246, 15
      %s248 = scalar_select %p247, %s246, 15
      %s249 = smul.addr %s248, 8
      %s250 = scalar_lea.vmem %s2, %s249
      // Predicated region
      $region29: #{mp_encoder_forward.7} parent=27 // pred_check
        %p251 = pneg %p78
      $region30: #{mp_encoder_forward.7} parent=27 // pred_check_branch
        %253 = sbr.rel (%p251) target = $region32
      $region31: #{mp_encoder_forward.7} parent=27 // pred_region
        %s254 = smul.u32 8, %s13
      $region32: #{mp_encoder_forward.7} parent=27 // pred_fallthru
        _
    $region28: #{mp_encoder_forward.7} parent=5 // pred_fallthru
      _
    %p255 = scmp.le.s32.totalorder 2, %s8
    // Predicated region
    $region33: #{mp_encoder_forward.7} parent=5 // pred_check
      %p256 = pneg %p255
    $region34: #{mp_encoder_forward.7} parent=5 // pred_check_branch
      %258 = sbr.rel (%p256) target = $region36
    $region35: #{mp_encoder_forward.7} parent=5 // pred_region
      %s259 = ssub.s32 %s8, 2
      // Predicated region
      $region37: #{mp_encoder_forward.7} parent=35 // pred_check
        %p260 = pneg %p84
      $region38: #{mp_encoder_forward.7} parent=35 // pred_check_branch
        %262 = sbr.rel (%p260) target = $region40
      $region39: #{mp_encoder_forward.7} parent=35 // pred_region
        %s263 = smul.u32 8, %s14
        %p264 = scmp.lt.s32.totalorder %s263, 15
        %s265 = scalar_select %p264, %s263, 15
        %s266 = smul.addr %s265, 8
        %s267 = scalar_lea.vmem %s2, %s266
      $region40: #{mp_encoder_forward.7} parent=35 // pred_fallthru
        _
    $region36: #{mp_encoder_forward.7} parent=5 // pred_fallthru
      _
  $region6: #{mp_encoder_forward.7} parent=0 // loop_footer
    %s12 = sadd.s32 1, %s8
  $region7: #{mp_encoder_forward.7} parent=0 // loop_footer_branch
    %7 = sbr.rel target = $region3
  $region8: #{mp_encoder_forward.7} parent=0 // loop_exit
    _

// kernel: mp_encoder_forward.6
$region0: #{mp_encoder_forward.6}
  #allocation0 [shape = 'u32[]', space=smem, size = 0x4, offset = 0x4, fixed_abs, tag = 'smem constant byte address 0x4 - core index']
  #allocation1 [shape = 'u32[72,128]{1,0:T(1,128)}', space=vmem, size = 0x9000, scoped, tag = 'internal scratch']
  #allocation2 [shape = 'f32[64,384]{1,0:T(8,128)}', space=vmem, size = 0x18000, scoped, tag = 'scratch operand']
  %s0 = inlined_call_operand.vmem [shape: bf16[128,128], index: 0, kind: input, shape index: {}]
  %s1 = inlined_call_operand.vmem [shape: bf16[128,384], index: 1, kind: input, shape index: {}]
  %s2 = inlined_call_operand.vmem [shape: f32[1,384], index: 2, kind: input, shape index: {}]
  %s3 = inlined_call_operand.vmem [shape: f32[1,384], index: 3, kind: input, shape index: {}]
  %s4 = inlined_call_operand.vmem [shape: bf16[128,128], index: 4, kind: input, shape index: {}]
  %s5 = inlined_call_operand.vmem [shape: f32[1,128], index: 5, kind: input, shape index: {}]
  %s6 = inlined_call_operand.vmem [shape: bf16[128,384], index: 6, kind: output, shape index: {0}]
  %s7 = inlined_call_operand.vmem [shape: f32[2,1,384], index: 7, kind: output, shape index: {1}]
  %8 = xla_tuple %s6, %s7
  %s9 = sld [smem:[#allocation0]]
  $region73: #{mp_encoder_forward.6} parent=0
    _
  %s11 = ssub.s32 1, %s9
  %s12 = scalar_select 0, %s11, %s9
  loop: start=0, step=1, limit=4
  $region2: #{mp_encoder_forward.6} parent=0 // loop_pre_header
    _
  $region3: #{mp_encoder_forward.6} parent=0 // loop_header
    %s14 = sphi 0, %s18
    %p15 = scmp.ge.s32.totalorder %s14, 4
    %s21 = sphi 0, %s33
    %s22 = sphi 0, %s29
    %s23 = sphi 0, %s21
    %s24 = sphi 0, %s22
    %s25 = sphi 0, %s23
    %s26 = sphi 0, %s24
    %s38 = sphi 0, %s40
    %s41 = sphi 0, %s38
    %s42 = sphi 0, %s41
    %s58 = sphi 0, %s42
    %s64 = sphi 0, %s66
    %s67 = sphi 0, %s64
    %s68 = sphi 0, %s67
    %s84 = sphi 0, %s68
    %s88 = sphi 0, %s88
    %s90 = sphi 0, %s88
    %s91 = sphi 0, %s90
    %s105 = sphi 0, %s91
    %s109 = sphi 0, %s109
    %s111 = sphi 0, %s109
    %s112 = sphi 0, %s111
    %s126 = sphi 0, %s112
    %s130 = sphi 0, %s130
    %s132 = sphi 0, %s130
    %s133 = sphi 0, %s132
    %s147 = sphi 0, %s133
    %s151 = sphi 0, %s151
    %s153 = sphi 0, %s151
    %s154 = sphi 0, %s153
    %s168 = sphi 0, %s154
    %s174 = sphi 0, %s176
    %s177 = sphi 0, %s174
    %s178 = sphi 0, %s177
    %s194 = sphi 0, %s178
    %s200 = sphi 0, %s202
    %s203 = sphi 0, %s200
    %s204 = sphi 0, %s203
    %s220 = sphi 0, %s204
  $region4: #{mp_encoder_forward.6} parent=0 // loop_header_branch
    %17 = sbr.rel (%p15) target = $region8
  $region5: #{mp_encoder_forward.6} parent=0 // loop_body
    %s19 = ssub.s32 %s14, 1
    %s20 = ssub.s32 %s14, 2
    %s27 = sadd.s32 1, %s22
    %p28 = scmp.ge.s32.totalorder %s27, 1
    %s29 = scalar_select %p28, 0, %s27
    %s30 = sadd.s32 1, %s21
    %s31 = scalar_select %p28, %s30, %s21
    %p32 = scmp.ge.s32.totalorder %s31, 2
    %s33 = scalar_select %p32, 0, %s31
    %s34 = ssub.s32 %s21, %s33
    %s35 = ssub.s32 %s22, %s29
    %s36 = sor.u32 %s34, %s35
    %p37 = scmp.eq.s32.totalorder %s36, 0
    %s39 = sadd.s32 %s38, 1
    %s40 = scalar_select %p37, %s38, %s39
    %p43 = pneg %p37
    %p44 = scmp.eq.s32.totalorder %s14, 1
    %p45 = por %p43, %p44
    %p46 = scmp.ne.s32.totalorder %s38, %s41
    %p47 = scmp.eq.s32.totalorder %s14, 0
    %p48 = por %p46, %p47
    %p49 = scmp.ne.s32.totalorder %s38, %s41
    %p50 = scmp.eq.s32.totalorder %s19, 1
    %p51 = por %p49, %p50
    %p52 = scmp.ne.s32.totalorder %s41, %s42
    %p53 = scmp.eq.s32.totalorder %s19, 0
    %p54 = por %p52, %p53
    %p55 = scmp.ne.s32.totalorder %s41, %s42
    %p56 = scmp.eq.s32.totalorder %s20, 1
    %p57 = por %p55, %p56
    %p59 = scmp.ne.s32.totalorder %s42, %s58
    %p60 = scmp.eq.s32.totalorder %s20, 0
    %p61 = por %p59, %p60
    %s62 = ssub.s32 %s22, %s29
    %p63 = scmp.eq.s32.totalorder %s62, 0
    %s65 = sadd.s32 %s64, 1
    %s66 = scalar_select %p63, %s64, %s65
    %p69 = pneg %p63
    %p70 = scmp.eq.s32.totalorder %s14, 1
    %p71 = por %p69, %p70
    %p72 = scmp.ne.s32.totalorder %s64, %s67
    %p73 = scmp.eq.s32.totalorder %s14, 0
    %p74 = por %p72, %p73
    %p75 = scmp.ne.s32.totalorder %s64, %s67
    %p76 = scmp.eq.s32.totalorder %s19, 1
    %p77 = por %p75, %p76
    %p78 = scmp.ne.s32.totalorder %s67, %s68
    %p79 = scmp.eq.s32.totalorder %s19, 0
    %p80 = por %p78, %p79
    %p81 = scmp.ne.s32.totalorder %s67, %s68
    %p82 = scmp.eq.s32.totalorder %s20, 1
    %p83 = por %p81, %p82
    %p85 = scmp.ne.s32.totalorder %s68, %s84
    %p86 = scmp.eq.s32.totalorder %s20, 0
    %p87 = por %p85, %p86
    %s89 = sadd.s32 %s88, 1
    %p92 = scmp.eq.s32.totalorder %s14, 1
    %p93 = scmp.ne.s32.totalorder %s88, %s90
    %p94 = scmp.eq.s32.totalorder %s14, 0
    %p95 = por %p93, %p94
    %p96 = scmp.ne.s32.totalorder %s88, %s90
    %p97 = scmp.eq.s32.totalorder %s19, 1
    %p98 = por %p96, %p97
    %p99 = scmp.ne.s32.totalorder %s90, %s91
    %p100 = scmp.eq.s32.totalorder %s19, 0
    %p101 = por %p99, %p100
    %p102 = scmp.ne.s32.totalorder %s90, %s91
    %p103 = scmp.eq.s32.totalorder %s20, 1
    %p104 = por %p102, %p103
    %p106 = scmp.ne.s32.totalorder %s91, %s105
    %p107 = scmp.eq.s32.totalorder %s20, 0
    %p108 = por %p106, %p107
    %s110 = sadd.s32 %s109, 1
    %p113 = scmp.eq.s32.totalorder %s14, 1
    %p114 = scmp.ne.s32.totalorder %s109, %s111
    %p115 = scmp.eq.s32.totalorder %s14, 0
    %p116 = por %p114, %p115
    %p117 = scmp.ne.s32.totalorder %s109, %s111
    %p118 = scmp.eq.s32.totalorder %s19, 1
    %p119 = por %p117, %p118
    %p120 = scmp.ne.s32.totalorder %s111, %s112
    %p121 = scmp.eq.s32.totalorder %s19, 0
    %p122 = por %p120, %p121
    %p123 = scmp.ne.s32.totalorder %s111, %s112
    %p124 = scmp.eq.s32.totalorder %s20, 1
    %p125 = por %p123, %p124
    %p127 = scmp.ne.s32.totalorder %s112, %s126
    %p128 = scmp.eq.s32.totalorder %s20, 0
    %p129 = por %p127, %p128
    %s131 = sadd.s32 %s130, 1
    %p134 = scmp.eq.s32.totalorder %s14, 1
    %p135 = scmp.ne.s32.totalorder %s130, %s132
    %p136 = scmp.eq.s32.totalorder %s14, 0
    %p137 = por %p135, %p136
    %p138 = scmp.ne.s32.totalorder %s130, %s132
    %p139 = scmp.eq.s32.totalorder %s19, 1
    %p140 = por %p138, %p139
    %p141 = scmp.ne.s32.totalorder %s132, %s133
    %p142 = scmp.eq.s32.totalorder %s19, 0
    %p143 = por %p141, %p142
    %p144 = scmp.ne.s32.totalorder %s132, %s133
    %p145 = scmp.eq.s32.totalorder %s20, 1
    %p146 = por %p144, %p145
    %p148 = scmp.ne.s32.totalorder %s133, %s147
    %p149 = scmp.eq.s32.totalorder %s20, 0
    %p150 = por %p148, %p149
    %s152 = sadd.s32 %s151, 1
    %p155 = scmp.eq.s32.totalorder %s14, 1
    %p156 = scmp.ne.s32.totalorder %s151, %s153
    %p157 = scmp.eq.s32.totalorder %s14, 0
    %p158 = por %p156, %p157
    %p159 = scmp.ne.s32.totalorder %s151, %s153
    %p160 = scmp.eq.s32.totalorder %s19, 1
    %p161 = por %p159, %p160
    %p162 = scmp.ne.s32.totalorder %s153, %s154
    %p163 = scmp.eq.s32.totalorder %s19, 0
    %p164 = por %p162, %p163
    %p165 = scmp.ne.s32.totalorder %s153, %s154
    %p166 = scmp.eq.s32.totalorder %s20, 1
    %p167 = por %p165, %p166
    %p169 = scmp.ne.s32.totalorder %s154, %s168
    %p170 = scmp.eq.s32.totalorder %s20, 0
    %p171 = por %p169, %p170
    %s172 = ssub.s32 %s21, %s33
    %p173 = scmp.eq.s32.totalorder %s172, 0
    %s175 = sadd.s32 %s174, 1
    %s176 = scalar_select %p173, %s174, %s175
    %p179 = pneg %p173
    %p180 = scmp.eq.s32.totalorder %s14, 1
    %p181 = por %p179, %p180
    %p182 = scmp.ne.s32.totalorder %s174, %s177
    %p183 = scmp.eq.s32.totalorder %s14, 0
    %p184 = por %p182, %p183
    %p185 = scmp.ne.s32.totalorder %s174, %s177
    %p186 = scmp.eq.s32.totalorder %s19, 1
    %p187 = por %p185, %p186
    %p188 = scmp.ne.s32.totalorder %s177, %s178
    %p189 = scmp.eq.s32.totalorder %s19, 0
    %p190 = por %p188, %p189
    %p191 = scmp.ne.s32.totalorder %s177, %s178
    %p192 = scmp.eq.s32.totalorder %s20, 1
    %p193 = por %p191, %p192
    %p195 = scmp.ne.s32.totalorder %s178, %s194
    %p196 = scmp.eq.s32.totalorder %s20, 0
    %p197 = por %p195, %p196
    %s198 = ssub.s32 %s21, %s33
    %p199 = scmp.eq.s32.totalorder %s198, 0
    %s201 = sadd.s32 %s200, 1
    %s202 = scalar_select %p199, %s200, %s201
    %p205 = pneg %p199
    %p206 = scmp.eq.s32.totalorder %s14, 1
    %p207 = por %p205, %p206
    %p208 = scmp.ne.s32.totalorder %s200, %s203
    %p209 = scmp.eq.s32.totalorder %s14, 0
    %p210 = por %p208, %p209
    %p211 = scmp.ne.s32.totalorder %s200, %s203
    %p212 = scmp.eq.s32.totalorder %s19, 1
    %p213 = por %p211, %p212
    %p214 = scmp.ne.s32.totalorder %s203, %s204
    %p215 = scmp.eq.s32.totalorder %s19, 0
    %p216 = por %p214, %p215
    %p217 = scmp.ne.s32.totalorder %s203, %s204
    %p218 = scmp.eq.s32.totalorder %s20, 1
    %p219 = por %p217, %p218
    %p221 = scmp.ne.s32.totalorder %s204, %s220
    %p222 = scmp.eq.s32.totalorder %s20, 0
    %p223 = por %p221, %p222
    %p224 = scmp.le.s32.totalorder 1, %s14
    %p225 = scmp.lt.s32.totalorder %s14, 3
    %p226 = pnand %p224, %p225
    %p227 = pneg %p226
    // Predicated region
    $region9: #{mp_encoder_forward.6} parent=5 // pred_check
      _
    $region10: #{mp_encoder_forward.6} parent=5 // pred_check_branch
      %229 = sbr.rel (%p226) target = $region12
    $region11: #{mp_encoder_forward.6} parent=5 // pred_region
      %s230 = ssub.s32 %s14, 1
      // Predicated region
      $region13: #{mp_encoder_forward.6} parent=11 // pred_check
        %p231 = pneg %p80
      $region14: #{mp_encoder_forward.6} parent=11 // pred_check_branch
        %233 = sbr.rel (%p231) target = $region16
      $region15: #{mp_encoder_forward.6} parent=11 // pred_region
        %s234 = smul.u32 16, %s24
        %p235 = scmp.lt.s32.totalorder %s234, 15
        %s236 = scalar_select %p235, %s234, 15
        %s237 = smul.addr %s236, 3
        %s238 = smul.addr %s237, 4
        %s239 = scalar_lea.vmem %s1, %s238
        %s240 = smul.u32 16, %s24
      $region16: #{mp_encoder_forward.6} parent=11 // pred_fallthru
        _
      // Predicated region
      $region17: #{mp_encoder_forward.6} parent=11 // pred_check
        %p241 = pneg %p101
      $region18: #{mp_encoder_forward.6} parent=11 // pred_check_branch
        %243 = sbr.rel (%p241) target = $region20
      $region19: #{mp_encoder_forward.6} parent=11 // pred_region
        _
      $region20: #{mp_encoder_forward.6} parent=11 // pred_fallthru
        _
      // Predicated region
      $region21: #{mp_encoder_forward.6} parent=11 // pred_check
        %p244 = pneg %p122
      $region22: #{mp_encoder_forward.6} parent=11 // pred_check_branch
        %246 = sbr.rel (%p244) target = $region24
      $region23: #{mp_encoder_forward.6} parent=11 // pred_region
        _
      $region24: #{mp_encoder_forward.6} parent=11 // pred_fallthru
        _
      // Predicated region
      $region25: #{mp_encoder_forward.6} parent=11 // pred_check
        %p247 = pneg %p143
      $region26: #{mp_encoder_forward.6} parent=11 // pred_check_branch
        %249 = sbr.rel (%p247) target = $region28
      $region27: #{mp_encoder_forward.6} parent=11 // pred_region
        _
      $region28: #{mp_encoder_forward.6} parent=11 // pred_fallthru
        _
      // Predicated region
      $region29: #{mp_encoder_forward.6} parent=11 // pred_check
        %p250 = pneg %p164
      $region30: #{mp_encoder_forward.6} parent=11 // pred_check_branch
        %252 = sbr.rel (%p250) target = $region32
      $region31: #{mp_encoder_forward.6} parent=11 // pred_region
        _
      $region32: #{mp_encoder_forward.6} parent=11 // pred_fallthru
        _
    $region12: #{mp_encoder_forward.6} parent=5 // pred_fallthru
      _
    %p253 = scmp.lt.s32.totalorder %s14, 2
    // Predicated region
    $region33: #{mp_encoder_forward.6} parent=5 // pred_check
      %p254 = pneg %p253
    $region34: #{mp_encoder_forward.6} parent=5 // pred_check_branch
      %256 = sbr.rel (%p254) target = $region36
    $region35: #{mp_encoder_forward.6} parent=5 // pred_region
      // Predicated region
      $region37: #{mp_encoder_forward.6} parent=35 // pred_check
        %p257 = pneg %p48
      $region38: #{mp_encoder_forward.6} parent=35 // pred_check_branch
        %259 = sbr.rel (%p257) target = $region40
      $region39: #{mp_encoder_forward.6} parent=35 // pred_region
        %s260 = smul.u32 8, %s21
        %p261 = scmp.lt.s32.totalorder %s260, 15
        %s262 = scalar_select %p261, %s260, 15
        %p263 = scmp.lt.s32.totalorder %s22, 0
        %s264 = scalar_select %p263, %s22, 0
        %s265 = sadd.s32 %s264, %s262
        %s266 = smul.addr %s265, 4
        %s267 = scalar_lea.vmem %s0, %s266
        %s268 = smul.u32 8, %s21
      $region40: #{mp_encoder_forward.6} parent=35 // pred_fallthru
        _
    $region36: #{mp_encoder_forward.6} parent=5 // pred_fallthru
      _
    %p269 = scmp.le.s32.totalorder 1, %s14
    %p270 = scmp.lt.s32.totalorder %s14, 3
    %p271 = pnand %p269, %p270
    %p272 = pneg %p271
    // Predicated region
    $region41: #{mp_encoder_forward.6} parent=5 // pred_check
      _
    $region42: #{mp_encoder_forward.6} parent=5 // pred_check_branch
      %274 = sbr.rel (%p271) target = $region44
    $region43: #{mp_encoder_forward.6} parent=5 // pred_region
      %s275 = ssub.s32 %s14, 1
      %s276 = smul.u32 8, %s23
      %p277 = scmp.lt.s32.totalorder %s276, 15
      %s278 = scalar_select %p277, %s276, 15
      %p279 = scmp.lt.s32.totalorder %s24, 0
      %s280 = scalar_select %p279, %s24, 0
      %s281 = sadd.s32 %s280, %s278
      %s282 = smul.addr %s281, 4
      %s283 = scalar_lea.vmem %s0, %s282
      %p284 = pneg %p54
      %p285 = pneg %p51
      %s286 = smul.u32 16, %s24
      %p287 = scmp.lt.s32.totalorder %s286, 15
      %s288 = scalar_select %p287, %s286, 15
      %s289 = smul.addr %s288, 3
      %s290 = smul.addr %s289, 4
      %s291 = scalar_lea.vmem %s1, %s290
      %p292 = pneg %p80
      %p293 = pneg %p77
      %p294 = pneg %p101
      %p295 = pneg %p98
      %p296 = pneg %p122
      %p297 = pneg %p119
      %p298 = pneg %p143
      %p299 = pneg %p140
      %p300 = pneg %p164
      %p301 = pneg %p161
      %p302 = pneg %p190
      %p303 = pneg %p187
      %s304 = smul.u32 8, %s23
      %p305 = scmp.lt.s32.totalorder %s304, 15
      %s306 = scalar_select %p305, %s304, 15
      %s307 = smul.addr %s306, 3
      %s308 = smul.addr %s307, 4
      %s309 = scalar_lea.vmem %s6, %s308
      %p310 = pneg %p216
      %p311 = pneg %p213
      %p312 = scmp.lt.s32.totalorder %s23, 1
      %s313 = scalar_select %p312, %s23, 1
      %s314 = smul.addr %s313, 3
      %s315 = scalar_lea.vmem %s7, %s314
      %s316 = smul.u32 8, %s23
      %p317 = scmp.lt.s32.totalorder %s316, 15
      %s318 = scalar_select %p317, %s316, 15
      %p319 = scmp.lt.s32.totalorder %s24, 0
      %s320 = scalar_select %p319, %s24, 0
      %s321 = sadd.s32 %s320, %s318
      %s322 = smul.addr %s321, 4
      %s323 = scalar_lea.vmem %s0, %s322
      %s324 = smul.u32 8, %s23
      %s325 = smul.u32 16, %s24
      %p326 = scmp.lt.s32.totalorder %s325, 15
      %s327 = scalar_select %p326, %s325, 15
      %s328 = smul.addr %s327, 3
      %s329 = smul.addr %s328, 4
      %s330 = scalar_lea.vmem %s1, %s329
      %s331 = smul.u32 16, %s24
      %s332 = smul.u32 8, %s23
      %p333 = scmp.lt.s32.totalorder %s332, 15
      %s334 = scalar_select %p333, %s332, 15
      %s335 = smul.addr %s334, 3
      %s336 = smul.addr %s335, 4
      %s337 = scalar_lea.vmem %s6, %s336
      %s338 = smul.u32 8, %s23
      %p339 = scmp.lt.s32.totalorder %s23, 1
      %s340 = scalar_select %p339, %s23, 1
      %s341 = smul.addr %s340, 3
      %s342 = scalar_lea.vmem %s7, %s341
      %p343 = scmp.eq.s32.totalorder %s24, 0
      // Predicated region
      $region45: #{mp_encoder_forward.6} parent=43 // pred_check
        %p344 = pneg %p343
      $region46: #{mp_encoder_forward.6} parent=43 // pred_check_branch
        %346 = sbr.rel (%p344) target = $region48
      $region47: #{mp_encoder_forward.6} parent=43 // pred_region
        %347 = vst [vmem:[#allocation2] sm:$0xff] 0.0
        %348 = vst [vmem:[#allocation2 + $0x8] sm:$0xff] 0.0
        %349 = vst [vmem:[#allocation2 + $0x10] sm:$0xff] 0.0
        %350 = vst [vmem:[#allocation2 + $0x18] sm:$0xff] 0.0
        %351 = vst [vmem:[#allocation2 + $0x20] sm:$0xff] 0.0
        %352 = vst [vmem:[#allocation2 + $0x28] sm:$0xff] 0.0
        %353 = vst [vmem:[#allocation2 + $0x30] sm:$0xff] 0.0
        %354 = vst [vmem:[#allocation2 + $0x38] sm:$0xff] 0.0
        %355 = vst [vmem:[#allocation2 + $0x40] sm:$0xff] 0.0
        %356 = vst [vmem:[#allocation2 + $0x48] sm:$0xff] 0.0
        %357 = vst [vmem:[#allocation2 + $0x50] sm:$0xff] 0.0
        %358 = vst [vmem:[#allocation2 + $0x58] sm:$0xff] 0.0
        %359 = vst [vmem:[#allocation2 + $0x60] sm:$0xff] 0.0
        %360 = vst [vmem:[#allocation2 + $0x68] sm:$0xff] 0.0
        %361 = vst [vmem:[#allocation2 + $0x70] sm:$0xff] 0.0
        %362 = vst [vmem:[#allocation2 + $0x78] sm:$0xff] 0.0
        %363 = vst [vmem:[#allocation2 + $0x80] sm:$0xff] 0.0
        %364 = vst [vmem:[#allocation2 + $0x88] sm:$0xff] 0.0
        %365 = vst [vmem:[#allocation2 + $0x90] sm:$0xff] 0.0
        %366 = vst [vmem:[#allocation2 + $0x98] sm:$0xff] 0.0
        %367 = vst [vmem:[#allocation2 + $0xa0] sm:$0xff] 0.0
        %368 = vst [vmem:[#allocation2 + $0xa8] sm:$0xff] 0.0
        %369 = vst [vmem:[#allocation2 + $0xb0] sm:$0xff] 0.0
        %370 = vst [vmem:[#allocation2 + $0xb8] sm:$0xff] 0.0
      $region48: #{mp_encoder_forward.6} parent=43 // pred_fallthru
        _
      %v371 = vld [vmem:[#allocation2] sm:$0xff]
      %v372 = vld [vmem:[#allocation2 + $0x8] sm:$0xff]
      %v373 = vld [vmem:[#allocation2 + $0x10] sm:$0xff]
      %v374 = vld [vmem:[#allocation2 + $0x18] sm:$0xff]
      %v375 = vld [vmem:[#allocation2 + $0x20] sm:$0xff]
      %v376 = vld [vmem:[#allocation2 + $0x28] sm:$0xff]
      %v377 = vld [vmem:[#allocation2 + $0x30] sm:$0xff]
      %v378 = vld [vmem:[#allocation2 + $0x38] sm:$0xff]
      %v379 = vld [vmem:[#allocation2 + $0x40] sm:$0xff]
      %v380 = vld [vmem:[#allocation2 + $0x48] sm:$0xff]
      %v381 = vld [vmem:[#allocation2 + $0x50] sm:$0xff]
      %v382 = vld [vmem:[#allocation2 + $0x58] sm:$0xff]
      %v383 = vld [vmem:[#allocation2 + $0x60] sm:$0xff]
      %v384 = vld [vmem:[#allocation2 + $0x68] sm:$0xff]
      %v385 = vld [vmem:[#allocation2 + $0x70] sm:$0xff]
      %v386 = vld [vmem:[#allocation2 + $0x78] sm:$0xff]
      %v387 = vld [vmem:[#allocation2 + $0x80] sm:$0xff]
      %v388 = vld [vmem:[#allocation2 + $0x88] sm:$0xff]
      %v389 = vld [vmem:[#allocation2 + $0x90] sm:$0xff]
      %v390 = vld [vmem:[#allocation2 + $0x98] sm:$0xff]
      %v391 = vld [vmem:[#allocation2 + $0xa0] sm:$0xff]
      %v392 = vld [vmem:[#allocation2 + $0xa8] sm:$0xff]
      %v393 = vld [vmem:[#allocation2 + $0xb0] sm:$0xff]
      %v394 = vld [vmem:[#allocation2 + $0xb8] sm:$0xff]
      %v395 = vld [vmem:[%s323] sm:$0xf]
      %v396 = vld [vmem:[%s323 + $0x4] sm:$0xf]
      %v397 = vld [vmem:[%s323 + $0x8] sm:$0xf]
      %v398 = vld [vmem:[%s323 + $0xc] sm:$0xf]
      %v399 = vld [vmem:[%s323 + $0x10] sm:$0xf]
      %v400 = vld [vmem:[%s323 + $0x14] sm:$0xf]
      %v401 = vld [vmem:[%s323 + $0x18] sm:$0xf]
      %v402 = vld [vmem:[%s323 + $0x1c] sm:$0xf]
      %v403 = vld [vmem:[%s330] sm:$0xff]
      %v404 = vld [vmem:[%s330 + $0x8] sm:$0xf]
      %v405 = vld [vmem:[%s330 + $0xc] sm:$0xff]
      %v406 = vld [vmem:[%s330 + $0x14] sm:$0xf]
      %v407 = vld [vmem:[%s330 + $0x18] sm:$0xff]
      %v408 = vld [vmem:[%s330 + $0x20] sm:$0xf]
      %v409 = vld [vmem:[%s330 + $0x24] sm:$0xff]
      %v410 = vld [vmem:[%s330 + $0x2c] sm:$0xf]
      %v411 = vld [vmem:[%s330 + $0x30] sm:$0xff]
      %v412 = vld [vmem:[%s330 + $0x38] sm:$0xf]
      %v413 = vld [vmem:[%s330 + $0x3c] sm:$0xff]
      %v414 = vld [vmem:[%s330 + $0x44] sm:$0xf]
      %v415 = vld [vmem:[%s330 + $0x48] sm:$0xff]
      %v416 = vld [vmem:[%s330 + $0x50] sm:$0xf]
      %v417 = vld [vmem:[%s330 + $0x54] sm:$0xff]
      %v418 = vld [vmem:[%s330 + $0x5c] sm:$0xf]
      %v419 = vld [vmem:[%s330 + $0x60] sm:$0xff]
      %v420 = vld [vmem:[%s330 + $0x68] sm:$0xf]
      %v421 = vld [vmem:[%s330 + $0x6c] sm:$0xff]
      %v422 = vld [vmem:[%s330 + $0x74] sm:$0xf]
      %v423 = vld [vmem:[%s330 + $0x78] sm:$0xff]
      %v424 = vld [vmem:[%s330 + $0x80] sm:$0xf]
      %v425 = vld [vmem:[%s330 + $0x84] sm:$0xff]
      %v426 = vld [vmem:[%s330 + $0x8c] sm:$0xf]
      %v427 = vld [vmem:[%s330 + $0x90] sm:$0xff]
      %v428 = vld [vmem:[%s330 + $0x98] sm:$0xf]
      %v429 = vld [vmem:[%s330 + $0x9c] sm:$0xff]
      %v430 = vld [vmem:[%s330 + $0xa4] sm:$0xf]
      %v431 = vld [vmem:[%s330 + $0xa8] sm:$0xff]
      %v432 = vld [vmem:[%s330 + $0xb0] sm:$0xf]
      %v433 = vld [vmem:[%s330 + $0xb4] sm:$0xff]
      %v434 = vld [vmem:[%s330 + $0xbc] sm:$0xf]
      %v443 = vunpack.c.l.b16 %v395
      %v444 = vunpack.c.l.b16 %v396
      %v445 = vunpack.c.l.b16 %v397
      %v446 = vunpack.c.l.b16 %v398
      %v447 = vunpack.c.l.b16 %v399
      %v448 = vunpack.c.l.b16 %v400
      %v449 = vunpack.c.l.b16 %v401
      %v450 = vunpack.c.l.b16 %v402
      %v451 = vpack.c.b16 %v444, %v443
      %v452 = vpack.c.b16 %v446, %v445
      %v453 = vpack.c.b16 %v448, %v447
      %v454 = vpack.c.b16 %v450, %v449
      %v491 = vunpack.c.l.b16 %v403
      %v492 = vunpack.c.h.b16 %v403
      %v493 = vunpack.c.l.b16 %v404
      %v494 = vunpack.c.l.b16 %v405
      %v495 = vunpack.c.h.b16 %v405
      %v496 = vunpack.c.l.b16 %v406
      %v497 = vunpack.c.l.b16 %v407
      %v498 = vunpack.c.h.b16 %v407
      %v499 = vunpack.c.l.b16 %v408
      %v500 = vunpack.c.l.b16 %v409
      %v501 = vunpack.c.h.b16 %v409
      %v502 = vunpack.c.l.b16 %v410
      %v503 = vunpack.c.l.b16 %v411
      %v504 = vunpack.c.h.b16 %v411
      %v505 = vunpack.c.l.b16 %v412
      %v506 = vunpack.c.l.b16 %v413
      %v507 = vunpack.c.h.b16 %v413
      %v508 = vunpack.c.l.b16 %v414
      %v509 = vunpack.c.l.b16 %v415
      %v510 = vunpack.c.h.b16 %v415
      %v511 = vunpack.c.l.b16 %v416
      %v512 = vunpack.c.l.b16 %v417
      %v513 = vunpack.c.h.b16 %v417
      %v514 = vunpack.c.l.b16 %v418
      %v515 = vunpack.c.l.b16 %v419
      %v516 = vunpack.c.h.b16 %v419
      %v517 = vunpack.c.l.b16 %v420
      %v518 = vunpack.c.l.b16 %v421
      %v519 = vunpack.c.h.b16 %v421
      %v520 = vunpack.c.l.b16 %v422
      %v521 = vunpack.c.l.b16 %v423
      %v522 = vunpack.c.h.b16 %v423
      %v523 = vunpack.c.l.b16 %v424
      %v524 = vunpack.c.l.b16 %v425
      %v525 = vunpack.c.h.b16 %v425
      %v526 = vunpack.c.l.b16 %v426
      %v527 = vunpack.c.l.b16 %v427
      %v528 = vunpack.c.h.b16 %v427
      %v529 = vunpack.c.l.b16 %v428
      %v530 = vunpack.c.l.b16 %v429
      %v531 = vunpack.c.h.b16 %v429
      %v532 = vunpack.c.l.b16 %v430
      %v533 = vunpack.c.l.b16 %v431
      %v534 = vunpack.c.h.b16 %v431
      %v535 = vunpack.c.l.b16 %v432
      %v536 = vunpack.c.l.b16 %v433
      %v537 = vunpack.c.h.b16 %v433
      %v538 = vunpack.c.l.b16 %v434
      %v539 = vpack.c.b16 %v494, %v491
      %v540 = vpack.c.b16 %v495, %v492
      %v541 = vpack.c.b16 %v496, %v493
      %v542 = vpack.c.b16 %v500, %v497
      %v543 = vpack.c.b16 %v501, %v498
      %v544 = vpack.c.b16 %v502, %v499
      %v545 = vpack.c.b16 %v506, %v503
      %v546 = vpack.c.b16 %v507, %v504
      %v547 = vpack.c.b16 %v508, %v505
      %v548 = vpack.c.b16 %v512, %v509
      %v549 = vpack.c.b16 %v513, %v510
      %v550 = vpack.c.b16 %v514, %v511
      %v551 = vpack.c.b16 %v518, %v515
      %v552 = vpack.c.b16 %v519, %v516
      %v553 = vpack.c.b16 %v520, %v517
      %v554 = vpack.c.b16 %v524, %v521
      %v555 = vpack.c.b16 %v525, %v522
      %v556 = vpack.c.b16 %v526, %v523
      %v557 = vpack.c.b16 %v530, %v527
      %v558 = vpack.c.b16 %v531, %v528
      %v559 = vpack.c.b16 %v532, %v529
      %v560 = vpack.c.b16 %v536, %v533
      %v561 = vpack.c.b16 %v537, %v534
      %v562 = vpack.c.b16 %v538, %v535
      %587 = vmatpush.bf16.msra.mxu0 %v560
      %588 = vmatpush.bf16.msra.mxu0 %v557
      %589 = vmatpush.bf16.msra.mxu0 %v554
      %590 = vmatpush.bf16.msra.mxu0 %v551
      %591 = vmatpush.bf16.msra.mxu0 %v548
      %592 = vmatpush.bf16.msra.mxu0 %v545
      %593 = vmatpush.bf16.msra.mxu0 %v542
      %594 = vmatpush.bf16.msra.mxu0 %v539
      %595 = vmatmul.bf16.gmra.mxu0 %v451
      %v596 = vpop.f32.mrf.mxu0
      %v597 = vadd.f32 0.0, %v596
      %v598 = vpop.f32.mrf.mxu0
      %v599 = vadd.f32 0.0, %v598
      %600 = vmatmul.bf16.gmra.mxu0 %v452
      %v601 = vpop.f32.mrf.mxu0
      %v602 = vadd.f32 0.0, %v601
      %v603 = vpop.f32.mrf.mxu0
      %v604 = vadd.f32 0.0, %v603
      %605 = vmatmul.bf16.gmra.mxu0 %v453
      %v606 = vpop.f32.mrf.mxu0
      %v607 = vadd.f32 0.0, %v606
      %v608 = vpop.f32.mrf.mxu0
      %v609 = vadd.f32 0.0, %v608
      %610 = vmatmul.bf16.gmra.mxu0 %v454
      %v611 = vpop.f32.mrf.mxu0
      %v612 = vadd.f32 0.0, %v611
      %v613 = vpop.f32.mrf.mxu0
      %v614 = vadd.f32 0.0, %v613
      %615 = vdwg.mxu0
      %616 = vmatpush.bf16.msra.mxu0 %v561
      %617 = vmatpush.bf16.msra.mxu0 %v558
      %618 = vmatpush.bf16.msra.mxu0 %v555
      %619 = vmatpush.bf16.msra.mxu0 %v552
      %620 = vmatpush.bf16.msra.mxu0 %v549
      %621 = vmatpush.bf16.msra.mxu0 %v546
      %622 = vmatpush.bf16.msra.mxu0 %v543
      %623 = vmatpush.bf16.msra.mxu0 %v540
      %624 = vmatmul.bf16.gmra.mxu0 %v451
      %v625 = vpop.f32.mrf.mxu0
      %v626 = vadd.f32 0.0, %v625
      %v627 = vpop.f32.mrf.mxu0
      %v628 = vadd.f32 0.0, %v627
      %629 = vmatmul.bf16.gmra.mxu0 %v452
      %v630 = vpop.f32.mrf.mxu0
      %v631 = vadd.f32 0.0, %v630
      %v632 = vpop.f32.mrf.mxu0
      %v633 = vadd.f32 0.0, %v632
      %634 = vmatmul.bf16.gmra.mxu0 %v453
      %v635 = vpop.f32.mrf.mxu0
      %v636 = vadd.f32 0.0, %v635
      %v637 = vpop.f32.mrf.mxu0
      %v638 = vadd.f32 0.0, %v637
      %639 = vmatmul.bf16.gmra.mxu0 %v454
      %v640 = vpop.f32.mrf.mxu0
      %v641 = vadd.f32 0.0, %v640
      %v642 = vpop.f32.mrf.mxu0
      %v643 = vadd.f32 0.0, %v642
      %644 = vdwg.mxu0
      %645 = vmatpush.bf16.msra.mxu0 %v562
      %646 = vmatpush.bf16.msra.mxu0 %v559
      %647 = vmatpush.bf16.msra.mxu0 %v556
      %648 = vmatpush.bf16.msra.mxu0 %v553
      %649 = vmatpush.bf16.msra.mxu0 %v550
      %650 = vmatpush.bf16.msra.mxu0 %v547
      %651 = vmatpush.bf16.msra.mxu0 %v544
      %652 = vmatpush.bf16.msra.mxu0 %v541
      %653 = vmatmul.bf16.gmra.mxu0 %v451
      %v654 = vpop.f32.mrf.mxu0
      %v655 = vadd.f32 0.0, %v654
      %v656 = vpop.f32.mrf.mxu0
      %v657 = vadd.f32 0.0, %v656
      %658 = vmatmul.bf16.gmra.mxu0 %v452
      %v659 = vpop.f32.mrf.mxu0
      %v660 = vadd.f32 0.0, %v659
      %v661 = vpop.f32.mrf.mxu0
      %v662 = vadd.f32 0.0, %v661
      %663 = vmatmul.bf16.gmra.mxu0 %v453
      %v664 = vpop.f32.mrf.mxu0
      %v665 = vadd.f32 0.0, %v664
      %v666 = vpop.f32.mrf.mxu0
      %v667 = vadd.f32 0.0, %v666
      %668 = vmatmul.bf16.gmra.mxu0 %v454
      %v669 = vpop.f32.mrf.mxu0
      %v670 = vadd.f32 0.0, %v669
      %v671 = vpop.f32.mrf.mxu0
      %v672 = vadd.f32 0.0, %v671
      %673 = vdwg.mxu0
      %v674 = vadd.f32 %v371, %v597
      %v675 = vadd.f32 %v372, %v626
      %v676 = vadd.f32 %v373, %v655
      %v677 = vadd.f32 %v374, %v599
      %v678 = vadd.f32 %v375, %v628
      %v679 = vadd.f32 %v376, %v657
      %v680 = vadd.f32 %v377, %v602
      %v681 = vadd.f32 %v378, %v631
      %v682 = vadd.f32 %v379, %v660
      %v683 = vadd.f32 %v380, %v604
      %v684 = vadd.f32 %v381, %v633
      %v685 = vadd.f32 %v382, %v662
      %v686 = vadd.f32 %v383, %v607
      %v687 = vadd.f32 %v384, %v636
      %v688 = vadd.f32 %v385, %v665
      %v689 = vadd.f32 %v386, %v609
      %v690 = vadd.f32 %v387, %v638
      %v691 = vadd.f32 %v388, %v667
      %v692 = vadd.f32 %v389, %v612
      %v693 = vadd.f32 %v390, %v641
      %v694 = vadd.f32 %v391, %v670
      %v695 = vadd.f32 %v392, %v614
      %v696 = vadd.f32 %v393, %v643
      %v697 = vadd.f32 %v394, %v672
      %698 = vst [vmem:[#allocation2] sm:$0xff] %v674
      %699 = vst [vmem:[#allocation2 + $0x8] sm:$0xff] %v675
      %700 = vst [vmem:[#allocation2 + $0x10] sm:$0xff] %v676
      %701 = vst [vmem:[#allocation2 + $0x18] sm:$0xff] %v677
      %702 = vst [vmem:[#allocation2 + $0x20] sm:$0xff] %v678
      %703 = vst [vmem:[#allocation2 + $0x28] sm:$0xff] %v679
      %704 = vst [vmem:[#allocation2 + $0x30] sm:$0xff] %v680
      %705 = vst [vmem:[#allocation2 + $0x38] sm:$0xff] %v681
      %706 = vst [vmem:[#allocation2 + $0x40] sm:$0xff] %v682
      %707 = vst [vmem:[#allocation2 + $0x48] sm:$0xff] %v683
      %708 = vst [vmem:[#allocation2 + $0x50] sm:$0xff] %v684
      %709 = vst [vmem:[#allocation2 + $0x58] sm:$0xff] %v685
      %710 = vst [vmem:[#allocation2 + $0x60] sm:$0xff] %v686
      %711 = vst [vmem:[#allocation2 + $0x68] sm:$0xff] %v687
      %712 = vst [vmem:[#allocation2 + $0x70] sm:$0xff] %v688
      %713 = vst [vmem:[#allocation2 + $0x78] sm:$0xff] %v689
      %714 = vst [vmem:[#allocation2 + $0x80] sm:$0xff] %v690
      %715 = vst [vmem:[#allocation2 + $0x88] sm:$0xff] %v691
      %716 = vst [vmem:[#allocation2 + $0x90] sm:$0xff] %v692
      %717 = vst [vmem:[#allocation2 + $0x98] sm:$0xff] %v693
      %718 = vst [vmem:[#allocation2 + $0xa0] sm:$0xff] %v694
      %719 = vst [vmem:[#allocation2 + $0xa8] sm:$0xff] %v695
      %720 = vst [vmem:[#allocation2 + $0xb0] sm:$0xff] %v696
      %721 = vst [vmem:[#allocation2 + $0xb8] sm:$0xff] %v697
      // Predicated region
      $region49: #{mp_encoder_forward.6} parent=43 // pred_check
        %p722 = pneg %p343
      $region50: #{mp_encoder_forward.6} parent=43 // pred_check_branch
        %724 = sbr.rel (%p722) target = $region52
      $region51: #{mp_encoder_forward.6} parent=43 // pred_region
        %v725 = vld [vmem:[#allocation2] sm:$0xff]
        %v726 = vld [vmem:[#allocation2 + $0x8] sm:$0xff]
        %v727 = vld [vmem:[#allocation2 + $0x10] sm:$0xff]
        %v728 = vld [vmem:[#allocation2 + $0x18] sm:$0xff]
        %v729 = vld [vmem:[#allocation2 + $0x20] sm:$0xff]
        %v730 = vld [vmem:[#allocation2 + $0x28] sm:$0xff]
        %v731 = vld [vmem:[#allocation2 + $0x30] sm:$0xff]
        %v732 = vld [vmem:[#allocation2 + $0x38] sm:$0xff]
        %v733 = vld [vmem:[#allocation2 + $0x40] sm:$0xff]
        %v734 = vld [vmem:[#allocation2 + $0x48] sm:$0xff]
        %v735 = vld [vmem:[#allocation2 + $0x50] sm:$0xff]
        %v736 = vld [vmem:[#allocation2 + $0x58] sm:$0xff]
        %v737 = vld [vmem:[#allocation2 + $0x60] sm:$0xff]
        %v738 = vld [vmem:[#allocation2 + $0x68] sm:$0xff]
        %v739 = vld [vmem:[#allocation2 + $0x70] sm:$0xff]
        %v740 = vld [vmem:[#allocation2 + $0x78] sm:$0xff]
        %v741 = vld [vmem:[#allocation2 + $0x80] sm:$0xff]
        %v742 = vld [vmem:[#allocation2 + $0x88] sm:$0xff]
        %v743 = vld [vmem:[#allocation2 + $0x90] sm:$0xff]
        %v744 = vld [vmem:[#allocation2 + $0x98] sm:$0xff]
        %v745 = vld [vmem:[#allocation2 + $0xa0] sm:$0xff]
        %v746 = vld [vmem:[#allocation2 + $0xa8] sm:$0xff]
        %v747 = vld [vmem:[#allocation2 + $0xb0] sm:$0xff]
        %v748 = vld [vmem:[#allocation2 + $0xb8] sm:$0xff]
        %v749 = vld [vmem:[%s2] sm:$0x7]
        %v751 = vperm.slane %v749, 0
        %v752 = vperm.slane %v749, 1
        %v753 = vperm.slane %v749, 2
        %v757 = vadd.f32 %v725, %v751
        %v758 = vadd.f32 %v726, %v752
        %v759 = vadd.f32 %v727, %v753
        %v760 = vadd.f32 %v728, %v751
        %v761 = vadd.f32 %v729, %v752
        %v762 = vadd.f32 %v730, %v753
        %v763 = vadd.f32 %v731, %v751
        %v764 = vadd.f32 %v732, %v752
        %v765 = vadd.f32 %v733, %v753
        %v766 = vadd.f32 %v734, %v751
        %v767 = vadd.f32 %v735, %v752
        %v768 = vadd.f32 %v736, %v753
        %v769 = vadd.f32 %v737, %v751
        %v770 = vadd.f32 %v738, %v752
        %v771 = vadd.f32 %v739, %v753
        %v772 = vadd.f32 %v740, %v751
        %v773 = vadd.f32 %v741, %v752
        %v774 = vadd.f32 %v742, %v753
        %v775 = vadd.f32 %v743, %v751
        %v776 = vadd.f32 %v744, %v752
        %v777 = vadd.f32 %v745, %v753
        %v778 = vadd.f32 %v746, %v751
        %v779 = vadd.f32 %v747, %v752
        %v780 = vadd.f32 %v748, %v753
        %vm781 = vcmp.gt.f32.partialorder %v757, 0.0
        %vm782 = vcmp.gt.f32.partialorder %v758, 0.0
        %vm783 = vcmp.gt.f32.partialorder %v759, 0.0
        %vm784 = vcmp.gt.f32.partialorder %v760, 0.0
        %vm785 = vcmp.gt.f32.partialorder %v761, 0.0
        %vm786 = vcmp.gt.f32.partialorder %v762, 0.0
        %vm787 = vcmp.gt.f32.partialorder %v763, 0.0
        %vm788 = vcmp.gt.f32.partialorder %v764, 0.0
        %vm789 = vcmp.gt.f32.partialorder %v765, 0.0
        %vm790 = vcmp.gt.f32.partialorder %v766, 0.0
        %vm791 = vcmp.gt.f32.partialorder %v767, 0.0
        %vm792 = vcmp.gt.f32.partialorder %v768, 0.0
        %vm793 = vcmp.gt.f32.partialorder %v769, 0.0
        %vm794 = vcmp.gt.f32.partialorder %v770, 0.0
        %vm795 = vcmp.gt.f32.partialorder %v771, 0.0
        %vm796 = vcmp.gt.f32.partialorder %v772, 0.0
        %vm797 = vcmp.gt.f32.partialorder %v773, 0.0
        %vm798 = vcmp.gt.f32.partialorder %v774, 0.0
        %vm799 = vcmp.gt.f32.partialorder %v775, 0.0
        %vm800 = vcmp.gt.f32.partialorder %v776, 0.0
        %vm801 = vcmp.gt.f32.partialorder %v777, 0.0
        %vm802 = vcmp.gt.f32.partialorder %v778, 0.0
        %vm803 = vcmp.gt.f32.partialorder %v779, 0.0
        %vm804 = vcmp.gt.f32.partialorder %v780, 0.0
        %v805 = vld [vmem:[%s3] sm:$0x7]
        %v807 = vperm.slane %v805, 0
        %v808 = vperm.slane %v805, 1
        %v809 = vperm.slane %v805, 2
        %v813 = vmul.f32 %v807, %v757
        %v814 = vmul.f32 %v808, %v758
        %v815 = vmul.f32 %v809, %v759
        %v816 = vmul.f32 %v807, %v760
        %v817 = vmul.f32 %v808, %v761
        %v818 = vmul.f32 %v809, %v762
        %v819 = vmul.f32 %v807, %v763
        %v820 = vmul.f32 %v808, %v764
        %v821 = vmul.f32 %v809, %v765
        %v822 = vmul.f32 %v807, %v766
        %v823 = vmul.f32 %v808, %v767
        %v824 = vmul.f32 %v809, %v768
        %v825 = vmul.f32 %v807, %v769
        %v826 = vmul.f32 %v808, %v770
        %v827 = vmul.f32 %v809, %v771
        %v828 = vmul.f32 %v807, %v772
        %v829 = vmul.f32 %v808, %v773
        %v830 = vmul.f32 %v809, %v774
        %v831 = vmul.f32 %v807, %v775
        %v832 = vmul.f32 %v808, %v776
        %v833 = vmul.f32 %v809, %v777
        %v834 = vmul.f32 %v807, %v778
        %v835 = vmul.f32 %v808, %v779
        %v836 = vmul.f32 %v809, %v780
        %v837 = vsel %vm781, %v757, %v813
        %v838 = vsel %vm782, %v758, %v814
        %v839 = vsel %vm783, %v759, %v815
        %v840 = vsel %vm784, %v760, %v816
        %v841 = vsel %vm785, %v761, %v817
        %v842 = vsel %vm786, %v762, %v818
        %v843 = vsel %vm787, %v763, %v819
        %v844 = vsel %vm788, %v764, %v820
        %v845 = vsel %vm789, %v765, %v821
        %v846 = vsel %vm790, %v766, %v822
        %v847 = vsel %vm791, %v767, %v823
        %v848 = vsel %vm792, %v768, %v824
        %v849 = vsel %vm793, %v769, %v825
        %v850 = vsel %vm794, %v770, %v826
        %v851 = vsel %vm795, %v771, %v827
        %v852 = vsel %vm796, %v772, %v828
        %v853 = vsel %vm797, %v773, %v829
        %v854 = vsel %vm798, %v774, %v830
        %v855 = vsel %vm799, %v775, %v831
        %v856 = vsel %vm800, %v776, %v832
        %v857 = vsel %vm801, %v777, %v833
        %v858 = vsel %vm802, %v778, %v834
        %v859 = vsel %vm803, %v779, %v835
        %v860 = vsel %vm804, %v780, %v836
        %v861 = vpack.c.bf16 %v838, %v837
        %v862 = vpack.c.bf16 %v839, %v839
        %v863 = vpack.c.bf16 %v841, %v840
        %v864 = vpack.c.bf16 %v842, %v842
        %v865 = vpack.c.bf16 %v844, %v843
        %v866 = vpack.c.bf16 %v845, %v845
        %v867 = vpack.c.bf16 %v847, %v846
        %v868 = vpack.c.bf16 %v848, %v848
        %v869 = vpack.c.bf16 %v850, %v849
        %v870 = vpack.c.bf16 %v851, %v851
        %v871 = vpack.c.bf16 %v853, %v852
        %v872 = vpack.c.bf16 %v854, %v854
        %v873 = vpack.c.bf16 %v856, %v855
        %v874 = vpack.c.bf16 %v857, %v857
        %v875 = vpack.c.bf16 %v859, %v858
        %v876 = vpack.c.bf16 %v860, %v860
        %877 = vst [vmem:[%s337] sm:$0xff] %v861
        %878 = vst [vmem:[%s337 + $0x8] sm:$0xf] %v862
        %879 = vst [vmem:[%s337 + $0xc] sm:$0xff] %v863
        %880 = vst [vmem:[%s337 + $0x14] sm:$0xf] %v864
        %881 = vst [vmem:[%s337 + $0x18] sm:$0xff] %v865
        %882 = vst [vmem:[%s337 + $0x20] sm:$0xf] %v866
        %883 = vst [vmem:[%s337 + $0x24] sm:$0xff] %v867
        %884 = vst [vmem:[%s337 + $0x2c] sm:$0xf] %v868
        %885 = vst [vmem:[%s337 + $0x30] sm:$0xff] %v869
        %886 = vst [vmem:[%s337 + $0x38] sm:$0xf] %v870
        %887 = vst [vmem:[%s337 + $0x3c] sm:$0xff] %v871
        %888 = vst [vmem:[%s337 + $0x44] sm:$0xf] %v872
        %889 = vst [vmem:[%s337 + $0x48] sm:$0xff] %v873
        %890 = vst [vmem:[%s337 + $0x50] sm:$0xf] %v874
        %891 = vst [vmem:[%s337 + $0x54] sm:$0xff] %v875
        %892 = vst [vmem:[%s337 + $0x5c] sm:$0xf] %v876
        %s893 = smul.u32 %s23, 64
        %v894 = vlaneseq
        %v895 = vshrl.u32 %v894, 7
        %v896 = vadd.s32 %v895, 8
        %v897 = vadd.s32 %v895, 16
        %v898 = vadd.s32 %v895, 24
        %v899 = vadd.s32 %v895, 32
        %v900 = vadd.s32 %v895, 40
        %v901 = vadd.s32 %v895, 48
        %v902 = vadd.s32 %v895, 56
        %v903 = vstv %s893
        %v904 = vadd.s32 %v903, %v895
        %v905 = vadd.s32 %v903, %v896
        %v906 = vadd.s32 %v903, %v897
        %v907 = vadd.s32 %v903, %v898
        %v908 = vadd.s32 %v903, %v899
        %v909 = vadd.s32 %v903, %v900
        %v910 = vadd.s32 %v903, %v901
        %v911 = vadd.s32 %v903, %v902
        %vm912 = vcmp.lt.s32.totalorder %v904, 16
        %vm913 = vcmp.lt.s32.totalorder %v905, 16
        %vm914 = vcmp.lt.s32.totalorder %v906, 16
        %vm915 = vcmp.lt.s32.totalorder %v907, 16
        %vm916 = vcmp.lt.s32.totalorder %v908, 16
        %vm917 = vcmp.lt.s32.totalorder %v909, 16
        %vm918 = vcmp.lt.s32.totalorder %v910, 16
        %vm919 = vcmp.lt.s32.totalorder %v911, 16
        %v920 = vpack.c.bf16 %v840, %v837
        %v921 = vpack.c.bf16 %v846, %v843
        %v922 = vpack.c.bf16 %v852, %v849
        %v923 = vpack.c.bf16 %v858, %v855
        %v924 = vld [vmem:[%s4] sm:$0xf]
        %v925 = vld [vmem:[%s4 + $0x4] sm:$0xf]
        %v926 = vld [vmem:[%s4 + $0x8] sm:$0xf]
        %v927 = vld [vmem:[%s4 + $0xc] sm:$0xf]
        %v928 = vld [vmem:[%s4 + $0x10] sm:$0xf]
        %v929 = vld [vmem:[%s4 + $0x14] sm:$0xf]
        %v930 = vld [vmem:[%s4 + $0x18] sm:$0xf]
        %v931 = vld [vmem:[%s4 + $0x1c] sm:$0xf]
        %v932 = vld [vmem:[%s4 + $0x20] sm:$0xf]
        %v933 = vld [vmem:[%s4 + $0x24] sm:$0xf]
        %v934 = vld [vmem:[%s4 + $0x28] sm:$0xf]
        %v935 = vld [vmem:[%s4 + $0x2c] sm:$0xf]
        %v936 = vld [vmem:[%s4 + $0x30] sm:$0xf]
        %v937 = vld [vmem:[%s4 + $0x34] sm:$0xf]
        %v938 = vld [vmem:[%s4 + $0x38] sm:$0xf]
        %v939 = vld [vmem:[%s4 + $0x3c] sm:$0xf]
        %v940 = vld [vmem:[%s5] sm:$0x1]
        %v942 = vperm.slane %v940, 0
        %v960 = vunpack.c.l.b16 %v924
        %v961 = vunpack.c.l.b16 %v925
        %v962 = vunpack.c.l.b16 %v926
        %v963 = vunpack.c.l.b16 %v927
        %v964 = vunpack.c.l.b16 %v928
        %v965 = vunpack.c.l.b16 %v929
        %v966 = vunpack.c.l.b16 %v930
        %v967 = vunpack.c.l.b16 %v931
        %v968 = vunpack.c.l.b16 %v932
        %v969 = vunpack.c.l.b16 %v933
        %v970 = vunpack.c.l.b16 %v934
        %v971 = vunpack.c.l.b16 %v935
        %v972 = vunpack.c.l.b16 %v936
        %v973 = vunpack.c.l.b16 %v937
        %v974 = vunpack.c.l.b16 %v938
        %v975 = vunpack.c.l.b16 %v939
        %v976 = vpack.c.b16 %v961, %v960
        %v977 = vpack.c.b16 %v963, %v962
        %v978 = vpack.c.b16 %v965, %v964
        %v979 = vpack.c.b16 %v967, %v966
        %v980 = vpack.c.b16 %v969, %v968
        %v981 = vpack.c.b16 %v971, %v970
        %v982 = vpack.c.b16 %v973, %v972
        %v983 = vpack.c.b16 %v975, %v974
        %992 = vmatpush.bf16.msra.mxu0 %v983
        %993 = vmatpush.bf16.msra.mxu0 %v982
        %994 = vmatpush.bf16.msra.mxu0 %v981
        %995 = vmatpush.bf16.msra.mxu0 %v980
        %996 = vmatpush.bf16.msra.mxu0 %v979
        %997 = vmatpush.bf16.msra.mxu0 %v978
        %998 = vmatpush.bf16.msra.mxu0 %v977
        %999 = vmatpush.bf16.msra.mxu0 %v976
        %1000 = vmatmul.bf16.gmra.mxu0 %v920
        %v1001 = vpop.f32.mrf.mxu0
        %v1002 = vadd.f32 %v942, %v1001
        %v1003 = vpop.f32.mrf.mxu0
        %v1004 = vadd.f32 %v942, %v1003
        %1005 = vmatmul.bf16.gmra.mxu0 %v921
        %v1006 = vpop.f32.mrf.mxu0
        %v1007 = vadd.f32 %v942, %v1006
        %v1008 = vpop.f32.mrf.mxu0
        %v1009 = vadd.f32 %v942, %v1008
        %1010 = vmatmul.bf16.gmra.mxu0 %v922
        %v1011 = vpop.f32.mrf.mxu0
        %v1012 = vadd.f32 %v942, %v1011
        %v1013 = vpop.f32.mrf.mxu0
        %v1014 = vadd.f32 %v942, %v1013
        %1015 = vmatmul.bf16.gmra.mxu0 %v923
        %v1016 = vpop.f32.mrf.mxu0
        %v1017 = vadd.f32 %v942, %v1016
        %v1018 = vpop.f32.mrf.mxu0
        %v1019 = vadd.f32 %v942, %v1018
        %1020 = vdwg.mxu0
        %v1021 = vtanh.pop %v1002
        %v1022 = vtanh.pop %v1004
        %v1023 = vtanh.pop %v1007
        %v1024 = vtanh.pop %v1009
        %v1025 = vtanh.pop %v1012
        %v1026 = vtanh.pop %v1014
        %v1027 = vtanh.pop %v1017
        %v1028 = vtanh.pop %v1019
        %v1029 = vsel %vm912, %v1021, 0.0
        %v1030 = vsel %vm913, %v1022, 0.0
        %v1031 = vsel %vm914, %v1023, 0.0
        %v1032 = vsel %vm915, %v1024, 0.0
        %v1033 = vsel %vm916, %v1025, 0.0
        %v1034 = vsel %vm917, %v1026, 0.0
        %v1035 = vsel %vm918, %v1027, 0.0
        %v1036 = vsel %vm919, %v1028, 0.0
        %v1037 = vadd.f32 %v1029, %v1030
        %v1038 = vadd.f32 %v1037, %v1031
        %v1039 = vadd.f32 %v1038, %v1032
        %v1040 = vadd.f32 %v1039, %v1033
        %v1041 = vadd.f32 %v1040, %v1034
        %v1042 = vadd.f32 %v1041, %v1035
        %v1043 = vadd.f32 %v1042, %v1036
        %v1044 = vrot.slane %v1043, 4
        %v1045 = vadd.f32 %v1043, %v1044
        %v1046 = vrot.slane %v1045, 2
        %v1047 = vadd.f32 %v1045, %v1046
        %v1048 = vrot.slane %v1047, 1
        %v1049 = vadd.f32 %v1047, %v1048
        %v1050 = vpack.c.bf16 %v841, %v838
        %v1051 = vpack.c.bf16 %v847, %v844
        %v1052 = vpack.c.bf16 %v853, %v850
        %v1053 = vpack.c.bf16 %v859, %v856
        %1054 = vmatpush.bf16.msra.mxu0 %v983
        %1055 = vmatpush.bf16.msra.mxu0 %v982
        %1056 = vmatpush.bf16.msra.mxu0 %v981
        %1057 = vmatpush.bf16.msra.mxu0 %v980
        %1058 = vmatpush.bf16.msra.mxu0 %v979
        %1059 = vmatpush.bf16.msra.mxu0 %v978
        %1060 = vmatpush.bf16.msra.mxu0 %v977
        %1061 = vmatpush.bf16.msra.mxu0 %v976
        %1062 = vmatmul.bf16.gmra.mxu0 %v1050
        %v1063 = vpop.f32.mrf.mxu0
        %v1064 = vadd.f32 %v942, %v1063
        %v1065 = vpop.f32.mrf.mxu0
        %v1066 = vadd.f32 %v942, %v1065
        %1067 = vmatmul.bf16.gmra.mxu0 %v1051
        %v1068 = vpop.f32.mrf.mxu0
        %v1069 = vadd.f32 %v942, %v1068
        %v1070 = vpop.f32.mrf.mxu0
        %v1071 = vadd.f32 %v942, %v1070
        %1072 = vmatmul.bf16.gmra.mxu0 %v1052
        %v1073 = vpop.f32.mrf.mxu0
        %v1074 = vadd.f32 %v942, %v1073
        %v1075 = vpop.f32.mrf.mxu0
        %v1076 = vadd.f32 %v942, %v1075
        %1077 = vmatmul.bf16.gmra.mxu0 %v1053
        %v1078 = vpop.f32.mrf.mxu0
        %v1079 = vadd.f32 %v942, %v1078
        %v1080 = vpop.f32.mrf.mxu0
        %v1081 = vadd.f32 %v942, %v1080
        %1082 = vdwg.mxu0
        %v1083 = vtanh.pop %v1064
        %v1084 = vtanh.pop %v1066
        %v1085 = vtanh.pop %v1069
        %v1086 = vtanh.pop %v1071
        %v1087 = vtanh.pop %v1074
        %v1088 = vtanh.pop %v1076
        %v1089 = vtanh.pop %v1079
        %v1090 = vtanh.pop %v1081
        %v1091 = vsel %vm912, %v1083, 0.0
        %v1092 = vsel %vm913, %v1084, 0.0
        %v1093 = vsel %vm914, %v1085, 0.0
        %v1094 = vsel %vm915, %v1086, 0.0
        %v1095 = vsel %vm916, %v1087, 0.0
        %v1096 = vsel %vm917, %v1088, 0.0
        %v1097 = vsel %vm918, %v1089, 0.0
        %v1098 = vsel %vm919, %v1090, 0.0
        %v1099 = vadd.f32 %v1091, %v1092
        %v1100 = vadd.f32 %v1099, %v1093
        %v1101 = vadd.f32 %v1100, %v1094
        %v1102 = vadd.f32 %v1101, %v1095
        %v1103 = vadd.f32 %v1102, %v1096
        %v1104 = vadd.f32 %v1103, %v1097
        %v1105 = vadd.f32 %v1104, %v1098
        %v1106 = vrot.slane %v1105, 4
        %v1107 = vadd.f32 %v1105, %v1106
        %v1108 = vrot.slane %v1107, 2
        %v1109 = vadd.f32 %v1107, %v1108
        %v1110 = vrot.slane %v1109, 1
        %v1111 = vadd.f32 %v1109, %v1110
        %v1112 = vpack.c.bf16 %v842, %v839
        %v1113 = vpack.c.bf16 %v848, %v845
        %v1114 = vpack.c.bf16 %v854, %v851
        %v1115 = vpack.c.bf16 %v860, %v857
        %1116 = vmatpush.bf16.msra.mxu0 %v983
        %1117 = vmatpush.bf16.msra.mxu0 %v982
        %1118 = vmatpush.bf16.msra.mxu0 %v981
        %1119 = vmatpush.bf16.msra.mxu0 %v980
        %1120 = vmatpush.bf16.msra.mxu0 %v979
        %1121 = vmatpush.bf16.msra.mxu0 %v978
        %1122 = vmatpush.bf16.msra.mxu0 %v977
        %1123 = vmatpush.bf16.msra.mxu0 %v976
        %1124 = vmatmul.bf16.gmra.mxu0 %v1112
        %v1125 = vpop.f32.mrf.mxu0
        %v1126 = vadd.f32 %v942, %v1125
        %v1127 = vpop.f32.mrf.mxu0
        %v1128 = vadd.f32 %v942, %v1127
        %1129 = vmatmul.bf16.gmra.mxu0 %v1113
        %v1130 = vpop.f32.mrf.mxu0
        %v1131 = vadd.f32 %v942, %v1130
        %v1132 = vpop.f32.mrf.mxu0
        %v1133 = vadd.f32 %v942, %v1132
        %1134 = vmatmul.bf16.gmra.mxu0 %v1114
        %v1135 = vpop.f32.mrf.mxu0
        %v1136 = vadd.f32 %v942, %v1135
        %v1137 = vpop.f32.mrf.mxu0
        %v1138 = vadd.f32 %v942, %v1137
        %1139 = vmatmul.bf16.gmra.mxu0 %v1115
        %v1140 = vpop.f32.mrf.mxu0
        %v1141 = vadd.f32 %v942, %v1140
        %v1142 = vpop.f32.mrf.mxu0
        %v1143 = vadd.f32 %v942, %v1142
        %1144 = vdwg.mxu0
        %v1145 = vtanh.pop %v1126
        %v1146 = vtanh.pop %v1128
        %v1147 = vtanh.pop %v1131
        %v1148 = vtanh.pop %v1133
        %v1149 = vtanh.pop %v1136
        %v1150 = vtanh.pop %v1138
        %v1151 = vtanh.pop %v1141
        %v1152 = vtanh.pop %v1143
        %v1153 = vsel %vm912, %v1145, 0.0
        %v1154 = vsel %vm913, %v1146, 0.0
        %v1155 = vsel %vm914, %v1147, 0.0
        %v1156 = vsel %vm915, %v1148, 0.0
        %v1157 = vsel %vm916, %v1149, 0.0
        %v1158 = vsel %vm917, %v1150, 0.0
        %v1159 = vsel %vm918, %v1151, 0.0
        %v1160 = vsel %vm919, %v1152, 0.0
        %v1161 = vadd.f32 %v1153, %v1154
        %v1162 = vadd.f32 %v1161, %v1155
        %v1163 = vadd.f32 %v1162, %v1156
        %v1164 = vadd.f32 %v1163, %v1157
        %v1165 = vadd.f32 %v1164, %v1158
        %v1166 = vadd.f32 %v1165, %v1159
        %v1167 = vadd.f32 %v1166, %v1160
        %v1168 = vrot.slane %v1167, 4
        %v1169 = vadd.f32 %v1167, %v1168
        %v1170 = vrot.slane %v1169, 2
        %v1171 = vadd.f32 %v1169, %v1170
        %v1172 = vrot.slane %v1171, 1
        %v1173 = vadd.f32 %v1171, %v1172
        %v1177 = vrot.slane %v1111, 7
        %v1178 = vrot.slane %v1173, 6
        %vm1179 = vcmask 1040384
        %v1180 = vsel %vm1179, %v1049, %v1177
        %vm1181 = vcmask 1041408
        %v1182 = vsel %vm1181, %v1180, %v1178
        %v1184 = vlaneseq
        %vm1185 = vcmp.ge.s32.totalorder %v1184, 0
        %vm1186 = vcmp.lt.s32.totalorder %v1184, 384
        %vm1187 = vmand %vm1185, %vm1186
        %1188 = vst.msk [vmem:[%s342] sm:$0x7] %vm1187, %v1182
      $region52: #{mp_encoder_forward.6} parent=43 // pred_fallthru
        _
      %s1189 = smul.u32 8, %s23
      %p1190 = scmp.lt.s32.totalorder %s1189, 15
      %s1191 = scalar_select %p1190, %s1189, 15
      %s1192 = smul.addr %s1191, 3
      %s1193 = smul.addr %s1192, 4
      %s1194 = scalar_lea.vmem %s6, %s1193
      %p1195 = scmp.lt.s32.totalorder %s23, 1
      %s1196 = scalar_select %p1195, %s23, 1
      %s1197 = smul.addr %s1196, 3
      %s1198 = scalar_lea.vmem %s7, %s1197
      // Predicated region
      $region53: #{mp_encoder_forward.6} parent=43 // pred_check
        %p1199 = pneg %p187
      $region54: #{mp_encoder_forward.6} parent=43 // pred_check_branch
        %1201 = sbr.rel (%p1199) target = $region56
      $region55: #{mp_encoder_forward.6} parent=43 // pred_region
        %s1202 = smul.u32 8, %s23
      $region56: #{mp_encoder_forward.6} parent=43 // pred_fallthru
        _
      // Predicated region
      $region57: #{mp_encoder_forward.6} parent=43 // pred_check
        %p1203 = pneg %p213
      $region58: #{mp_encoder_forward.6} parent=43 // pred_check_branch
        %1205 = sbr.rel (%p1203) target = $region60
      $region59: #{mp_encoder_forward.6} parent=43 // pred_region
        _
      $region60: #{mp_encoder_forward.6} parent=43 // pred_fallthru
        _
    $region44: #{mp_encoder_forward.6} parent=5 // pred_fallthru
      _
    %p1206 = scmp.le.s32.totalorder 2, %s14
    // Predicated region
    $region61: #{mp_encoder_forward.6} parent=5 // pred_check
      %p1207 = pneg %p1206
    $region62: #{mp_encoder_forward.6} parent=5 // pred_check_branch
      %1209 = sbr.rel (%p1207) target = $region64
    $region63: #{mp_encoder_forward.6} parent=5 // pred_region
      %s1210 = ssub.s32 %s14, 2
      // Predicated region
      $region65: #{mp_encoder_forward.6} parent=63 // pred_check
        %p1211 = pneg %p193
      $region66: #{mp_encoder_forward.6} parent=63 // pred_check_branch
        %1213 = sbr.rel (%p1211) target = $region68
      $region67: #{mp_encoder_forward.6} parent=63 // pred_region
        %s1214 = smul.u32 8, %s25
        %p1215 = scmp.lt.s32.totalorder %s1214, 15
        %s1216 = scalar_select %p1215, %s1214, 15
        %s1217 = smul.addr %s1216, 3
        %s1218 = smul.addr %s1217, 4
        %s1219 = scalar_lea.vmem %s6, %s1218
      $region68: #{mp_encoder_forward.6} parent=63 // pred_fallthru
        _
      // Predicated region
      $region69: #{mp_encoder_forward.6} parent=63 // pred_check
        %p1220 = pneg %p219
      $region70: #{mp_encoder_forward.6} parent=63 // pred_check_branch
        %1222 = sbr.rel (%p1220) target = $region72
      $region71: #{mp_encoder_forward.6} parent=63 // pred_region
        %p1223 = scmp.lt.s32.totalorder %s25, 1
        %s1224 = scalar_select %p1223, %s25, 1
        %s1225 = smul.addr %s1224, 3
        %s1226 = scalar_lea.vmem %s7, %s1225
      $region72: #{mp_encoder_forward.6} parent=63 // pred_fallthru
        _
    $region64: #{mp_encoder_forward.6} parent=5 // pred_fallthru
      _
  $region6: #{mp_encoder_forward.6} parent=0 // loop_footer
    %s18 = sadd.s32 1, %s14
  $region7: #{mp_encoder_forward.6} parent=0 // loop_footer_branch
    %13 = sbr.rel target = $region3
  $region8: #{mp_encoder_forward.6} parent=0 // loop_exit
    _

// kernel: mp_encoder_forward.4
$region0: #{mp_encoder_forward.4}
  #allocation0 [shape = 'u32[]', space=smem, size = 0x4, offset = 0x4, fixed_abs, tag = 'smem constant byte address 0x4 - core index']
  #allocation1 [shape = 'u32[72,128]{1,0:T(1,128)}', space=vmem, size = 0x9000, scoped, tag = 'internal scratch']
  #allocation2 [shape = 'f32[64,768]{1,0:T(8,128)}', space=vmem, size = 0x30000, scoped, tag = 'scratch operand']
  %s0 = inlined_call_operand.vmem [shape: bf16[128,128], index: 0, kind: input, shape index: {}]
  %s1 = inlined_call_operand.vmem [shape: bf16[128,768], index: 1, kind: input, shape index: {}]
  %s2 = inlined_call_operand.vmem [shape: f32[1,768], index: 2, kind: input, shape index: {}]
  %s3 = inlined_call_operand.vmem [shape: f32[1,768], index: 3, kind: input, shape index: {}]
  %s4 = inlined_call_operand.vmem [shape: bf16[128,128], index: 4, kind: input, shape index: {}]
  %s5 = inlined_call_operand.vmem [shape: f32[1,128], index: 5, kind: input, shape index: {}]
  %s6 = inlined_call_operand.vmem [shape: bf16[128,768], index: 6, kind: output, shape index: {0}]
  %s7 = inlined_call_operand.vmem [shape: f32[2,1,768], index: 7, kind: output, shape index: {1}]
  %8 = xla_tuple %s6, %s7
  %s9 = sld [smem:[#allocation0]]
  $region73: #{mp_encoder_forward.4} parent=0
    _
  %s11 = ssub.s32 1, %s9
  %s12 = scalar_select 0, %s11, %s9
  loop: start=0, step=1, limit=4
  $region2: #{mp_encoder_forward.4} parent=0 // loop_pre_header
    _
  $region3: #{mp_encoder_forward.4} parent=0 // loop_header
    %s14 = sphi 0, %s18
    %p15 = scmp.ge.s32.totalorder %s14, 4
    %s21 = sphi 0, %s33
    %s22 = sphi 0, %s29
    %s23 = sphi 0, %s21
    %s24 = sphi 0, %s22
    %s25 = sphi 0, %s23
    %s26 = sphi 0, %s24
    %s38 = sphi 0, %s40
    %s41 = sphi 0, %s38
    %s42 = sphi 0, %s41
    %s58 = sphi 0, %s42
    %s64 = sphi 0, %s66
    %s67 = sphi 0, %s64
    %s68 = sphi 0, %s67
    %s84 = sphi 0, %s68
    %s88 = sphi 0, %s88
    %s90 = sphi 0, %s88
    %s91 = sphi 0, %s90
    %s105 = sphi 0, %s91
    %s109 = sphi 0, %s109
    %s111 = sphi 0, %s109
    %s112 = sphi 0, %s111
    %s126 = sphi 0, %s112
    %s130 = sphi 0, %s130
    %s132 = sphi 0, %s130
    %s133 = sphi 0, %s132
    %s147 = sphi 0, %s133
    %s151 = sphi 0, %s151
    %s153 = sphi 0, %s151
    %s154 = sphi 0, %s153
    %s168 = sphi 0, %s154
    %s174 = sphi 0, %s176
    %s177 = sphi 0, %s174
    %s178 = sphi 0, %s177
    %s194 = sphi 0, %s178
    %s200 = sphi 0, %s202
    %s203 = sphi 0, %s200
    %s204 = sphi 0, %s203
    %s220 = sphi 0, %s204
  $region4: #{mp_encoder_forward.4} parent=0 // loop_header_branch
    %17 = sbr.rel (%p15) target = $region8
  $region5: #{mp_encoder_forward.4} parent=0 // loop_body
    %s19 = ssub.s32 %s14, 1
    %s20 = ssub.s32 %s14, 2
    %s27 = sadd.s32 1, %s22
    %p28 = scmp.ge.s32.totalorder %s27, 1
    %s29 = scalar_select %p28, 0, %s27
    %s30 = sadd.s32 1, %s21
    %s31 = scalar_select %p28, %s30, %s21
    %p32 = scmp.ge.s32.totalorder %s31, 2
    %s33 = scalar_select %p32, 0, %s31
    %s34 = ssub.s32 %s21, %s33
    %s35 = ssub.s32 %s22, %s29
    %s36 = sor.u32 %s34, %s35
    %p37 = scmp.eq.s32.totalorder %s36, 0
    %s39 = sadd.s32 %s38, 1
    %s40 = scalar_select %p37, %s38, %s39
    %p43 = pneg %p37
    %p44 = scmp.eq.s32.totalorder %s14, 1
    %p45 = por %p43, %p44
    %p46 = scmp.ne.s32.totalorder %s38, %s41
    %p47 = scmp.eq.s32.totalorder %s14, 0
    %p48 = por %p46, %p47
    %p49 = scmp.ne.s32.totalorder %s38, %s41
    %p50 = scmp.eq.s32.totalorder %s19, 1
    %p51 = por %p49, %p50
    %p52 = scmp.ne.s32.totalorder %s41, %s42
    %p53 = scmp.eq.s32.totalorder %s19, 0
    %p54 = por %p52, %p53
    %p55 = scmp.ne.s32.totalorder %s41, %s42
    %p56 = scmp.eq.s32.totalorder %s20, 1
    %p57 = por %p55, %p56
    %p59 = scmp.ne.s32.totalorder %s42, %s58
    %p60 = scmp.eq.s32.totalorder %s20, 0
    %p61 = por %p59, %p60
    %s62 = ssub.s32 %s22, %s29
    %p63 = scmp.eq.s32.totalorder %s62, 0
    %s65 = sadd.s32 %s64, 1
    %s66 = scalar_select %p63, %s64, %s65
    %p69 = pneg %p63
    %p70 = scmp.eq.s32.totalorder %s14, 1
    %p71 = por %p69, %p70
    %p72 = scmp.ne.s32.totalorder %s64, %s67
    %p73 = scmp.eq.s32.totalorder %s14, 0
    %p74 = por %p72, %p73
    %p75 = scmp.ne.s32.totalorder %s64, %s67
    %p76 = scmp.eq.s32.totalorder %s19, 1
    %p77 = por %p75, %p76
    %p78 = scmp.ne.s32.totalorder %s67, %s68
    %p79 = scmp.eq.s32.totalorder %s19, 0
    %p80 = por %p78, %p79
    %p81 = scmp.ne.s32.totalorder %s67, %s68
    %p82 = scmp.eq.s32.totalorder %s20, 1
    %p83 = por %p81, %p82
    %p85 = scmp.ne.s32.totalorder %s68, %s84
    %p86 = scmp.eq.s32.totalorder %s20, 0
    %p87 = por %p85, %p86
    %s89 = sadd.s32 %s88, 1
    %p92 = scmp.eq.s32.totalorder %s14, 1
    %p93 = scmp.ne.s32.totalorder %s88, %s90
    %p94 = scmp.eq.s32.totalorder %s14, 0
    %p95 = por %p93, %p94
    %p96 = scmp.ne.s32.totalorder %s88, %s90
    %p97 = scmp.eq.s32.totalorder %s19, 1
    %p98 = por %p96, %p97
    %p99 = scmp.ne.s32.totalorder %s90, %s91
    %p100 = scmp.eq.s32.totalorder %s19, 0
    %p101 = por %p99, %p100
    %p102 = scmp.ne.s32.totalorder %s90, %s91
    %p103 = scmp.eq.s32.totalorder %s20, 1
    %p104 = por %p102, %p103
    %p106 = scmp.ne.s32.totalorder %s91, %s105
    %p107 = scmp.eq.s32.totalorder %s20, 0
    %p108 = por %p106, %p107
    %s110 = sadd.s32 %s109, 1
    %p113 = scmp.eq.s32.totalorder %s14, 1
    %p114 = scmp.ne.s32.totalorder %s109, %s111
    %p115 = scmp.eq.s32.totalorder %s14, 0
    %p116 = por %p114, %p115
    %p117 = scmp.ne.s32.totalorder %s109, %s111
    %p118 = scmp.eq.s32.totalorder %s19, 1
    %p119 = por %p117, %p118
    %p120 = scmp.ne.s32.totalorder %s111, %s112
    %p121 = scmp.eq.s32.totalorder %s19, 0
    %p122 = por %p120, %p121
    %p123 = scmp.ne.s32.totalorder %s111, %s112
    %p124 = scmp.eq.s32.totalorder %s20, 1
    %p125 = por %p123, %p124
    %p127 = scmp.ne.s32.totalorder %s112, %s126
    %p128 = scmp.eq.s32.totalorder %s20, 0
    %p129 = por %p127, %p128
    %s131 = sadd.s32 %s130, 1
    %p134 = scmp.eq.s32.totalorder %s14, 1
    %p135 = scmp.ne.s32.totalorder %s130, %s132
    %p136 = scmp.eq.s32.totalorder %s14, 0
    %p137 = por %p135, %p136
    %p138 = scmp.ne.s32.totalorder %s130, %s132
    %p139 = scmp.eq.s32.totalorder %s19, 1
    %p140 = por %p138, %p139
    %p141 = scmp.ne.s32.totalorder %s132, %s133
    %p142 = scmp.eq.s32.totalorder %s19, 0
    %p143 = por %p141, %p142
    %p144 = scmp.ne.s32.totalorder %s132, %s133
    %p145 = scmp.eq.s32.totalorder %s20, 1
    %p146 = por %p144, %p145
    %p148 = scmp.ne.s32.totalorder %s133, %s147
    %p149 = scmp.eq.s32.totalorder %s20, 0
    %p150 = por %p148, %p149
    %s152 = sadd.s32 %s151, 1
    %p155 = scmp.eq.s32.totalorder %s14, 1
    %p156 = scmp.ne.s32.totalorder %s151, %s153
    %p157 = scmp.eq.s32.totalorder %s14, 0
    %p158 = por %p156, %p157
    %p159 = scmp.ne.s32.totalorder %s151, %s153
    %p160 = scmp.eq.s32.totalorder %s19, 1
    %p161 = por %p159, %p160
    %p162 = scmp.ne.s32.totalorder %s153, %s154
    %p163 = scmp.eq.s32.totalorder %s19, 0
    %p164 = por %p162, %p163
    %p165 = scmp.ne.s32.totalorder %s153, %s154
    %p166 = scmp.eq.s32.totalorder %s20, 1
    %p167 = por %p165, %p166
    %p169 = scmp.ne.s32.totalorder %s154, %s168
    %p170 = scmp.eq.s32.totalorder %s20, 0
    %p171 = por %p169, %p170
    %s172 = ssub.s32 %s21, %s33
    %p173 = scmp.eq.s32.totalorder %s172, 0
    %s175 = sadd.s32 %s174, 1
    %s176 = scalar_select %p173, %s174, %s175
    %p179 = pneg %p173
    %p180 = scmp.eq.s32.totalorder %s14, 1
    %p181 = por %p179, %p180
    %p182 = scmp.ne.s32.totalorder %s174, %s177
    %p183 = scmp.eq.s32.totalorder %s14, 0
    %p184 = por %p182, %p183
    %p185 = scmp.ne.s32.totalorder %s174, %s177
    %p186 = scmp.eq.s32.totalorder %s19, 1
    %p187 = por %p185, %p186
    %p188 = scmp.ne.s32.totalorder %s177, %s178
    %p189 = scmp.eq.s32.totalorder %s19, 0
    %p190 = por %p188, %p189
    %p191 = scmp.ne.s32.totalorder %s177, %s178
    %p192 = scmp.eq.s32.totalorder %s20, 1
    %p193 = por %p191, %p192
    %p195 = scmp.ne.s32.totalorder %s178, %s194
    %p196 = scmp.eq.s32.totalorder %s20, 0
    %p197 = por %p195, %p196
    %s198 = ssub.s32 %s21, %s33
    %p199 = scmp.eq.s32.totalorder %s198, 0
    %s201 = sadd.s32 %s200, 1
    %s202 = scalar_select %p199, %s200, %s201
    %p205 = pneg %p199
    %p206 = scmp.eq.s32.totalorder %s14, 1
    %p207 = por %p205, %p206
    %p208 = scmp.ne.s32.totalorder %s200, %s203
    %p209 = scmp.eq.s32.totalorder %s14, 0
    %p210 = por %p208, %p209
    %p211 = scmp.ne.s32.totalorder %s200, %s203
    %p212 = scmp.eq.s32.totalorder %s19, 1
    %p213 = por %p211, %p212
    %p214 = scmp.ne.s32.totalorder %s203, %s204
    %p215 = scmp.eq.s32.totalorder %s19, 0
    %p216 = por %p214, %p215
    %p217 = scmp.ne.s32.totalorder %s203, %s204
    %p218 = scmp.eq.s32.totalorder %s20, 1
    %p219 = por %p217, %p218
    %p221 = scmp.ne.s32.totalorder %s204, %s220
    %p222 = scmp.eq.s32.totalorder %s20, 0
    %p223 = por %p221, %p222
    %p224 = scmp.le.s32.totalorder 1, %s14
    %p225 = scmp.lt.s32.totalorder %s14, 3
    %p226 = pnand %p224, %p225
    %p227 = pneg %p226
    // Predicated region
    $region9: #{mp_encoder_forward.4} parent=5 // pred_check
      _
    $region10: #{mp_encoder_forward.4} parent=5 // pred_check_branch
      %229 = sbr.rel (%p226) target = $region12
    $region11: #{mp_encoder_forward.4} parent=5 // pred_region
      %s230 = ssub.s32 %s14, 1
      // Predicated region
      $region13: #{mp_encoder_forward.4} parent=11 // pred_check
        %p231 = pneg %p80
      $region14: #{mp_encoder_forward.4} parent=11 // pred_check_branch
        %233 = sbr.rel (%p231) target = $region16
      $region15: #{mp_encoder_forward.4} parent=11 // pred_region
        %s234 = smul.u32 16, %s24
        %p235 = scmp.lt.s32.totalorder %s234, 15
        %s236 = scalar_select %p235, %s234, 15
        %s237 = smul.addr %s236, 6
        %s238 = smul.addr %s237, 4
        %s239 = scalar_lea.vmem %s1, %s238
        %s240 = smul.u32 16, %s24
      $region16: #{mp_encoder_forward.4} parent=11 // pred_fallthru
        _
      // Predicated region
      $region17: #{mp_encoder_forward.4} parent=11 // pred_check
        %p241 = pneg %p101
      $region18: #{mp_encoder_forward.4} parent=11 // pred_check_branch
        %243 = sbr.rel (%p241) target = $region20
      $region19: #{mp_encoder_forward.4} parent=11 // pred_region
        _
      $region20: #{mp_encoder_forward.4} parent=11 // pred_fallthru
        _
      // Predicated region
      $region21: #{mp_encoder_forward.4} parent=11 // pred_check
        %p244 = pneg %p122
      $region22: #{mp_encoder_forward.4} parent=11 // pred_check_branch
        %246 = sbr.rel (%p244) target = $region24
      $region23: #{mp_encoder_forward.4} parent=11 // pred_region
        _
      $region24: #{mp_encoder_forward.4} parent=11 // pred_fallthru
        _
      // Predicated region
      $region25: #{mp_encoder_forward.4} parent=11 // pred_check
        %p247 = pneg %p143
      $region26: #{mp_encoder_forward.4} parent=11 // pred_check_branch
        %249 = sbr.rel (%p247) target = $region28
      $region27: #{mp_encoder_forward.4} parent=11 // pred_region
        _
      $region28: #{mp_encoder_forward.4} parent=11 // pred_fallthru
        _
      // Predicated region
      $region29: #{mp_encoder_forward.4} parent=11 // pred_check
        %p250 = pneg %p164
      $region30: #{mp_encoder_forward.4} parent=11 // pred_check_branch
        %252 = sbr.rel (%p250) target = $region32
      $region31: #{mp_encoder_forward.4} parent=11 // pred_region
        _
      $region32: #{mp_encoder_forward.4} parent=11 // pred_fallthru
        _
    $region12: #{mp_encoder_forward.4} parent=5 // pred_fallthru
      _
    %p253 = scmp.lt.s32.totalorder %s14, 2
    // Predicated region
    $region33: #{mp_encoder_forward.4} parent=5 // pred_check
      %p254 = pneg %p253
    $region34: #{mp_encoder_forward.4} parent=5 // pred_check_branch
      %256 = sbr.rel (%p254) target = $region36
    $region35: #{mp_encoder_forward.4} parent=5 // pred_region
      // Predicated region
      $region37: #{mp_encoder_forward.4} parent=35 // pred_check
        %p257 = pneg %p48
      $region38: #{mp_encoder_forward.4} parent=35 // pred_check_branch
        %259 = sbr.rel (%p257) target = $region40
      $region39: #{mp_encoder_forward.4} parent=35 // pred_region
        %s260 = smul.u32 8, %s21
        %p261 = scmp.lt.s32.totalorder %s260, 15
        %s262 = scalar_select %p261, %s260, 15
        %p263 = scmp.lt.s32.totalorder %s22, 0
        %s264 = scalar_select %p263, %s22, 0
        %s265 = sadd.s32 %s264, %s262
        %s266 = smul.addr %s265, 4
        %s267 = scalar_lea.vmem %s0, %s266
        %s268 = smul.u32 8, %s21
      $region40: #{mp_encoder_forward.4} parent=35 // pred_fallthru
        _
    $region36: #{mp_encoder_forward.4} parent=5 // pred_fallthru
      _
    %p269 = scmp.le.s32.totalorder 1, %s14
    %p270 = scmp.lt.s32.totalorder %s14, 3
    %p271 = pnand %p269, %p270
    %p272 = pneg %p271
    // Predicated region
    $region41: #{mp_encoder_forward.4} parent=5 // pred_check
      _
    $region42: #{mp_encoder_forward.4} parent=5 // pred_check_branch
      %274 = sbr.rel (%p271) target = $region44
    $region43: #{mp_encoder_forward.4} parent=5 // pred_region
      %s275 = ssub.s32 %s14, 1
      %s276 = smul.u32 8, %s23
      %p277 = scmp.lt.s32.totalorder %s276, 15
      %s278 = scalar_select %p277, %s276, 15
      %p279 = scmp.lt.s32.totalorder %s24, 0
      %s280 = scalar_select %p279, %s24, 0
      %s281 = sadd.s32 %s280, %s278
      %s282 = smul.addr %s281, 4
      %s283 = scalar_lea.vmem %s0, %s282
      %p284 = pneg %p54
      %p285 = pneg %p51
      %s286 = smul.u32 16, %s24
      %p287 = scmp.lt.s32.totalorder %s286, 15
      %s288 = scalar_select %p287, %s286, 15
      %s289 = smul.addr %s288, 6
      %s290 = smul.addr %s289, 4
      %s291 = scalar_lea.vmem %s1, %s290
      %p292 = pneg %p80
      %p293 = pneg %p77
      %p294 = pneg %p101
      %p295 = pneg %p98
      %p296 = pneg %p122
      %p297 = pneg %p119
      %p298 = pneg %p143
      %p299 = pneg %p140
      %p300 = pneg %p164
      %p301 = pneg %p161
      %p302 = pneg %p190
      %p303 = pneg %p187
      %s304 = smul.u32 8, %s23
      %p305 = scmp.lt.s32.totalorder %s304, 15
      %s306 = scalar_select %p305, %s304, 15
      %s307 = smul.addr %s306, 6
      %s308 = smul.addr %s307, 4
      %s309 = scalar_lea.vmem %s6, %s308
      %p310 = pneg %p216
      %p311 = pneg %p213
      %p312 = scmp.lt.s32.totalorder %s23, 1
      %s313 = scalar_select %p312, %s23, 1
      %s314 = smul.addr %s313, 6
      %s315 = scalar_lea.vmem %s7, %s314
      %s316 = smul.u32 8, %s23
      %p317 = scmp.lt.s32.totalorder %s316, 15
      %s318 = scalar_select %p317, %s316, 15
      %p319 = scmp.lt.s32.totalorder %s24, 0
      %s320 = scalar_select %p319, %s24, 0
      %s321 = sadd.s32 %s320, %s318
      %s322 = smul.addr %s321, 4
      %s323 = scalar_lea.vmem %s0, %s322
      %s324 = smul.u32 8, %s23
      %s325 = smul.u32 16, %s24
      %p326 = scmp.lt.s32.totalorder %s325, 15
      %s327 = scalar_select %p326, %s325, 15
      %s328 = smul.addr %s327, 6
      %s329 = smul.addr %s328, 4
      %s330 = scalar_lea.vmem %s1, %s329
      %s331 = smul.u32 16, %s24
      %s332 = smul.u32 8, %s23
      %p333 = scmp.lt.s32.totalorder %s332, 15
      %s334 = scalar_select %p333, %s332, 15
      %s335 = smul.addr %s334, 6
      %s336 = smul.addr %s335, 4
      %s337 = scalar_lea.vmem %s6, %s336
      %s338 = smul.u32 8, %s23
      %p339 = scmp.lt.s32.totalorder %s23, 1
      %s340 = scalar_select %p339, %s23, 1
      %s341 = smul.addr %s340, 6
      %s342 = scalar_lea.vmem %s7, %s341
      %p343 = scmp.eq.s32.totalorder %s24, 0
      // Predicated region
      $region45: #{mp_encoder_forward.4} parent=43 // pred_check
        %p344 = pneg %p343
      $region46: #{mp_encoder_forward.4} parent=43 // pred_check_branch
        %346 = sbr.rel (%p344) target = $region48
      $region47: #{mp_encoder_forward.4} parent=43 // pred_region
        %347 = vst [vmem:[#allocation2] sm:$0xff] 0.0
        %348 = vst [vmem:[#allocation2 + $0x8] sm:$0xff] 0.0
        %349 = vst [vmem:[#allocation2 + $0x10] sm:$0xff] 0.0
        %350 = vst [vmem:[#allocation2 + $0x18] sm:$0xff] 0.0
        %351 = vst [vmem:[#allocation2 + $0x20] sm:$0xff] 0.0
        %352 = vst [vmem:[#allocation2 + $0x28] sm:$0xff] 0.0
        %353 = vst [vmem:[#allocation2 + $0x30] sm:$0xff] 0.0
        %354 = vst [vmem:[#allocation2 + $0x38] sm:$0xff] 0.0
        %355 = vst [vmem:[#allocation2 + $0x40] sm:$0xff] 0.0
        %356 = vst [vmem:[#allocation2 + $0x48] sm:$0xff] 0.0
        %357 = vst [vmem:[#allocation2 + $0x50] sm:$0xff] 0.0
        %358 = vst [vmem:[#allocation2 + $0x58] sm:$0xff] 0.0
        %359 = vst [vmem:[#allocation2 + $0x60] sm:$0xff] 0.0
        %360 = vst [vmem:[#allocation2 + $0x68] sm:$0xff] 0.0
        %361 = vst [vmem:[#allocation2 + $0x70] sm:$0xff] 0.0
        %362 = vst [vmem:[#allocation2 + $0x78] sm:$0xff] 0.0
        %363 = vst [vmem:[#allocation2 + $0x80] sm:$0xff] 0.0
        %364 = vst [vmem:[#allocation2 + $0x88] sm:$0xff] 0.0
        %365 = vst [vmem:[#allocation2 + $0x90] sm:$0xff] 0.0
        %366 = vst [vmem:[#allocation2 + $0x98] sm:$0xff] 0.0
        %367 = vst [vmem:[#allocation2 + $0xa0] sm:$0xff] 0.0
        %368 = vst [vmem:[#allocation2 + $0xa8] sm:$0xff] 0.0
        %369 = vst [vmem:[#allocation2 + $0xb0] sm:$0xff] 0.0
        %370 = vst [vmem:[#allocation2 + $0xb8] sm:$0xff] 0.0
        %371 = vst [vmem:[#allocation2 + $0xc0] sm:$0xff] 0.0
        %372 = vst [vmem:[#allocation2 + $0xc8] sm:$0xff] 0.0
        %373 = vst [vmem:[#allocation2 + $0xd0] sm:$0xff] 0.0
        %374 = vst [vmem:[#allocation2 + $0xd8] sm:$0xff] 0.0
        %375 = vst [vmem:[#allocation2 + $0xe0] sm:$0xff] 0.0
        %376 = vst [vmem:[#allocation2 + $0xe8] sm:$0xff] 0.0
        %377 = vst [vmem:[#allocation2 + $0xf0] sm:$0xff] 0.0
        %378 = vst [vmem:[#allocation2 + $0xf8] sm:$0xff] 0.0
        %379 = vst [vmem:[#allocation2 + $0x100] sm:$0xff] 0.0
        %380 = vst [vmem:[#allocation2 + $0x108] sm:$0xff] 0.0
        %381 = vst [vmem:[#allocation2 + $0x110] sm:$0xff] 0.0
        %382 = vst [vmem:[#allocation2 + $0x118] sm:$0xff] 0.0
        %383 = vst [vmem:[#allocation2 + $0x120] sm:$0xff] 0.0
        %384 = vst [vmem:[#allocation2 + $0x128] sm:$0xff] 0.0
        %385 = vst [vmem:[#allocation2 + $0x130] sm:$0xff] 0.0
        %386 = vst [vmem:[#allocation2 + $0x138] sm:$0xff] 0.0
        %387 = vst [vmem:[#allocation2 + $0x140] sm:$0xff] 0.0
        %388 = vst [vmem:[#allocation2 + $0x148] sm:$0xff] 0.0
        %389 = vst [vmem:[#allocation2 + $0x150] sm:$0xff] 0.0
        %390 = vst [vmem:[#allocation2 + $0x158] sm:$0xff] 0.0
        %391 = vst [vmem:[#allocation2 + $0x160] sm:$0xff] 0.0
        %392 = vst [vmem:[#allocation2 + $0x168] sm:$0xff] 0.0
        %393 = vst [vmem:[#allocation2 + $0x170] sm:$0xff] 0.0
        %394 = vst [vmem:[#allocation2 + $0x178] sm:$0xff] 0.0
      $region48: #{mp_encoder_forward.4} parent=43 // pred_fallthru
        _
      %v395 = vld [vmem:[#allocation2] sm:$0xff]
      %v396 = vld [vmem:[#allocation2 + $0x8] sm:$0xff]
      %v397 = vld [vmem:[#allocation2 + $0x10] sm:$0xff]
      %v398 = vld [vmem:[#allocation2 + $0x18] sm:$0xff]
      %v399 = vld [vmem:[#allocation2 + $0x20] sm:$0xff]
      %v400 = vld [vmem:[#allocation2 + $0x28] sm:$0xff]
      %v401 = vld [vmem:[#allocation2 + $0x30] sm:$0xff]
      %v402 = vld [vmem:[#allocation2 + $0x38] sm:$0xff]
      %v403 = vld [vmem:[#allocation2 + $0x40] sm:$0xff]
      %v404 = vld [vmem:[#allocation2 + $0x48] sm:$0xff]
      %v405 = vld [vmem:[#allocation2 + $0x50] sm:$0xff]
      %v406 = vld [vmem:[#allocation2 + $0x58] sm:$0xff]
      %v407 = vld [vmem:[#allocation2 + $0x60] sm:$0xff]
      %v408 = vld [vmem:[#allocation2 + $0x68] sm:$0xff]
      %v409 = vld [vmem:[#allocation2 + $0x70] sm:$0xff]
      %v410 = vld [vmem:[#allocation2 + $0x78] sm:$0xff]
      %v411 = vld [vmem:[#allocation2 + $0x80] sm:$0xff]
      %v412 = vld [vmem:[#allocation2 + $0x88] sm:$0xff]
      %v413 = vld [vmem:[#allocation2 + $0x90] sm:$0xff]
      %v414 = vld [vmem:[#allocation2 + $0x98] sm:$0xff]
      %v415 = vld [vmem:[#allocation2 + $0xa0] sm:$0xff]
      %v416 = vld [vmem:[#allocation2 + $0xa8] sm:$0xff]
      %v417 = vld [vmem:[#allocation2 + $0xb0] sm:$0xff]
      %v418 = vld [vmem:[#allocation2 + $0xb8] sm:$0xff]
      %v419 = vld [vmem:[#allocation2 + $0xc0] sm:$0xff]
      %v420 = vld [vmem:[#allocation2 + $0xc8] sm:$0xff]
      %v421 = vld [vmem:[#allocation2 + $0xd0] sm:$0xff]
      %v422 = vld [vmem:[#allocation2 + $0xd8] sm:$0xff]
      %v423 = vld [vmem:[#allocation2 + $0xe0] sm:$0xff]
      %v424 = vld [vmem:[#allocation2 + $0xe8] sm:$0xff]
      %v425 = vld [vmem:[#allocation2 + $0xf0] sm:$0xff]
      %v426 = vld [vmem:[#allocation2 + $0xf8] sm:$0xff]
      %v427 = vld [vmem:[#allocation2 + $0x100] sm:$0xff]
      %v428 = vld [vmem:[#allocation2 + $0x108] sm:$0xff]
      %v429 = vld [vmem:[#allocation2 + $0x110] sm:$0xff]
      %v430 = vld [vmem:[#allocation2 + $0x118] sm:$0xff]
      %v431 = vld [vmem:[#allocation2 + $0x120] sm:$0xff]
      %v432 = vld [vmem:[#allocation2 + $0x128] sm:$0xff]
      %v433 = vld [vmem:[#allocation2 + $0x130] sm:$0xff]
      %v434 = vld [vmem:[#allocation2 + $0x138] sm:$0xff]
      %v435 = vld [vmem:[#allocation2 + $0x140] sm:$0xff]
      %v436 = vld [vmem:[#allocation2 + $0x148] sm:$0xff]
      %v437 = vld [vmem:[#allocation2 + $0x150] sm:$0xff]
      %v438 = vld [vmem:[#allocation2 + $0x158] sm:$0xff]
      %v439 = vld [vmem:[#allocation2 + $0x160] sm:$0xff]
      %v440 = vld [vmem:[#allocation2 + $0x168] sm:$0xff]
      %v441 = vld [vmem:[#allocation2 + $0x170] sm:$0xff]
      %v442 = vld [vmem:[#allocation2 + $0x178] sm:$0xff]
      %v443 = vld [vmem:[%s323] sm:$0xf]
      %v444 = vld [vmem:[%s323 + $0x4] sm:$0xf]
      %v445 = vld [vmem:[%s323 + $0x8] sm:$0xf]
      %v446 = vld [vmem:[%s323 + $0xc] sm:$0xf]
      %v447 = vld [vmem:[%s323 + $0x10] sm:$0xf]
      %v448 = vld [vmem:[%s323 + $0x14] sm:$0xf]
      %v449 = vld [vmem:[%s323 + $0x18] sm:$0xf]
      %v450 = vld [vmem:[%s323 + $0x1c] sm:$0xf]
      %v451 = vld [vmem:[%s330] sm:$0xff]
      %v452 = vld [vmem:[%s330 + $0x8] sm:$0xff]
      %v453 = vld [vmem:[%s330 + $0x10] sm:$0xff]
      %v454 = vld [vmem:[%s330 + $0x18] sm:$0xff]
      %v455 = vld [vmem:[%s330 + $0x20] sm:$0xff]
      %v456 = vld [vmem:[%s330 + $0x28] sm:$0xff]
      %v457 = vld [vmem:[%s330 + $0x30] sm:$0xff]
      %v458 = vld [vmem:[%s330 + $0x38] sm:$0xff]
      %v459 = vld [vmem:[%s330 + $0x40] sm:$0xff]
      %v460 = vld [vmem:[%s330 + $0x48] sm:$0xff]
      %v461 = vld [vmem:[%s330 + $0x50] sm:$0xff]
      %v462 = vld [vmem:[%s330 + $0x58] sm:$0xff]
      %v463 = vld [vmem:[%s330 + $0x60] sm:$0xff]
      %v464 = vld [vmem:[%s330 + $0x68] sm:$0xff]
      %v465 = vld [vmem:[%s330 + $0x70] sm:$0xff]
      %v466 = vld [vmem:[%s330 + $0x78] sm:$0xff]
      %v467 = vld [vmem:[%s330 + $0x80] sm:$0xff]
      %v468 = vld [vmem:[%s330 + $0x88] sm:$0xff]
      %v469 = vld [vmem:[%s330 + $0x90] sm:$0xff]
      %v470 = vld [vmem:[%s330 + $0x98] sm:$0xff]
      %v471 = vld [vmem:[%s330 + $0xa0] sm:$0xff]
      %v472 = vld [vmem:[%s330 + $0xa8] sm:$0xff]
      %v473 = vld [vmem:[%s330 + $0xb0] sm:$0xff]
      %v474 = vld [vmem:[%s330 + $0xb8] sm:$0xff]
      %v475 = vld [vmem:[%s330 + $0xc0] sm:$0xff]
      %v476 = vld [vmem:[%s330 + $0xc8] sm:$0xff]
      %v477 = vld [vmem:[%s330 + $0xd0] sm:$0xff]
      %v478 = vld [vmem:[%s330 + $0xd8] sm:$0xff]
      %v479 = vld [vmem:[%s330 + $0xe0] sm:$0xff]
      %v480 = vld [vmem:[%s330 + $0xe8] sm:$0xff]
      %v481 = vld [vmem:[%s330 + $0xf0] sm:$0xff]
      %v482 = vld [vmem:[%s330 + $0xf8] sm:$0xff]
      %v483 = vld [vmem:[%s330 + $0x100] sm:$0xff]
      %v484 = vld [vmem:[%s330 + $0x108] sm:$0xff]
      %v485 = vld [vmem:[%s330 + $0x110] sm:$0xff]
      %v486 = vld [vmem:[%s330 + $0x118] sm:$0xff]
      %v487 = vld [vmem:[%s330 + $0x120] sm:$0xff]
      %v488 = vld [vmem:[%s330 + $0x128] sm:$0xff]
      %v489 = vld [vmem:[%s330 + $0x130] sm:$0xff]
      %v490 = vld [vmem:[%s330 + $0x138] sm:$0xff]
      %v491 = vld [vmem:[%s330 + $0x140] sm:$0xff]
      %v492 = vld [vmem:[%s330 + $0x148] sm:$0xff]
      %v493 = vld [vmem:[%s330 + $0x150] sm:$0xff]
      %v494 = vld [vmem:[%s330 + $0x158] sm:$0xff]
      %v495 = vld [vmem:[%s330 + $0x160] sm:$0xff]
      %v496 = vld [vmem:[%s330 + $0x168] sm:$0xff]
      %v497 = vld [vmem:[%s330 + $0x170] sm:$0xff]
      %v498 = vld [vmem:[%s330 + $0x178] sm:$0xff]
      %v507 = vunpack.c.l.b16 %v443
      %v508 = vunpack.c.l.b16 %v444
      %v509 = vunpack.c.l.b16 %v445
      %v510 = vunpack.c.l.b16 %v446
      %v511 = vunpack.c.l.b16 %v447
      %v512 = vunpack.c.l.b16 %v448
      %v513 = vunpack.c.l.b16 %v449
      %v514 = vunpack.c.l.b16 %v450
      %v515 = vpack.c.b16 %v508, %v507
      %v516 = vpack.c.b16 %v510, %v509
      %v517 = vpack.c.b16 %v512, %v511
      %v518 = vpack.c.b16 %v514, %v513
      %v571 = vunpack.c.l.b16 %v451
      %v572 = vunpack.c.h.b16 %v451
      %v573 = vunpack.c.l.b16 %v452
      %v574 = vunpack.c.h.b16 %v452
      %v575 = vunpack.c.l.b16 %v453
      %v576 = vunpack.c.h.b16 %v453
      %v577 = vunpack.c.l.b16 %v454
      %v578 = vunpack.c.h.b16 %v454
      %v579 = vunpack.c.l.b16 %v455
      %v580 = vunpack.c.h.b16 %v455
      %v581 = vunpack.c.l.b16 %v456
      %v582 = vunpack.c.h.b16 %v456
      %v583 = vunpack.c.l.b16 %v457
      %v584 = vunpack.c.h.b16 %v457
      %v585 = vunpack.c.l.b16 %v458
      %v586 = vunpack.c.h.b16 %v458
      %v587 = vunpack.c.l.b16 %v459
      %v588 = vunpack.c.h.b16 %v459
      %v589 = vunpack.c.l.b16 %v460
      %v590 = vunpack.c.h.b16 %v460
      %v591 = vunpack.c.l.b16 %v461
      %v592 = vunpack.c.h.b16 %v461
      %v593 = vunpack.c.l.b16 %v462
      %v594 = vunpack.c.h.b16 %v462
      %v595 = vunpack.c.l.b16 %v463
      %v596 = vunpack.c.h.b16 %v463
      %v597 = vunpack.c.l.b16 %v464
      %v598 = vunpack.c.h.b16 %v464
      %v599 = vunpack.c.l.b16 %v465
      %v600 = vunpack.c.h.b16 %v465
      %v601 = vunpack.c.l.b16 %v466
      %v602 = vunpack.c.h.b16 %v466
      %v603 = vunpack.c.l.b16 %v467
      %v604 = vunpack.c.h.b16 %v467
      %v605 = vunpack.c.l.b16 %v468
      %v606 = vunpack.c.h.b16 %v468
      %v607 = vunpack.c.l.b16 %v469
      %v608 = vunpack.c.h.b16 %v469
      %v609 = vunpack.c.l.b16 %v470
      %v610 = vunpack.c.h.b16 %v470
      %v611 = vunpack.c.l.b16 %v471
      %v612 = vunpack.c.h.b16 %v471
      %v613 = vunpack.c.l.b16 %v472
      %v614 = vunpack.c.h.b16 %v472
      %v615 = vunpack.c.l.b16 %v473
      %v616 = vunpack.c.h.b16 %v473
      %v617 = vunpack.c.l.b16 %v474
      %v618 = vunpack.c.h.b16 %v474
      %v619 = vunpack.c.l.b16 %v475
      %v620 = vunpack.c.h.b16 %v475
      %v621 = vunpack.c.l.b16 %v476
      %v622 = vunpack.c.h.b16 %v476
      %v623 = vunpack.c.l.b16 %v477
      %v624 = vunpack.c.h.b16 %v477
      %v625 = vunpack.c.l.b16 %v478
      %v626 = vunpack.c.h.b16 %v478
      %v627 = vunpack.c.l.b16 %v479
      %v628 = vunpack.c.h.b16 %v479
      %v629 = vunpack.c.l.b16 %v480
      %v630 = vunpack.c.h.b16 %v480
      %v631 = vunpack.c.l.b16 %v481
      %v632 = vunpack.c.h.b16 %v481
      %v633 = vunpack.c.l.b16 %v482
      %v634 = vunpack.c.h.b16 %v482
      %v635 = vunpack.c.l.b16 %v483
      %v636 = vunpack.c.h.b16 %v483
      %v637 = vunpack.c.l.b16 %v484
      %v638 = vunpack.c.h.b16 %v484
      %v639 = vunpack.c.l.b16 %v485
      %v640 = vunpack.c.h.b16 %v485
      %v641 = vunpack.c.l.b16 %v486
      %v642 = vunpack.c.h.b16 %v486
      %v643 = vunpack.c.l.b16 %v487
      %v644 = vunpack.c.h.b16 %v487
      %v645 = vunpack.c.l.b16 %v488
      %v646 = vunpack.c.h.b16 %v488
      %v647 = vunpack.c.l.b16 %v489
      %v648 = vunpack.c.h.b16 %v489
      %v649 = vunpack.c.l.b16 %v490
      %v650 = vunpack.c.h.b16 %v490
      %v651 = vunpack.c.l.b16 %v491
      %v652 = vunpack.c.h.b16 %v491
      %v653 = vunpack.c.l.b16 %v492
      %v654 = vunpack.c.h.b16 %v492
      %v655 = vunpack.c.l.b16 %v493
      %v656 = vunpack.c.h.b16 %v493
      %v657 = vunpack.c.l.b16 %v494
      %v658 = vunpack.c.h.b16 %v494
      %v659 = vunpack.c.l.b16 %v495
      %v660 = vunpack.c.h.b16 %v495
      %v661 = vunpack.c.l.b16 %v496
      %v662 = vunpack.c.h.b16 %v496
      %v663 = vunpack.c.l.b16 %v497
      %v664 = vunpack.c.h.b16 %v497
      %v665 = vunpack.c.l.b16 %v498
      %v666 = vunpack.c.h.b16 %v498
      %v667 = vpack.c.b16 %v577, %v571
      %v668 = vpack.c.b16 %v578, %v572
      %v669 = vpack.c.b16 %v579, %v573
      %v670 = vpack.c.b16 %v580, %v574
      %v671 = vpack.c.b16 %v581, %v575
      %v672 = vpack.c.b16 %v582, %v576
      %v673 = vpack.c.b16 %v589, %v583
      %v674 = vpack.c.b16 %v590, %v584
      %v675 = vpack.c.b16 %v591, %v585
      %v676 = vpack.c.b16 %v592, %v586
      %v677 = vpack.c.b16 %v593, %v587
      %v678 = vpack.c.b16 %v594, %v588
      %v679 = vpack.c.b16 %v601, %v595
      %v680 = vpack.c.b16 %v602, %v596
      %v681 = vpack.c.b16 %v603, %v597
      %v682 = vpack.c.b16 %v604, %v598
      %v683 = vpack.c.b16 %v605, %v599
      %v684 = vpack.c.b16 %v606, %v600
      %v685 = vpack.c.b16 %v613, %v607
      %v686 = vpack.c.b16 %v614, %v608
      %v687 = vpack.c.b16 %v615, %v609
      %v688 = vpack.c.b16 %v616, %v610
      %v689 = vpack.c.b16 %v617, %v611
      %v690 = vpack.c.b16 %v618, %v612
      %v691 = vpack.c.b16 %v625, %v619
      %v692 = vpack.c.b16 %v626, %v620
      %v693 = vpack.c.b16 %v627, %v621
      %v694 = vpack.c.b16 %v628, %v622
      %v695 = vpack.c.b16 %v629, %v623
      %v696 = vpack.c.b16 %v630, %v624
      %v697 = vpack.c.b16 %v637, %v631
      %v698 = vpack.c.b16 %v638, %v632
      %v699 = vpack.c.b16 %v639, %v633
      %v700 = vpack.c.b16 %v640, %v634
      %v701 = vpack.c.b16 %v641, %v635
      %v702 = vpack.c.b16 %v642, %v636
      %v703 = vpack.c.b16 %v649, %v643
      %v704 = vpack.c.b16 %v650, %v644
      %v705 = vpack.c.b16 %v651, %v645
      %v706 = vpack.c.b16 %v652, %v646
      %v707 = vpack.c.b16 %v653, %v647
      %v708 = vpack.c.b16 %v654, %v648
      %v709 = vpack.c.b16 %v661, %v655
      %v710 = vpack.c.b16 %v662, %v656
      %v711 = vpack.c.b16 %v663, %v657
      %v712 = vpack.c.b16 %v664, %v658
      %v713 = vpack.c.b16 %v665, %v659
      %v714 = vpack.c.b16 %v666, %v660
      %763 = vmatpush.bf16.msra.mxu0 %v709
      %764 = vmatpush.bf16.msra.mxu0 %v703
      %765 = vmatpush.bf16.msra.mxu0 %v697
      %766 = vmatpush.bf16.msra.mxu0 %v691
      %767 = vmatpush.bf16.msra.mxu0 %v685
      %768 = vmatpush.bf16.msra.mxu0 %v679
      %769 = vmatpush.bf16.msra.mxu0 %v673
      %770 = vmatpush.bf16.msra.mxu0 %v667
      %771 = vmatmul.bf16.gmra.mxu0 %v515
      %v772 = vpop.f32.mrf.mxu0
      %v773 = vadd.f32 0.0, %v772
      %v774 = vpop.f32.mrf.mxu0
      %v775 = vadd.f32 0.0, %v774
      %776 = vmatmul.bf16.gmra.mxu0 %v516
      %v777 = vpop.f32.mrf.mxu0
      %v778 = vadd.f32 0.0, %v777
      %v779 = vpop.f32.mrf.mxu0
      %v780 = vadd.f32 0.0, %v779
      %781 = vmatmul.bf16.gmra.mxu0 %v517
      %v782 = vpop.f32.mrf.mxu0
      %v783 = vadd.f32 0.0, %v782
      %v784 = vpop.f32.mrf.mxu0
      %v785 = vadd.f32 0.0, %v784
      %786 = vmatmul.bf16.gmra.mxu0 %v518
      %v787 = vpop.f32.mrf.mxu0
      %v788 = vadd.f32 0.0, %v787
      %v789 = vpop.f32.mrf.mxu0
      %v790 = vadd.f32 0.0, %v789
      %791 = vdwg.mxu0
      %792 = vmatpush.bf16.msra.mxu0 %v710
      %793 = vmatpush.bf16.msra.mxu0 %v704
      %794 = vmatpush.bf16.msra.mxu0 %v698
      %795 = vmatpush.bf16.msra.mxu0 %v692
      %796 = vmatpush.bf16.msra.mxu0 %v686
      %797 = vmatpush.bf16.msra.mxu0 %v680
      %798 = vmatpush.bf16.msra.mxu0 %v674
      %799 = vmatpush.bf16.msra.mxu0 %v668
      %800 = vmatmul.bf16.gmra.mxu0 %v515
      %v801 = vpop.f32.mrf.mxu0
      %v802 = vadd.f32 0.0, %v801
      %v803 = vpop.f32.mrf.mxu0
      %v804 = vadd.f32 0.0, %v803
      %805 = vmatmul.bf16.gmra.mxu0 %v516
      %v806 = vpop.f32.mrf.mxu0
      %v807 = vadd.f32 0.0, %v806
      %v808 = vpop.f32.mrf.mxu0
      %v809 = vadd.f32 0.0, %v808
      %810 = vmatmul.bf16.gmra.mxu0 %v517
      %v811 = vpop.f32.mrf.mxu0
      %v812 = vadd.f32 0.0, %v811
      %v813 = vpop.f32.mrf.mxu0
      %v814 = vadd.f32 0.0, %v813
      %815 = vmatmul.bf16.gmra.mxu0 %v518
      %v816 = vpop.f32.mrf.mxu0
      %v817 = vadd.f32 0.0, %v816
      %v818 = vpop.f32.mrf.mxu0
      %v819 = vadd.f32 0.0, %v818
      %820 = vdwg.mxu0
      %821 = vmatpush.bf16.msra.mxu0 %v711
      %822 = vmatpush.bf16.msra.mxu0 %v705
      %823 = vmatpush.bf16.msra.mxu0 %v699
      %824 = vmatpush.bf16.msra.mxu0 %v693
      %825 = vmatpush.bf16.msra.mxu0 %v687
      %826 = vmatpush.bf16.msra.mxu0 %v681
      %827 = vmatpush.bf16.msra.mxu0 %v675
      %828 = vmatpush.bf16.msra.mxu0 %v669
      %829 = vmatmul.bf16.gmra.mxu0 %v515
      %v830 = vpop.f32.mrf.mxu0
      %v831 = vadd.f32 0.0, %v830
      %v832 = vpop.f32.mrf.mxu0
      %v833 = vadd.f32 0.0, %v832
      %834 = vmatmul.bf16.gmra.mxu0 %v516
      %v835 = vpop.f32.mrf.mxu0
      %v836 = vadd.f32 0.0, %v835
      %v837 = vpop.f32.mrf.mxu0
      %v838 = vadd.f32 0.0, %v837
      %839 = vmatmul.bf16.gmra.mxu0 %v517
      %v840 = vpop.f32.mrf.mxu0
      %v841 = vadd.f32 0.0, %v840
      %v842 = vpop.f32.mrf.mxu0
      %v843 = vadd.f32 0.0, %v842
      %844 = vmatmul.bf16.gmra.mxu0 %v518
      %v845 = vpop.f32.mrf.mxu0
      %v846 = vadd.f32 0.0, %v845
      %v847 = vpop.f32.mrf.mxu0
      %v848 = vadd.f32 0.0, %v847
      %849 = vdwg.mxu0
      %850 = vmatpush.bf16.msra.mxu0 %v712
      %851 = vmatpush.bf16.msra.mxu0 %v706
      %852 = vmatpush.bf16.msra.mxu0 %v700
      %853 = vmatpush.bf16.msra.mxu0 %v694
      %854 = vmatpush.bf16.msra.mxu0 %v688
      %855 = vmatpush.bf16.msra.mxu0 %v682
      %856 = vmatpush.bf16.msra.mxu0 %v676
      %857 = vmatpush.bf16.msra.mxu0 %v670
      %858 = vmatmul.bf16.gmra.mxu0 %v515
      %v859 = vpop.f32.mrf.mxu0
      %v860 = vadd.f32 0.0, %v859
      %v861 = vpop.f32.mrf.mxu0
      %v862 = vadd.f32 0.0, %v861
      %863 = vmatmul.bf16.gmra.mxu0 %v516
      %v864 = vpop.f32.mrf.mxu0
      %v865 = vadd.f32 0.0, %v864
      %v866 = vpop.f32.mrf.mxu0
      %v867 = vadd.f32 0.0, %v866
      %868 = vmatmul.bf16.gmra.mxu0 %v517
      %v869 = vpop.f32.mrf.mxu0
      %v870 = vadd.f32 0.0, %v869
      %v871 = vpop.f32.mrf.mxu0
      %v872 = vadd.f32 0.0, %v871
      %873 = vmatmul.bf16.gmra.mxu0 %v518
      %v874 = vpop.f32.mrf.mxu0
      %v875 = vadd.f32 0.0, %v874
      %v876 = vpop.f32.mrf.mxu0
      %v877 = vadd.f32 0.0, %v876
      %878 = vdwg.mxu0
      %879 = vmatpush.bf16.msra.mxu0 %v713
      %880 = vmatpush.bf16.msra.mxu0 %v707
      %881 = vmatpush.bf16.msra.mxu0 %v701
      %882 = vmatpush.bf16.msra.mxu0 %v695
      %883 = vmatpush.bf16.msra.mxu0 %v689
      %884 = vmatpush.bf16.msra.mxu0 %v683
      %885 = vmatpush.bf16.msra.mxu0 %v677
      %886 = vmatpush.bf16.msra.mxu0 %v671
      %887 = vmatmul.bf16.gmra.mxu0 %v515
      %v888 = vpop.f32.mrf.mxu0
      %v889 = vadd.f32 0.0, %v888
      %v890 = vpop.f32.mrf.mxu0
      %v891 = vadd.f32 0.0, %v890
      %892 = vmatmul.bf16.gmra.mxu0 %v516
      %v893 = vpop.f32.mrf.mxu0
      %v894 = vadd.f32 0.0, %v893
      %v895 = vpop.f32.mrf.mxu0
      %v896 = vadd.f32 0.0, %v895
      %897 = vmatmul.bf16.gmra.mxu0 %v517
      %v898 = vpop.f32.mrf.mxu0
      %v899 = vadd.f32 0.0, %v898
      %v900 = vpop.f32.mrf.mxu0
      %v901 = vadd.f32 0.0, %v900
      %902 = vmatmul.bf16.gmra.mxu0 %v518
      %v903 = vpop.f32.mrf.mxu0
      %v904 = vadd.f32 0.0, %v903
      %v905 = vpop.f32.mrf.mxu0
      %v906 = vadd.f32 0.0, %v905
      %907 = vdwg.mxu0
      %908 = vmatpush.bf16.msra.mxu0 %v714
      %909 = vmatpush.bf16.msra.mxu0 %v708
      %910 = vmatpush.bf16.msra.mxu0 %v702
      %911 = vmatpush.bf16.msra.mxu0 %v696
      %912 = vmatpush.bf16.msra.mxu0 %v690
      %913 = vmatpush.bf16.msra.mxu0 %v684
      %914 = vmatpush.bf16.msra.mxu0 %v678
      %915 = vmatpush.bf16.msra.mxu0 %v672
      %916 = vmatmul.bf16.gmra.mxu0 %v515
      %v917 = vpop.f32.mrf.mxu0
      %v918 = vadd.f32 0.0, %v917
      %v919 = vpop.f32.mrf.mxu0
      %v920 = vadd.f32 0.0, %v919
      %921 = vmatmul.bf16.gmra.mxu0 %v516
      %v922 = vpop.f32.mrf.mxu0
      %v923 = vadd.f32 0.0, %v922
      %v924 = vpop.f32.mrf.mxu0
      %v925 = vadd.f32 0.0, %v924
      %926 = vmatmul.bf16.gmra.mxu0 %v517
      %v927 = vpop.f32.mrf.mxu0
      %v928 = vadd.f32 0.0, %v927
      %v929 = vpop.f32.mrf.mxu0
      %v930 = vadd.f32 0.0, %v929
      %931 = vmatmul.bf16.gmra.mxu0 %v518
      %v932 = vpop.f32.mrf.mxu0
      %v933 = vadd.f32 0.0, %v932
      %v934 = vpop.f32.mrf.mxu0
      %v935 = vadd.f32 0.0, %v934
      %936 = vdwg.mxu0
      %v937 = vadd.f32 %v395, %v773
      %v938 = vadd.f32 %v396, %v802
      %v939 = vadd.f32 %v397, %v831
      %v940 = vadd.f32 %v398, %v860
      %v941 = vadd.f32 %v399, %v889
      %v942 = vadd.f32 %v400, %v918
      %v943 = vadd.f32 %v401, %v775
      %v944 = vadd.f32 %v402, %v804
      %v945 = vadd.f32 %v403, %v833
      %v946 = vadd.f32 %v404, %v862
      %v947 = vadd.f32 %v405, %v891
      %v948 = vadd.f32 %v406, %v920
      %v949 = vadd.f32 %v407, %v778
      %v950 = vadd.f32 %v408, %v807
      %v951 = vadd.f32 %v409, %v836
      %v952 = vadd.f32 %v410, %v865
      %v953 = vadd.f32 %v411, %v894
      %v954 = vadd.f32 %v412, %v923
      %v955 = vadd.f32 %v413, %v780
      %v956 = vadd.f32 %v414, %v809
      %v957 = vadd.f32 %v415, %v838
      %v958 = vadd.f32 %v416, %v867
      %v959 = vadd.f32 %v417, %v896
      %v960 = vadd.f32 %v418, %v925
      %v961 = vadd.f32 %v419, %v783
      %v962 = vadd.f32 %v420, %v812
      %v963 = vadd.f32 %v421, %v841
      %v964 = vadd.f32 %v422, %v870
      %v965 = vadd.f32 %v423, %v899
      %v966 = vadd.f32 %v424, %v928
      %v967 = vadd.f32 %v425, %v785
      %v968 = vadd.f32 %v426, %v814
      %v969 = vadd.f32 %v427, %v843
      %v970 = vadd.f32 %v428, %v872
      %v971 = vadd.f32 %v429, %v901
      %v972 = vadd.f32 %v430, %v930
      %v973 = vadd.f32 %v431, %v788
      %v974 = vadd.f32 %v432, %v817
      %v975 = vadd.f32 %v433, %v846
      %v976 = vadd.f32 %v434, %v875
      %v977 = vadd.f32 %v435, %v904
      %v978 = vadd.f32 %v436, %v933
      %v979 = vadd.f32 %v437, %v790
      %v980 = vadd.f32 %v438, %v819
      %v981 = vadd.f32 %v439, %v848
      %v982 = vadd.f32 %v440, %v877
      %v983 = vadd.f32 %v441, %v906
      %v984 = vadd.f32 %v442, %v935
      %985 = vst [vmem:[#allocation2] sm:$0xff] %v937
      %986 = vst [vmem:[#allocation2 + $0x8] sm:$0xff] %v938
      %987 = vst [vmem:[#allocation2 + $0x10] sm:$0xff] %v939
      %988 = vst [vmem:[#allocation2 + $0x18] sm:$0xff] %v940
      %989 = vst [vmem:[#allocation2 + $0x20] sm:$0xff] %v941
      %990 = vst [vmem:[#allocation2 + $0x28] sm:$0xff] %v942
      %991 = vst [vmem:[#allocation2 + $0x30] sm:$0xff] %v943
      %992 = vst [vmem:[#allocation2 + $0x38] sm:$0xff] %v944
      %993 = vst [vmem:[#allocation2 + $0x40] sm:$0xff] %v945
      %994 = vst [vmem:[#allocation2 + $0x48] sm:$0xff] %v946
      %995 = vst [vmem:[#allocation2 + $0x50] sm:$0xff] %v947
      %996 = vst [vmem:[#allocation2 + $0x58] sm:$0xff] %v948
      %997 = vst [vmem:[#allocation2 + $0x60] sm:$0xff] %v949
      %998 = vst [vmem:[#allocation2 + $0x68] sm:$0xff] %v950
      %999 = vst [vmem:[#allocation2 + $0x70] sm:$0xff] %v951
      %1000 = vst [vmem:[#allocation2 + $0x78] sm:$0xff] %v952
      %1001 = vst [vmem:[#allocation2 + $0x80] sm:$0xff] %v953
      %1002 = vst [vmem:[#allocation2 + $0x88] sm:$0xff] %v954
      %1003 = vst [vmem:[#allocation2 + $0x90] sm:$0xff] %v955
      %1004 = vst [vmem:[#allocation2 + $0x98] sm:$0xff] %v956
      %1005 = vst [vmem:[#allocation2 + $0xa0] sm:$0xff] %v957
      %1006 = vst [vmem:[#allocation2 + $0xa8] sm:$0xff] %v958
      %1007 = vst [vmem:[#allocation2 + $0xb0] sm:$0xff] %v959
      %1008 = vst [vmem:[#allocation2 + $0xb8] sm:$0xff] %v960
      %1009 = vst [vmem:[#allocation2 + $0xc0] sm:$0xff] %v961
      %1010 = vst [vmem:[#allocation2 + $0xc8] sm:$0xff] %v962
      %1011 = vst [vmem:[#allocation2 + $0xd0] sm:$0xff] %v963
      %1012 = vst [vmem:[#allocation2 + $0xd8] sm:$0xff] %v964
      %1013 = vst [vmem:[#allocation2 + $0xe0] sm:$0xff] %v965
      %1014 = vst [vmem:[#allocation2 + $0xe8] sm:$0xff] %v966
      %1015 = vst [vmem:[#allocation2 + $0xf0] sm:$0xff] %v967
      %1016 = vst [vmem:[#allocation2 + $0xf8] sm:$0xff] %v968
      %1017 = vst [vmem:[#allocation2 + $0x100] sm:$0xff] %v969
      %1018 = vst [vmem:[#allocation2 + $0x108] sm:$0xff] %v970
      %1019 = vst [vmem:[#allocation2 + $0x110] sm:$0xff] %v971
      %1020 = vst [vmem:[#allocation2 + $0x118] sm:$0xff] %v972
      %1021 = vst [vmem:[#allocation2 + $0x120] sm:$0xff] %v973
      %1022 = vst [vmem:[#allocation2 + $0x128] sm:$0xff] %v974
      %1023 = vst [vmem:[#allocation2 + $0x130] sm:$0xff] %v975
      %1024 = vst [vmem:[#allocation2 + $0x138] sm:$0xff] %v976
      %1025 = vst [vmem:[#allocation2 + $0x140] sm:$0xff] %v977
      %1026 = vst [vmem:[#allocation2 + $0x148] sm:$0xff] %v978
      %1027 = vst [vmem:[#allocation2 + $0x150] sm:$0xff] %v979
      %1028 = vst [vmem:[#allocation2 + $0x158] sm:$0xff] %v980
      %1029 = vst [vmem:[#allocation2 + $0x160] sm:$0xff] %v981
      %1030 = vst [vmem:[#allocation2 + $0x168] sm:$0xff] %v982
      %1031 = vst [vmem:[#allocation2 + $0x170] sm:$0xff] %v983
      %1032 = vst [vmem:[#allocation2 + $0x178] sm:$0xff] %v984
      // Predicated region
      $region49: #{mp_encoder_forward.4} parent=43 // pred_check
        %p1033 = pneg %p343
      $region50: #{mp_encoder_forward.4} parent=43 // pred_check_branch
        %1035 = sbr.rel (%p1033) target = $region52
      $region51: #{mp_encoder_forward.4} parent=43 // pred_region
        %v1036 = vld [vmem:[#allocation2] sm:$0xff]
        %v1037 = vld [vmem:[#allocation2 + $0x8] sm:$0xff]
        %v1038 = vld [vmem:[#allocation2 + $0x10] sm:$0xff]
        %v1039 = vld [vmem:[#allocation2 + $0x18] sm:$0xff]
        %v1040 = vld [vmem:[#allocation2 + $0x20] sm:$0xff]
        %v1041 = vld [vmem:[#allocation2 + $0x28] sm:$0xff]
        %v1042 = vld [vmem:[#allocation2 + $0x30] sm:$0xff]
        %v1043 = vld [vmem:[#allocation2 + $0x38] sm:$0xff]
        %v1044 = vld [vmem:[#allocation2 + $0x40] sm:$0xff]
        %v1045 = vld [vmem:[#allocation2 + $0x48] sm:$0xff]
        %v1046 = vld [vmem:[#allocation2 + $0x50] sm:$0xff]
        %v1047 = vld [vmem:[#allocation2 + $0x58] sm:$0xff]
        %v1048 = vld [vmem:[#allocation2 + $0x60] sm:$0xff]
        %v1049 = vld [vmem:[#allocation2 + $0x68] sm:$0xff]
        %v1050 = vld [vmem:[#allocation2 + $0x70] sm:$0xff]
        %v1051 = vld [vmem:[#allocation2 + $0x78] sm:$0xff]
        %v1052 = vld [vmem:[#allocation2 + $0x80] sm:$0xff]
        %v1053 = vld [vmem:[#allocation2 + $0x88] sm:$0xff]
        %v1054 = vld [vmem:[#allocation2 + $0x90] sm:$0xff]
        %v1055 = vld [vmem:[#allocation2 + $0x98] sm:$0xff]
        %v1056 = vld [vmem:[#allocation2 + $0xa0] sm:$0xff]
        %v1057 = vld [vmem:[#allocation2 + $0xa8] sm:$0xff]
        %v1058 = vld [vmem:[#allocation2 + $0xb0] sm:$0xff]
        %v1059 = vld [vmem:[#allocation2 + $0xb8] sm:$0xff]
        %v1060 = vld [vmem:[#allocation2 + $0xc0] sm:$0xff]
        %v1061 = vld [vmem:[#allocation2 + $0xc8] sm:$0xff]
        %v1062 = vld [vmem:[#allocation2 + $0xd0] sm:$0xff]
        %v1063 = vld [vmem:[#allocation2 + $0xd8] sm:$0xff]
        %v1064 = vld [vmem:[#allocation2 + $0xe0] sm:$0xff]
        %v1065 = vld [vmem:[#allocation2 + $0xe8] sm:$0xff]
        %v1066 = vld [vmem:[#allocation2 + $0xf0] sm:$0xff]
        %v1067 = vld [vmem:[#allocation2 + $0xf8] sm:$0xff]
        %v1068 = vld [vmem:[#allocation2 + $0x100] sm:$0xff]
        %v1069 = vld [vmem:[#allocation2 + $0x108] sm:$0xff]
        %v1070 = vld [vmem:[#allocation2 + $0x110] sm:$0xff]
        %v1071 = vld [vmem:[#allocation2 + $0x118] sm:$0xff]
        %v1072 = vld [vmem:[#allocation2 + $0x120] sm:$0xff]
        %v1073 = vld [vmem:[#allocation2 + $0x128] sm:$0xff]
        %v1074 = vld [vmem:[#allocation2 + $0x130] sm:$0xff]
        %v1075 = vld [vmem:[#allocation2 + $0x138] sm:$0xff]
        %v1076 = vld [vmem:[#allocation2 + $0x140] sm:$0xff]
        %v1077 = vld [vmem:[#allocation2 + $0x148] sm:$0xff]
        %v1078 = vld [vmem:[#allocation2 + $0x150] sm:$0xff]
        %v1079 = vld [vmem:[#allocation2 + $0x158] sm:$0xff]
        %v1080 = vld [vmem:[#allocation2 + $0x160] sm:$0xff]
        %v1081 = vld [vmem:[#allocation2 + $0x168] sm:$0xff]
        %v1082 = vld [vmem:[#allocation2 + $0x170] sm:$0xff]
        %v1083 = vld [vmem:[#allocation2 + $0x178] sm:$0xff]
        %v1084 = vld [vmem:[%s2] sm:$0x3f]
        %v1086 = vperm.slane %v1084, 0
        %v1087 = vperm.slane %v1084, 1
        %v1088 = vperm.slane %v1084, 2
        %v1089 = vperm.slane %v1084, 3
        %v1090 = vperm.slane %v1084, 4
        %v1091 = vperm.slane %v1084, 5
        %v1098 = vadd.f32 %v1036, %v1086
        %v1099 = vadd.f32 %v1037, %v1087
        %v1100 = vadd.f32 %v1038, %v1088
        %v1101 = vadd.f32 %v1039, %v1089
        %v1102 = vadd.f32 %v1040, %v1090
        %v1103 = vadd.f32 %v1041, %v1091
        %v1104 = vadd.f32 %v1042, %v1086
        %v1105 = vadd.f32 %v1043, %v1087
        %v1106 = vadd.f32 %v1044, %v1088
        %v1107 = vadd.f32 %v1045, %v1089
        %v1108 = vadd.f32 %v1046, %v1090
        %v1109 = vadd.f32 %v1047, %v1091
        %v1110 = vadd.f32 %v1048, %v1086
        %v1111 = vadd.f32 %v1049, %v1087
        %v1112 = vadd.f32 %v1050, %v1088
        %v1113 = vadd.f32 %v1051, %v1089
        %v1114 = vadd.f32 %v1052, %v1090
        %v1115 = vadd.f32 %v1053, %v1091
        %v1116 = vadd.f32 %v1054, %v1086
        %v1117 = vadd.f32 %v1055, %v1087
        %v1118 = vadd.f32 %v1056, %v1088
        %v1119 = vadd.f32 %v1057, %v1089
        %v1120 = vadd.f32 %v1058, %v1090
        %v1121 = vadd.f32 %v1059, %v1091
        %v1122 = vadd.f32 %v1060, %v1086
        %v1123 = vadd.f32 %v1061, %v1087
        %v1124 = vadd.f32 %v1062, %v1088
        %v1125 = vadd.f32 %v1063, %v1089
        %v1126 = vadd.f32 %v1064, %v1090
        %v1127 = vadd.f32 %v1065, %v1091
        %v1128 = vadd.f32 %v1066, %v1086
        %v1129 = vadd.f32 %v1067, %v1087
        %v1130 = vadd.f32 %v1068, %v1088
        %v1131 = vadd.f32 %v1069, %v1089
        %v1132 = vadd.f32 %v1070, %v1090
        %v1133 = vadd.f32 %v1071, %v1091
        %v1134 = vadd.f32 %v1072, %v1086
        %v1135 = vadd.f32 %v1073, %v1087
        %v1136 = vadd.f32 %v1074, %v1088
        %v1137 = vadd.f32 %v1075, %v1089
        %v1138 = vadd.f32 %v1076, %v1090
        %v1139 = vadd.f32 %v1077, %v1091
        %v1140 = vadd.f32 %v1078, %v1086
        %v1141 = vadd.f32 %v1079, %v1087
        %v1142 = vadd.f32 %v1080, %v1088
        %v1143 = vadd.f32 %v1081, %v1089
        %v1144 = vadd.f32 %v1082, %v1090
        %v1145 = vadd.f32 %v1083, %v1091
        %vm1146 = vcmp.gt.f32.partialorder %v1098, 0.0
        %vm1147 = vcmp.gt.f32.partialorder %v1099, 0.0
        %vm1148 = vcmp.gt.f32.partialorder %v1100, 0.0
        %vm1149 = vcmp.gt.f32.partialorder %v1101, 0.0
        %vm1150 = vcmp.gt.f32.partialorder %v1102, 0.0
        %vm1151 = vcmp.gt.f32.partialorder %v1103, 0.0
        %vm1152 = vcmp.gt.f32.partialorder %v1104, 0.0
        %vm1153 = vcmp.gt.f32.partialorder %v1105, 0.0
        %vm1154 = vcmp.gt.f32.partialorder %v1106, 0.0
        %vm1155 = vcmp.gt.f32.partialorder %v1107, 0.0
        %vm1156 = vcmp.gt.f32.partialorder %v1108, 0.0
        %vm1157 = vcmp.gt.f32.partialorder %v1109, 0.0
        %vm1158 = vcmp.gt.f32.partialorder %v1110, 0.0
        %vm1159 = vcmp.gt.f32.partialorder %v1111, 0.0
        %vm1160 = vcmp.gt.f32.partialorder %v1112, 0.0
        %vm1161 = vcmp.gt.f32.partialorder %v1113, 0.0
        %vm1162 = vcmp.gt.f32.partialorder %v1114, 0.0
        %vm1163 = vcmp.gt.f32.partialorder %v1115, 0.0
        %vm1164 = vcmp.gt.f32.partialorder %v1116, 0.0
        %vm1165 = vcmp.gt.f32.partialorder %v1117, 0.0
        %vm1166 = vcmp.gt.f32.partialorder %v1118, 0.0
        %vm1167 = vcmp.gt.f32.partialorder %v1119, 0.0
        %vm1168 = vcmp.gt.f32.partialorder %v1120, 0.0
        %vm1169 = vcmp.gt.f32.partialorder %v1121, 0.0
        %vm1170 = vcmp.gt.f32.partialorder %v1122, 0.0
        %vm1171 = vcmp.gt.f32.partialorder %v1123, 0.0
        %vm1172 = vcmp.gt.f32.partialorder %v1124, 0.0
        %vm1173 = vcmp.gt.f32.partialorder %v1125, 0.0
        %vm1174 = vcmp.gt.f32.partialorder %v1126, 0.0
        %vm1175 = vcmp.gt.f32.partialorder %v1127, 0.0
        %vm1176 = vcmp.gt.f32.partialorder %v1128, 0.0
        %vm1177 = vcmp.gt.f32.partialorder %v1129, 0.0
        %vm1178 = vcmp.gt.f32.partialorder %v1130, 0.0
        %vm1179 = vcmp.gt.f32.partialorder %v1131, 0.0
        %vm1180 = vcmp.gt.f32.partialorder %v1132, 0.0
        %vm1181 = vcmp.gt.f32.partialorder %v1133, 0.0
        %vm1182 = vcmp.gt.f32.partialorder %v1134, 0.0
        %vm1183 = vcmp.gt.f32.partialorder %v1135, 0.0
        %vm1184 = vcmp.gt.f32.partialorder %v1136, 0.0
        %vm1185 = vcmp.gt.f32.partialorder %v1137, 0.0
        %vm1186 = vcmp.gt.f32.partialorder %v1138, 0.0
        %vm1187 = vcmp.gt.f32.partialorder %v1139, 0.0
        %vm1188 = vcmp.gt.f32.partialorder %v1140, 0.0
        %vm1189 = vcmp.gt.f32.partialorder %v1141, 0.0
        %vm1190 = vcmp.gt.f32.partialorder %v1142, 0.0
        %vm1191 = vcmp.gt.f32.partialorder %v1143, 0.0
        %vm1192 = vcmp.gt.f32.partialorder %v1144, 0.0
        %vm1193 = vcmp.gt.f32.partialorder %v1145, 0.0
        %v1194 = vld [vmem:[%s3] sm:$0x3f]
        %v1196 = vperm.slane %v1194, 0
        %v1197 = vperm.slane %v1194, 1
        %v1198 = vperm.slane %v1194, 2
        %v1199 = vperm.slane %v1194, 3
        %v1200 = vperm.slane %v1194, 4
        %v1201 = vperm.slane %v1194, 5
        %v1208 = vmul.f32 %v1196, %v1098
        %v1209 = vmul.f32 %v1197, %v1099
        %v1210 = vmul.f32 %v1198, %v1100
        %v1211 = vmul.f32 %v1199, %v1101
        %v1212 = vmul.f32 %v1200, %v1102
        %v1213 = vmul.f32 %v1201, %v1103
        %v1214 = vmul.f32 %v1196, %v1104
        %v1215 = vmul.f32 %v1197, %v1105
        %v1216 = vmul.f32 %v1198, %v1106
        %v1217 = vmul.f32 %v1199, %v1107
        %v1218 = vmul.f32 %v1200, %v1108
        %v1219 = vmul.f32 %v1201, %v1109
        %v1220 = vmul.f32 %v1196, %v1110
        %v1221 = vmul.f32 %v1197, %v1111
        %v1222 = vmul.f32 %v1198, %v1112
        %v1223 = vmul.f32 %v1199, %v1113
        %v1224 = vmul.f32 %v1200, %v1114
        %v1225 = vmul.f32 %v1201, %v1115
        %v1226 = vmul.f32 %v1196, %v1116
        %v1227 = vmul.f32 %v1197, %v1117
        %v1228 = vmul.f32 %v1198, %v1118
        %v1229 = vmul.f32 %v1199, %v1119
        %v1230 = vmul.f32 %v1200, %v1120
        %v1231 = vmul.f32 %v1201, %v1121
        %v1232 = vmul.f32 %v1196, %v1122
        %v1233 = vmul.f32 %v1197, %v1123
        %v1234 = vmul.f32 %v1198, %v1124
        %v1235 = vmul.f32 %v1199, %v1125
        %v1236 = vmul.f32 %v1200, %v1126
        %v1237 = vmul.f32 %v1201, %v1127
        %v1238 = vmul.f32 %v1196, %v1128
        %v1239 = vmul.f32 %v1197, %v1129
        %v1240 = vmul.f32 %v1198, %v1130
        %v1241 = vmul.f32 %v1199, %v1131
        %v1242 = vmul.f32 %v1200, %v1132
        %v1243 = vmul.f32 %v1201, %v1133
        %v1244 = vmul.f32 %v1196, %v1134
        %v1245 = vmul.f32 %v1197, %v1135
        %v1246 = vmul.f32 %v1198, %v1136
        %v1247 = vmul.f32 %v1199, %v1137
        %v1248 = vmul.f32 %v1200, %v1138
        %v1249 = vmul.f32 %v1201, %v1139
        %v1250 = vmul.f32 %v1196, %v1140
        %v1251 = vmul.f32 %v1197, %v1141
        %v1252 = vmul.f32 %v1198, %v1142
        %v1253 = vmul.f32 %v1199, %v1143
        %v1254 = vmul.f32 %v1200, %v1144
        %v1255 = vmul.f32 %v1201, %v1145
        %v1256 = vsel %vm1146, %v1098, %v1208
        %v1257 = vsel %vm1147, %v1099, %v1209
        %v1258 = vsel %vm1148, %v1100, %v1210
        %v1259 = vsel %vm1149, %v1101, %v1211
        %v1260 = vsel %vm1150, %v1102, %v1212
        %v1261 = vsel %vm1151, %v1103, %v1213
        %v1262 = vsel %vm1152, %v1104, %v1214
        %v1263 = vsel %vm1153, %v1105, %v1215
        %v1264 = vsel %vm1154, %v1106, %v1216
        %v1265 = vsel %vm1155, %v1107, %v1217
        %v1266 = vsel %vm1156, %v1108, %v1218
        %v1267 = vsel %vm1157, %v1109, %v1219
        %v1268 = vsel %vm1158, %v1110, %v1220
        %v1269 = vsel %vm1159, %v1111, %v1221
        %v1270 = vsel %vm1160, %v1112, %v1222
        %v1271 = vsel %vm1161, %v1113, %v1223
        %v1272 = vsel %vm1162, %v1114, %v1224
        %v1273 = vsel %vm1163, %v1115, %v1225
        %v1274 = vsel %vm1164, %v1116, %v1226
        %v1275 = vsel %vm1165, %v1117, %v1227
        %v1276 = vsel %vm1166, %v1118, %v1228
        %v1277 = vsel %vm1167, %v1119, %v1229
        %v1278 = vsel %vm1168, %v1120, %v1230
        %v1279 = vsel %vm1169, %v1121, %v1231
        %v1280 = vsel %vm1170, %v1122, %v1232
        %v1281 = vsel %vm1171, %v1123, %v1233
        %v1282 = vsel %vm1172, %v1124, %v1234
        %v1283 = vsel %vm1173, %v1125, %v1235
        %v1284 = vsel %vm1174, %v1126, %v1236
        %v1285 = vsel %vm1175, %v1127, %v1237
        %v1286 = vsel %vm1176, %v1128, %v1238
        %v1287 = vsel %vm1177, %v1129, %v1239
        %v1288 = vsel %vm1178, %v1130, %v1240
        %v1289 = vsel %vm1179, %v1131, %v1241
        %v1290 = vsel %vm1180, %v1132, %v1242
        %v1291 = vsel %vm1181, %v1133, %v1243
        %v1292 = vsel %vm1182, %v1134, %v1244
        %v1293 = vsel %vm1183, %v1135, %v1245
        %v1294 = vsel %vm1184, %v1136, %v1246
        %v1295 = vsel %vm1185, %v1137, %v1247
        %v1296 = vsel %vm1186, %v1138, %v1248
        %v1297 = vsel %vm1187, %v1139, %v1249
        %v1298 = vsel %vm1188, %v1140, %v1250
        %v1299 = vsel %vm1189, %v1141, %v1251
        %v1300 = vsel %vm1190, %v1142, %v1252
        %v1301 = vsel %vm1191, %v1143, %v1253
        %v1302 = vsel %vm1192, %v1144, %v1254
        %v1303 = vsel %vm1193, %v1145, %v1255
        %v1304 = vpack.c.bf16 %v1257, %v1256
        %v1305 = vpack.c.bf16 %v1259, %v1258
        %v1306 = vpack.c.bf16 %v1261, %v1260
        %v1307 = vpack.c.bf16 %v1263, %v1262
        %v1308 = vpack.c.bf16 %v1265, %v1264
        %v1309 = vpack.c.bf16 %v1267, %v1266
        %v1310 = vpack.c.bf16 %v1269, %v1268
        %v1311 = vpack.c.bf16 %v1271, %v1270
        %v1312 = vpack.c.bf16 %v1273, %v1272
        %v1313 = vpack.c.bf16 %v1275, %v1274
        %v1314 = vpack.c.bf16 %v1277, %v1276
        %v1315 = vpack.c.bf16 %v1279, %v1278
        %v1316 = vpack.c.bf16 %v1281, %v1280
        %v1317 = vpack.c.bf16 %v1283, %v1282
        %v1318 = vpack.c.bf16 %v1285, %v1284
        %v1319 = vpack.c.bf16 %v1287, %v1286
        %v1320 = vpack.c.bf16 %v1289, %v1288
        %v1321 = vpack.c.bf16 %v1291, %v1290
        %v1322 = vpack.c.bf16 %v1293, %v1292
        %v1323 = vpack.c.bf16 %v1295, %v1294
        %v1324 = vpack.c.bf16 %v1297, %v1296
        %v1325 = vpack.c.bf16 %v1299, %v1298
        %v1326 = vpack.c.bf16 %v1301, %v1300
        %v1327 = vpack.c.bf16 %v1303, %v1302
        %1328 = vst [vmem:[%s337] sm:$0xff] %v1304
        %1329 = vst [vmem:[%s337 + $0x8] sm:$0xff] %v1305
        %1330 = vst [vmem:[%s337 + $0x10] sm:$0xff] %v1306
        %1331 = vst [vmem:[%s337 + $0x18] sm:$0xff] %v1307
        %1332 = vst [vmem:[%s337 + $0x20] sm:$0xff] %v1308
        %1333 = vst [vmem:[%s337 + $0x28] sm:$0xff] %v1309
        %1334 = vst [vmem:[%s337 + $0x30] sm:$0xff] %v1310
        %1335 = vst [vmem:[%s337 + $0x38] sm:$0xff] %v1311
        %1336 = vst [vmem:[%s337 + $0x40] sm:$0xff] %v1312
        %1337 = vst [vmem:[%s337 + $0x48] sm:$0xff] %v1313
        %1338 = vst [vmem:[%s337 + $0x50] sm:$0xff] %v1314
        %1339 = vst [vmem:[%s337 + $0x58] sm:$0xff] %v1315
        %1340 = vst [vmem:[%s337 + $0x60] sm:$0xff] %v1316
        %1341 = vst [vmem:[%s337 + $0x68] sm:$0xff] %v1317
        %1342 = vst [vmem:[%s337 + $0x70] sm:$0xff] %v1318
        %1343 = vst [vmem:[%s337 + $0x78] sm:$0xff] %v1319
        %1344 = vst [vmem:[%s337 + $0x80] sm:$0xff] %v1320
        %1345 = vst [vmem:[%s337 + $0x88] sm:$0xff] %v1321
        %1346 = vst [vmem:[%s337 + $0x90] sm:$0xff] %v1322
        %1347 = vst [vmem:[%s337 + $0x98] sm:$0xff] %v1323
        %1348 = vst [vmem:[%s337 + $0xa0] sm:$0xff] %v1324
        %1349 = vst [vmem:[%s337 + $0xa8] sm:$0xff] %v1325
        %1350 = vst [vmem:[%s337 + $0xb0] sm:$0xff] %v1326
        %1351 = vst [vmem:[%s337 + $0xb8] sm:$0xff] %v1327
        %s1352 = smul.u32 %s23, 64
        %v1353 = vlaneseq
        %v1354 = vshrl.u32 %v1353, 7
        %v1355 = vadd.s32 %v1354, 8
        %v1356 = vadd.s32 %v1354, 16
        %v1357 = vadd.s32 %v1354, 24
        %v1358 = vadd.s32 %v1354, 32
        %v1359 = vadd.s32 %v1354, 40
        %v1360 = vadd.s32 %v1354, 48
        %v1361 = vadd.s32 %v1354, 56
        %v1362 = vstv %s1352
        %v1363 = vadd.s32 %v1362, %v1354
        %v1364 = vadd.s32 %v1362, %v1355
        %v1365 = vadd.s32 %v1362, %v1356
        %v1366 = vadd.s32 %v1362, %v1357
        %v1367 = vadd.s32 %v1362, %v1358
        %v1368 = vadd.s32 %v1362, %v1359
        %v1369 = vadd.s32 %v1362, %v1360
        %v1370 = vadd.s32 %v1362, %v1361
        %vm1371 = vcmp.lt.s32.totalorder %v1363, 16
        %vm1372 = vcmp.lt.s32.totalorder %v1364, 16
        %vm1373 = vcmp.lt.s32.totalorder %v1365, 16
        %vm1374 = vcmp.lt.s32.totalorder %v1366, 16
        %vm1375 = vcmp.lt.s32.totalorder %v1367, 16
        %vm1376 = vcmp.lt.s32.totalorder %v1368, 16
        %vm1377 = vcmp.lt.s32.totalorder %v1369, 16
        %vm1378 = vcmp.lt.s32.totalorder %v1370, 16
        %v1379 = vpack.c.bf16 %v1262, %v1256
        %v1380 = vpack.c.bf16 %v1274, %v1268
        %v1381 = vpack.c.bf16 %v1286, %v1280
        %v1382 = vpack.c.bf16 %v1298, %v1292
        %v1383 = vld [vmem:[%s4] sm:$0xf]
        %v1384 = vld [vmem:[%s4 + $0x4] sm:$0xf]
        %v1385 = vld [vmem:[%s4 + $0x8] sm:$0xf]
        %v1386 = vld [vmem:[%s4 + $0xc] sm:$0xf]
        %v1387 = vld [vmem:[%s4 + $0x10] sm:$0xf]
        %v1388 = vld [vmem:[%s4 + $0x14] sm:$0xf]
        %v1389 = vld [vmem:[%s4 + $0x18] sm:$0xf]
        %v1390 = vld [vmem:[%s4 + $0x1c] sm:$0xf]
        %v1391 = vld [vmem:[%s4 + $0x20] sm:$0xf]
        %v1392 = vld [vmem:[%s4 + $0x24] sm:$0xf]
        %v1393 = vld [vmem:[%s4 + $0x28] sm:$0xf]
        %v1394 = vld [vmem:[%s4 + $0x2c] sm:$0xf]
        %v1395 = vld [vmem:[%s4 + $0x30] sm:$0xf]
        %v1396 = vld [vmem:[%s4 + $0x34] sm:$0xf]
        %v1397 = vld [vmem:[%s4 + $0x38] sm:$0xf]
        %v1398 = vld [vmem:[%s4 + $0x3c] sm:$0xf]
        %v1399 = vld [vmem:[%s5] sm:$0x1]
        %v1401 = vperm.slane %v1399, 0
        %v1419 = vunpack.c.l.b16 %v1383
        %v1420 = vunpack.c.l.b16 %v1384
        %v1421 = vunpack.c.l.b16 %v1385
        %v1422 = vunpack.c.l.b16 %v1386
        %v1423 = vunpack.c.l.b16 %v1387
        %v1424 = vunpack.c.l.b16 %v1388
        %v1425 = vunpack.c.l.b16 %v1389
        %v1426 = vunpack.c.l.b16 %v1390
        %v1427 = vunpack.c.l.b16 %v1391
        %v1428 = vunpack.c.l.b16 %v1392
        %v1429 = vunpack.c.l.b16 %v1393
        %v1430 = vunpack.c.l.b16 %v1394
        %v1431 = vunpack.c.l.b16 %v1395
        %v1432 = vunpack.c.l.b16 %v1396
        %v1433 = vunpack.c.l.b16 %v1397
        %v1434 = vunpack.c.l.b16 %v1398
        %v1435 = vpack.c.b16 %v1420, %v1419
        %v1436 = vpack.c.b16 %v1422, %v1421
        %v1437 = vpack.c.b16 %v1424, %v1423
        %v1438 = vpack.c.b16 %v1426, %v1425
        %v1439 = vpack.c.b16 %v1428, %v1427
        %v1440 = vpack.c.b16 %v1430, %v1429
        %v1441 = vpack.c.b16 %v1432, %v1431
        %v1442 = vpack.c.b16 %v1434, %v1433
        %1451 = vmatpush.bf16.msra.mxu0 %v1442
        %1452 = vmatpush.bf16.msra.mxu0 %v1441
        %1453 = vmatpush.bf16.msra.mxu0 %v1440
        %1454 = vmatpush.bf16.msra.mxu0 %v1439
        %1455 = vmatpush.bf16.msra.mxu0 %v1438
        %1456 = vmatpush.bf16.msra.mxu0 %v1437
        %1457 = vmatpush.bf16.msra.mxu0 %v1436
        %1458 = vmatpush.bf16.msra.mxu0 %v1435
        %1459 = vmatmul.bf16.gmra.mxu0 %v1379
        %v1460 = vpop.f32.mrf.mxu0
        %v1461 = vadd.f32 %v1401, %v1460
        %v1462 = vpop.f32.mrf.mxu0
        %v1463 = vadd.f32 %v1401, %v1462
        %1464 = vmatmul.bf16.gmra.mxu0 %v1380
        %v1465 = vpop.f32.mrf.mxu0
        %v1466 = vadd.f32 %v1401, %v1465
        %v1467 = vpop.f32.mrf.mxu0
        %v1468 = vadd.f32 %v1401, %v1467
        %1469 = vmatmul.bf16.gmra.mxu0 %v1381
        %v1470 = vpop.f32.mrf.mxu0
        %v1471 = vadd.f32 %v1401, %v1470
        %v1472 = vpop.f32.mrf.mxu0
        %v1473 = vadd.f32 %v1401, %v1472
        %1474 = vmatmul.bf16.gmra.mxu0 %v1382
        %v1475 = vpop.f32.mrf.mxu0
        %v1476 = vadd.f32 %v1401, %v1475
        %v1477 = vpop.f32.mrf.mxu0
        %v1478 = vadd.f32 %v1401, %v1477
        %1479 = vdwg.mxu0
        %v1480 = vtanh.pop %v1461
        %v1481 = vtanh.pop %v1463
        %v1482 = vtanh.pop %v1466
        %v1483 = vtanh.pop %v1468
        %v1484 = vtanh.pop %v1471
        %v1485 = vtanh.pop %v1473
        %v1486 = vtanh.pop %v1476
        %v1487 = vtanh.pop %v1478
        %v1488 = vsel %vm1371, %v1480, 0.0
        %v1489 = vsel %vm1372, %v1481, 0.0
        %v1490 = vsel %vm1373, %v1482, 0.0
        %v1491 = vsel %vm1374, %v1483, 0.0
        %v1492 = vsel %vm1375, %v1484, 0.0
        %v1493 = vsel %vm1376, %v1485, 0.0
        %v1494 = vsel %vm1377, %v1486, 0.0
        %v1495 = vsel %vm1378, %v1487, 0.0
        %v1496 = vadd.f32 %v1488, %v1489
        %v1497 = vadd.f32 %v1496, %v1490
        %v1498 = vadd.f32 %v1497, %v1491
        %v1499 = vadd.f32 %v1498, %v1492
        %v1500 = vadd.f32 %v1499, %v1493
        %v1501 = vadd.f32 %v1500, %v1494
        %v1502 = vadd.f32 %v1501, %v1495
        %v1503 = vrot.slane %v1502, 4
        %v1504 = vadd.f32 %v1502, %v1503
        %v1505 = vrot.slane %v1504, 2
        %v1506 = vadd.f32 %v1504, %v1505
        %v1507 = vrot.slane %v1506, 1
        %v1508 = vadd.f32 %v1506, %v1507
        %v1509 = vpack.c.bf16 %v1263, %v1257
        %v1510 = vpack.c.bf16 %v1275, %v1269
        %v1511 = vpack.c.bf16 %v1287, %v1281
        %v1512 = vpack.c.bf16 %v1299, %v1293
        %1513 = vmatpush.bf16.msra.mxu0 %v1442
        %1514 = vmatpush.bf16.msra.mxu0 %v1441
        %1515 = vmatpush.bf16.msra.mxu0 %v1440
        %1516 = vmatpush.bf16.msra.mxu0 %v1439
        %1517 = vmatpush.bf16.msra.mxu0 %v1438
        %1518 = vmatpush.bf16.msra.mxu0 %v1437
        %1519 = vmatpush.bf16.msra.mxu0 %v1436
        %1520 = vmatpush.bf16.msra.mxu0 %v1435
        %1521 = vmatmul.bf16.gmra.mxu0 %v1509
        %v1522 = vpop.f32.mrf.mxu0
        %v1523 = vadd.f32 %v1401, %v1522
        %v1524 = vpop.f32.mrf.mxu0
        %v1525 = vadd.f32 %v1401, %v1524
        %1526 = vmatmul.bf16.gmra.mxu0 %v1510
        %v1527 = vpop.f32.mrf.mxu0
        %v1528 = vadd.f32 %v1401, %v1527
        %v1529 = vpop.f32.mrf.mxu0
        %v1530 = vadd.f32 %v1401, %v1529
        %1531 = vmatmul.bf16.gmra.mxu0 %v1511
        %v1532 = vpop.f32.mrf.mxu0
        %v1533 = vadd.f32 %v1401, %v1532
        %v1534 = vpop.f32.mrf.mxu0
        %v1535 = vadd.f32 %v1401, %v1534
        %1536 = vmatmul.bf16.gmra.mxu0 %v1512
        %v1537 = vpop.f32.mrf.mxu0
        %v1538 = vadd.f32 %v1401, %v1537
        %v1539 = vpop.f32.mrf.mxu0
        %v1540 = vadd.f32 %v1401, %v1539
        %1541 = vdwg.mxu0
        %v1542 = vtanh.pop %v1523
        %v1543 = vtanh.pop %v1525
        %v1544 = vtanh.pop %v1528
        %v1545 = vtanh.pop %v1530
        %v1546 = vtanh.pop %v1533
        %v1547 = vtanh.pop %v1535
        %v1548 = vtanh.pop %v1538
        %v1549 = vtanh.pop %v1540
        %v1550 = vsel %vm1371, %v1542, 0.0
        %v1551 = vsel %vm1372, %v1543, 0.0
        %v1552 = vsel %vm1373, %v1544, 0.0
        %v1553 = vsel %vm1374, %v1545, 0.0
        %v1554 = vsel %vm1375, %v1546, 0.0
        %v1555 = vsel %vm1376, %v1547, 0.0
        %v1556 = vsel %vm1377, %v1548, 0.0
        %v1557 = vsel %vm1378, %v1549, 0.0
        %v1558 = vadd.f32 %v1550, %v1551
        %v1559 = vadd.f32 %v1558, %v1552
        %v1560 = vadd.f32 %v1559, %v1553
        %v1561 = vadd.f32 %v1560, %v1554
        %v1562 = vadd.f32 %v1561, %v1555
        %v1563 = vadd.f32 %v1562, %v1556
        %v1564 = vadd.f32 %v1563, %v1557
        %v1565 = vrot.slane %v1564, 4
        %v1566 = vadd.f32 %v1564, %v1565
        %v1567 = vrot.slane %v1566, 2
        %v1568 = vadd.f32 %v1566, %v1567
        %v1569 = vrot.slane %v1568, 1
        %v1570 = vadd.f32 %v1568, %v1569
        %v1571 = vpack.c.bf16 %v1264, %v1258
        %v1572 = vpack.c.bf16 %v1276, %v1270
        %v1573 = vpack.c.bf16 %v1288, %v1282
        %v1574 = vpack.c.bf16 %v1300, %v1294
        %1575 = vmatpush.bf16.msra.mxu0 %v1442
        %1576 = vmatpush.bf16.msra.mxu0 %v1441
        %1577 = vmatpush.bf16.msra.mxu0 %v1440
        %1578 = vmatpush.bf16.msra.mxu0 %v1439
        %1579 = vmatpush.bf16.msra.mxu0 %v1438
        %1580 = vmatpush.bf16.msra.mxu0 %v1437
        %1581 = vmatpush.bf16.msra.mxu0 %v1436
        %1582 = vmatpush.bf16.msra.mxu0 %v1435
        %1583 = vmatmul.bf16.gmra.mxu0 %v1571
        %v1584 = vpop.f32.mrf.mxu0
        %v1585 = vadd.f32 %v1401, %v1584
        %v1586 = vpop.f32.mrf.mxu0
        %v1587 = vadd.f32 %v1401, %v1586
        %1588 = vmatmul.bf16.gmra.mxu0 %v1572
        %v1589 = vpop.f32.mrf.mxu0
        %v1590 = vadd.f32 %v1401, %v1589
        %v1591 = vpop.f32.mrf.mxu0
        %v1592 = vadd.f32 %v1401, %v1591
        %1593 = vmatmul.bf16.gmra.mxu0 %v1573
        %v1594 = vpop.f32.mrf.mxu0
        %v1595 = vadd.f32 %v1401, %v1594
        %v1596 = vpop.f32.mrf.mxu0
        %v1597 = vadd.f32 %v1401, %v1596
        %1598 = vmatmul.bf16.gmra.mxu0 %v1574
        %v1599 = vpop.f32.mrf.mxu0
        %v1600 = vadd.f32 %v1401, %v1599
        %v1601 = vpop.f32.mrf.mxu0
        %v1602 = vadd.f32 %v1401, %v1601
        %1603 = vdwg.mxu0
        %v1604 = vtanh.pop %v1585
        %v1605 = vtanh.pop %v1587
        %v1606 = vtanh.pop %v1590
        %v1607 = vtanh.pop %v1592
        %v1608 = vtanh.pop %v1595
        %v1609 = vtanh.pop %v1597
        %v1610 = vtanh.pop %v1600
        %v1611 = vtanh.pop %v1602
        %v1612 = vsel %vm1371, %v1604, 0.0
        %v1613 = vsel %vm1372, %v1605, 0.0
        %v1614 = vsel %vm1373, %v1606, 0.0
        %v1615 = vsel %vm1374, %v1607, 0.0
        %v1616 = vsel %vm1375, %v1608, 0.0
        %v1617 = vsel %vm1376, %v1609, 0.0
        %v1618 = vsel %vm1377, %v1610, 0.0
        %v1619 = vsel %vm1378, %v1611, 0.0
        %v1620 = vadd.f32 %v1612, %v1613
        %v1621 = vadd.f32 %v1620, %v1614
        %v1622 = vadd.f32 %v1621, %v1615
        %v1623 = vadd.f32 %v1622, %v1616
        %v1624 = vadd.f32 %v1623, %v1617
        %v1625 = vadd.f32 %v1624, %v1618
        %v1626 = vadd.f32 %v1625, %v1619
        %v1627 = vrot.slane %v1626, 4
        %v1628 = vadd.f32 %v1626, %v1627
        %v1629 = vrot.slane %v1628, 2
        %v1630 = vadd.f32 %v1628, %v1629
        %v1631 = vrot.slane %v1630, 1
        %v1632 = vadd.f32 %v1630, %v1631
        %v1633 = vpack.c.bf16 %v1265, %v1259
        %v1634 = vpack.c.bf16 %v1277, %v1271
        %v1635 = vpack.c.bf16 %v1289, %v1283
        %v1636 = vpack.c.bf16 %v1301, %v1295
        %1637 = vmatpush.bf16.msra.mxu0 %v1442
        %1638 = vmatpush.bf16.msra.mxu0 %v1441
        %1639 = vmatpush.bf16.msra.mxu0 %v1440
        %1640 = vmatpush.bf16.msra.mxu0 %v1439
        %1641 = vmatpush.bf16.msra.mxu0 %v1438
        %1642 = vmatpush.bf16.msra.mxu0 %v1437
        %1643 = vmatpush.bf16.msra.mxu0 %v1436
        %1644 = vmatpush.bf16.msra.mxu0 %v1435
        %1645 = vmatmul.bf16.gmra.mxu0 %v1633
        %v1646 = vpop.f32.mrf.mxu0
        %v1647 = vadd.f32 %v1401, %v1646
        %v1648 = vpop.f32.mrf.mxu0
        %v1649 = vadd.f32 %v1401, %v1648
        %1650 = vmatmul.bf16.gmra.mxu0 %v1634
        %v1651 = vpop.f32.mrf.mxu0
        %v1652 = vadd.f32 %v1401, %v1651
        %v1653 = vpop.f32.mrf.mxu0
        %v1654 = vadd.f32 %v1401, %v1653
        %1655 = vmatmul.bf16.gmra.mxu0 %v1635
        %v1656 = vpop.f32.mrf.mxu0
        %v1657 = vadd.f32 %v1401, %v1656
        %v1658 = vpop.f32.mrf.mxu0
        %v1659 = vadd.f32 %v1401, %v1658
        %1660 = vmatmul.bf16.gmra.mxu0 %v1636
        %v1661 = vpop.f32.mrf.mxu0
        %v1662 = vadd.f32 %v1401, %v1661
        %v1663 = vpop.f32.mrf.mxu0
        %v1664 = vadd.f32 %v1401, %v1663
        %1665 = vdwg.mxu0
        %v1666 = vtanh.pop %v1647
        %v1667 = vtanh.pop %v1649
        %v1668 = vtanh.pop %v1652
        %v1669 = vtanh.pop %v1654
        %v1670 = vtanh.pop %v1657
        %v1671 = vtanh.pop %v1659
        %v1672 = vtanh.pop %v1662
        %v1673 = vtanh.pop %v1664
        %v1674 = vsel %vm1371, %v1666, 0.0
        %v1675 = vsel %vm1372, %v1667, 0.0
        %v1676 = vsel %vm1373, %v1668, 0.0
        %v1677 = vsel %vm1374, %v1669, 0.0
        %v1678 = vsel %vm1375, %v1670, 0.0
        %v1679 = vsel %vm1376, %v1671, 0.0
        %v1680 = vsel %vm1377, %v1672, 0.0
        %v1681 = vsel %vm1378, %v1673, 0.0
        %v1682 = vadd.f32 %v1674, %v1675
        %v1683 = vadd.f32 %v1682, %v1676
        %v1684 = vadd.f32 %v1683, %v1677
        %v1685 = vadd.f32 %v1684, %v1678
        %v1686 = vadd.f32 %v1685, %v1679
        %v1687 = vadd.f32 %v1686, %v1680
        %v1688 = vadd.f32 %v1687, %v1681
        %v1689 = vrot.slane %v1688, 4
        %v1690 = vadd.f32 %v1688, %v1689
        %v1691 = vrot.slane %v1690, 2
        %v1692 = vadd.f32 %v1690, %v1691
        %v1693 = vrot.slane %v1692, 1
        %v1694 = vadd.f32 %v1692, %v1693
        %v1695 = vpack.c.bf16 %v1266, %v1260
        %v1696 = vpack.c.bf16 %v1278, %v1272
        %v1697 = vpack.c.bf16 %v1290, %v1284
        %v1698 = vpack.c.bf16 %v1302, %v1296
        %1699 = vmatpush.bf16.msra.mxu0 %v1442
        %1700 = vmatpush.bf16.msra.mxu0 %v1441
        %1701 = vmatpush.bf16.msra.mxu0 %v1440
        %1702 = vmatpush.bf16.msra.mxu0 %v1439
        %1703 = vmatpush.bf16.msra.mxu0 %v1438
        %1704 = vmatpush.bf16.msra.mxu0 %v1437
        %1705 = vmatpush.bf16.msra.mxu0 %v1436
        %1706 = vmatpush.bf16.msra.mxu0 %v1435
        %1707 = vmatmul.bf16.gmra.mxu0 %v1695
        %v1708 = vpop.f32.mrf.mxu0
        %v1709 = vadd.f32 %v1401, %v1708
        %v1710 = vpop.f32.mrf.mxu0
        %v1711 = vadd.f32 %v1401, %v1710
        %1712 = vmatmul.bf16.gmra.mxu0 %v1696
        %v1713 = vpop.f32.mrf.mxu0
        %v1714 = vadd.f32 %v1401, %v1713
        %v1715 = vpop.f32.mrf.mxu0
        %v1716 = vadd.f32 %v1401, %v1715
        %1717 = vmatmul.bf16.gmra.mxu0 %v1697
        %v1718 = vpop.f32.mrf.mxu0
        %v1719 = vadd.f32 %v1401, %v1718
        %v1720 = vpop.f32.mrf.mxu0
        %v1721 = vadd.f32 %v1401, %v1720
        %1722 = vmatmul.bf16.gmra.mxu0 %v1698
        %v1723 = vpop.f32.mrf.mxu0
        %v1724 = vadd.f32 %v1401, %v1723
        %v1725 = vpop.f32.mrf.mxu0
        %v1726 = vadd.f32 %v1401, %v1725
        %1727 = vdwg.mxu0
        %v1728 = vtanh.pop %v1709
        %v1729 = vtanh.pop %v1711
        %v1730 = vtanh.pop %v1714
        %v1731 = vtanh.pop %v1716
        %v1732 = vtanh.pop %v1719
        %v1733 = vtanh.pop %v1721
        %v1734 = vtanh.pop %v1724
        %v1735 = vtanh.pop %v1726
        %v1736 = vsel %vm1371, %v1728, 0.0
        %v1737 = vsel %vm1372, %v1729, 0.0
        %v1738 = vsel %vm1373, %v1730, 0.0
        %v1739 = vsel %vm1374, %v1731, 0.0
        %v1740 = vsel %vm1375, %v1732, 0.0
        %v1741 = vsel %vm1376, %v1733, 0.0
        %v1742 = vsel %vm1377, %v1734, 0.0
        %v1743 = vsel %vm1378, %v1735, 0.0
        %v1744 = vadd.f32 %v1736, %v1737
        %v1745 = vadd.f32 %v1744, %v1738
        %v1746 = vadd.f32 %v1745, %v1739
        %v1747 = vadd.f32 %v1746, %v1740
        %v1748 = vadd.f32 %v1747, %v1741
        %v1749 = vadd.f32 %v1748, %v1742
        %v1750 = vadd.f32 %v1749, %v1743
        %v1751 = vrot.slane %v1750, 4
        %v1752 = vadd.f32 %v1750, %v1751
        %v1753 = vrot.slane %v1752, 2
        %v1754 = vadd.f32 %v1752, %v1753
        %v1755 = vrot.slane %v1754, 1
        %v1756 = vadd.f32 %v1754, %v1755
        %v1757 = vpack.c.bf16 %v1267, %v1261
        %v1758 = vpack.c.bf16 %v1279, %v1273
        %v1759 = vpack.c.bf16 %v1291, %v1285
        %v1760 = vpack.c.bf16 %v1303, %v1297
        %1761 = vmatpush.bf16.msra.mxu0 %v1442
        %1762 = vmatpush.bf16.msra.mxu0 %v1441
        %1763 = vmatpush.bf16.msra.mxu0 %v1440
        %1764 = vmatpush.bf16.msra.mxu0 %v1439
        %1765 = vmatpush.bf16.msra.mxu0 %v1438
        %1766 = vmatpush.bf16.msra.mxu0 %v1437
        %1767 = vmatpush.bf16.msra.mxu0 %v1436
        %1768 = vmatpush.bf16.msra.mxu0 %v1435
        %1769 = vmatmul.bf16.gmra.mxu0 %v1757
        %v1770 = vpop.f32.mrf.mxu0
        %v1771 = vadd.f32 %v1401, %v1770
        %v1772 = vpop.f32.mrf.mxu0
        %v1773 = vadd.f32 %v1401, %v1772
        %1774 = vmatmul.bf16.gmra.mxu0 %v1758
        %v1775 = vpop.f32.mrf.mxu0
        %v1776 = vadd.f32 %v1401, %v1775
        %v1777 = vpop.f32.mrf.mxu0
        %v1778 = vadd.f32 %v1401, %v1777
        %1779 = vmatmul.bf16.gmra.mxu0 %v1759
        %v1780 = vpop.f32.mrf.mxu0
        %v1781 = vadd.f32 %v1401, %v1780
        %v1782 = vpop.f32.mrf.mxu0
        %v1783 = vadd.f32 %v1401, %v1782
        %1784 = vmatmul.bf16.gmra.mxu0 %v1760
        %v1785 = vpop.f32.mrf.mxu0
        %v1786 = vadd.f32 %v1401, %v1785
        %v1787 = vpop.f32.mrf.mxu0
        %v1788 = vadd.f32 %v1401, %v1787
        %1789 = vdwg.mxu0
        %v1790 = vtanh.pop %v1771
        %v1791 = vtanh.pop %v1773
        %v1792 = vtanh.pop %v1776
        %v1793 = vtanh.pop %v1778
        %v1794 = vtanh.pop %v1781
        %v1795 = vtanh.pop %v1783
        %v1796 = vtanh.pop %v1786
        %v1797 = vtanh.pop %v1788
        %v1798 = vsel %vm1371, %v1790, 0.0
        %v1799 = vsel %vm1372, %v1791, 0.0
        %v1800 = vsel %vm1373, %v1792, 0.0
        %v1801 = vsel %vm1374, %v1793, 0.0
        %v1802 = vsel %vm1375, %v1794, 0.0
        %v1803 = vsel %vm1376, %v1795, 0.0
        %v1804 = vsel %vm1377, %v1796, 0.0
        %v1805 = vsel %vm1378, %v1797, 0.0
        %v1806 = vadd.f32 %v1798, %v1799
        %v1807 = vadd.f32 %v1806, %v1800
        %v1808 = vadd.f32 %v1807, %v1801
        %v1809 = vadd.f32 %v1808, %v1802
        %v1810 = vadd.f32 %v1809, %v1803
        %v1811 = vadd.f32 %v1810, %v1804
        %v1812 = vadd.f32 %v1811, %v1805
        %v1813 = vrot.slane %v1812, 4
        %v1814 = vadd.f32 %v1812, %v1813
        %v1815 = vrot.slane %v1814, 2
        %v1816 = vadd.f32 %v1814, %v1815
        %v1817 = vrot.slane %v1816, 1
        %v1818 = vadd.f32 %v1816, %v1817
        %v1825 = vrot.slane %v1570, 7
        %v1826 = vrot.slane %v1632, 6
        %v1827 = vrot.slane %v1694, 5
        %v1828 = vrot.slane %v1756, 4
        %v1829 = vrot.slane %v1818, 3
        %vm1830 = vcmask 1040384
        %v1831 = vsel %vm1830, %v1508, %v1825
        %vm1832 = vcmask 1041408
        %v1833 = vsel %vm1832, %v1831, %v1826
        %vm1834 = vcmask 1043459
        %v1835 = vsel %vm1834, %v1827, %v1828
        %vm1836 = vcmask 1044483
        %v1837 = vsel %vm1836, %v1835, %v1829
        %vm1838 = vcmask 1042432
        %v1839 = vsel %vm1838, %v1833, %v1837
        %v1841 = vlaneseq
        %vm1842 = vcmp.ge.s32.totalorder %v1841, 0
        %vm1843 = vcmp.lt.s32.totalorder %v1841, 768
        %vm1844 = vmand %vm1842, %vm1843
        %1845 = vst.msk [vmem:[%s342] sm:$0x3f] %vm1844, %v1839
      $region52: #{mp_encoder_forward.4} parent=43 // pred_fallthru
        _
      %s1846 = smul.u32 8, %s23
      %p1847 = scmp.lt.s32.totalorder %s1846, 15
      %s1848 = scalar_select %p1847, %s1846, 15
      %s1849 = smul.addr %s1848, 6
      %s1850 = smul.addr %s1849, 4
      %s1851 = scalar_lea.vmem %s6, %s1850
      %p1852 = scmp.lt.s32.totalorder %s23, 1
      %s1853 = scalar_select %p1852, %s23, 1
      %s1854 = smul.addr %s1853, 6
      %s1855 = scalar_lea.vmem %s7, %s1854
      // Predicated region
      $region53: #{mp_encoder_forward.4} parent=43 // pred_check
        %p1856 = pneg %p187
      $region54: #{mp_encoder_forward.4} parent=43 // pred_check_branch
        %1858 = sbr.rel (%p1856) target = $region56
      $region55: #{mp_encoder_forward.4} parent=43 // pred_region
        %s1859 = smul.u32 8, %s23
      $region56: #{mp_encoder_forward.4} parent=43 // pred_fallthru
        _
      // Predicated region
      $region57: #{mp_encoder_forward.4} parent=43 // pred_check
        %p1860 = pneg %p213
      $region58: #{mp_encoder_forward.4} parent=43 // pred_check_branch
        %1862 = sbr.rel (%p1860) target = $region60
      $region59: #{mp_encoder_forward.4} parent=43 // pred_region
        _
      $region60: #{mp_encoder_forward.4} parent=43 // pred_fallthru
        _
    $region44: #{mp_encoder_forward.4} parent=5 // pred_fallthru
      _
    %p1863 = scmp.le.s32.totalorder 2, %s14
    // Predicated region
    $region61: #{mp_encoder_forward.4} parent=5 // pred_check
      %p1864 = pneg %p1863
    $region62: #{mp_encoder_forward.4} parent=5 // pred_check_branch
      %1866 = sbr.rel (%p1864) target = $region64
    $region63: #{mp_encoder_forward.4} parent=5 // pred_region
      %s1867 = ssub.s32 %s14, 2
      // Predicated region
      $region65: #{mp_encoder_forward.4} parent=63 // pred_check
        %p1868 = pneg %p193
      $region66: #{mp_encoder_forward.4} parent=63 // pred_check_branch
        %1870 = sbr.rel (%p1868) target = $region68
      $region67: #{mp_encoder_forward.4} parent=63 // pred_region
        %s1871 = smul.u32 8, %s25
        %p1872 = scmp.lt.s32.totalorder %s1871, 15
        %s1873 = scalar_select %p1872, %s1871, 15
        %s1874 = smul.addr %s1873, 6
        %s1875 = smul.addr %s1874, 4
        %s1876 = scalar_lea.vmem %s6, %s1875
      $region68: #{mp_encoder_forward.4} parent=63 // pred_fallthru
        _
      // Predicated region
      $region69: #{mp_encoder_forward.4} parent=63 // pred_check
        %p1877 = pneg %p219
      $region70: #{mp_encoder_forward.4} parent=63 // pred_check_branch
        %1879 = sbr.rel (%p1877) target = $region72
      $region71: #{mp_encoder_forward.4} parent=63 // pred_region
        %p1880 = scmp.lt.s32.totalorder %s25, 1
        %s1881 = scalar_select %p1880, %s25, 1
        %s1882 = smul.addr %s1881, 6
        %s1883 = scalar_lea.vmem %s7, %s1882
      $region72: #{mp_encoder_forward.4} parent=63 // pred_fallthru
        _
    $region64: #{mp_encoder_forward.4} parent=5 // pred_fallthru
      _
  $region6: #{mp_encoder_forward.4} parent=0 // loop_footer
    %s18 = sadd.s32 1, %s14
  $region7: #{mp_encoder_forward.4} parent=0 // loop_footer_branch
    %13 = sbr.rel target = $region3
  $region8: #{mp_encoder_forward.4} parent=0 // loop_exit
    _

</llo_original>
